<compile_context>
chip_gen: v5e
topology: v5e:2x2
jax: 0.10.0
libtpu: 0.0.40
codegen_flags: <defaults>
</compile_context>

<pallas_src>
import functools
import math

import jax
import jax.numpy as jnp
from jax.experimental import pallas as pl
from jax.experimental.pallas import tpu as pltpu


def _round_up(x, m):
    return (x + m - 1) // m * m


# ---------------------------------------------------------------------------
# Pallas kernel: fused 3x3 conv + scale/shift (bias or folded BN) + LeakyReLU
# ---------------------------------------------------------------------------

def _single_conv_kernel(x_ref, w_ref, scale_ref, shift_ref, o_ref, *,
                        H, W, negative_slope):
    """x_ref: (1, H+2, W+2, Cin) bf16 zero-padded image block
       w_ref: (9, Cin, Ct)       bf16 tap-major weights
       scale_ref/shift_ref: (1, Ct) f32
       o_ref: (1, H, W, Ct)      f32
    """
    ct = o_ref.shape[-1]
    acc = jnp.zeros((H * W, ct), jnp.float32)
    for ky in range(3):
        for kx in range(3):
            patch = x_ref[0, ky:ky + H, kx:kx + W, :]          # (H, W, Cin)
            patch = patch.reshape(H * W, patch.shape[-1])      # free: W % 16 == 0
            acc = acc + jnp.dot(patch, w_ref[3 * ky + kx],
                                preferred_element_type=jnp.float32)
    y = acc * scale_ref[...] + shift_ref[...]
    y = jnp.where(y >= 0, y, jnp.float32(negative_slope) * y)
    o_ref[...] = y.reshape(1, H, W, ct).astype(o_ref.dtype)


def _pick_cout_tile(h, w, cin, cout, vmem_budget=32 * 1024 * 1024):
    """Largest Cout tile (full Cout or multiple of 128) fitting a VMEM budget."""
    def need(tc):
        x_blk = (h + 2) * (w + 2) * cin * 2 * 2   # bf16 input, double-buffered
        w_blk = 9 * cin * tc * 2 * 2              # bf16 weights, double-buffered
        o_blk = h * w * tc * 4 * 2                # f32 output, double-buffered
        acc = h * w * tc * 4                      # f32 accumulator value
        misc = 4 * tc * 4
        return x_blk + w_blk + o_blk + acc + misc

    if need(cout) <= vmem_budget or cout <= 128:
        return cout
    tc = 128
    while tc * 2 < cout and need(tc * 2) <= vmem_budget:
        tc *= 2
    return tc


# ---------------------------------------------------------------------------
# SingleConv forward (NCHW in / NCHW out, matching the PyTorch module)
# ---------------------------------------------------------------------------

def single_conv_forward(params, x_nchw, *, batch_norm=True,
                        negative_slope=0.1, eps=1e-5):
    w = params["weight"]                                  # (Cout, Cin, 3, 3)
    cout, cin = w.shape[0], w.shape[1]
    n, cin2, h, wd = x_nchw.shape
    assert cin2 == cin

    if batch_norm:
        # Eval-mode BatchNorm folded into a per-channel scale/shift epilogue.
        inv_std = 1.0 / jnp.sqrt(params["running_var"] + eps)
        scale = params["gamma"] * inv_std
        shift = params["beta"] - params["running_mean"] * scale
    else:
        scale = jnp.ones((cout,), jnp.float32)
        shift = params["bias"]

    # NCHW -> NHWC, zero-pad spatially (pad=1) and round W up to a multiple of
    # 16 so the in-kernel reshape stays sublane-aligned for bf16.
    wp = _round_up(wd, 16)
    x = jnp.transpose(x_nchw, (0, 2, 3, 1))
    x = jnp.pad(x, ((0, 0), (1, 1), (1, 1 + (wp - wd)), (0, 0)))
    x = x.astype(jnp.bfloat16)                            # (N, H+2, Wp+2, Cin)

    # (Cout, Cin, 3, 3) -> tap-major (9, Cin, Cout), bf16 for the MXU.
    w9 = jnp.transpose(w, (2, 3, 1, 0)).reshape(9, cin, cout).astype(jnp.bfloat16)
    scale2 = scale.reshape(1, cout).astype(jnp.float32)
    shift2 = shift.reshape(1, cout).astype(jnp.float32)

    tc = _pick_cout_tile(h, wp, cin, cout)
    n_ct = pl.cdiv(cout, tc)

    kern = functools.partial(_single_conv_kernel, H=h, W=wp,
                             negative_slope=negative_slope)

    flops = 2 * n * h * wp * 9 * cin * cout
    bytes_accessed = int(x.size * 2 + w9.size * 2 + n * h * wp * cout * 4
                         + 2 * cout * 4)

    out = pl.pallas_call(
        kern,
        out_shape=jax.ShapeDtypeStruct((n, h, wp, cout), jnp.float32),
        grid=(n, n_ct),
        in_specs=[
            pl.BlockSpec((1, h + 2, wp + 2, cin), lambda b, c: (b, 0, 0, 0)),
            pl.BlockSpec((9, cin, tc), lambda b, c: (0, 0, c)),
            pl.BlockSpec((1, tc), lambda b, c: (0, c)),
            pl.BlockSpec((1, tc), lambda b, c: (0, c)),
        ],
        out_specs=pl.BlockSpec((1, h, wp, tc), lambda b, c: (b, 0, 0, c)),
        compiler_params=pltpu.CompilerParams(
            dimension_semantics=("parallel", "parallel"),
            vmem_limit_bytes=48 * 1024 * 1024),
        cost_estimate=pl.CostEstimate(flops=flops, transcendentals=0,
                                      bytes_accessed=bytes_accessed),
    )(x, w9, scale2, shift2)

    out = out[:, :, :wd, :]                               # drop width padding
    return jnp.transpose(out, (0, 3, 1, 2))               # NHWC -> NCHW


# ---------------------------------------------------------------------------
# Parameter init (deterministic) and pure-JAX reference for verification
# ---------------------------------------------------------------------------

def init_single_conv_params(key, in_channels, out_channels, batch_norm=True):
    kw, kb = jax.random.split(key)
    fan_in = in_channels * 9
    std = math.sqrt(2.0 / fan_in)
    weight = std * jax.random.normal(kw, (out_channels, in_channels, 3, 3),
                                     jnp.float32)
    params = {"weight": weight}
    if batch_norm:
        params.update(
            gamma=jnp.ones((out_channels,), jnp.float32),
            beta=jnp.zeros((out_channels,), jnp.float32),
            running_mean=jnp.zeros((out_channels,), jnp.float32),
            running_var=jnp.ones((out_channels,), jnp.float32),
        )
    else:
        bound = 1.0 / math.sqrt(fan_in)
        params["bias"] = jax.random.uniform(kb, (out_channels,), jnp.float32,
                                            -bound, bound)
    return params


def _reference_forward(params, x, batch_norm=True, negative_slope=0.1, eps=1e-5):
    y = jax.lax.conv_general_dilated(
        x, params["weight"], window_strides=(1, 1), padding=((1, 1), (1, 1)),
        dimension_numbers=("NCHW", "OIHW", "NCHW"))
    if batch_norm:
        scale = params["gamma"] / jnp.sqrt(params["running_var"] + eps)
        shift = params["beta"] - params["running_mean"] * scale
    else:
        scale = jnp.ones_like(params["bias"])
        shift = params["bias"]
    y = y * scale[None, :, None, None] + shift[None, :, None, None]
    return jnp.where(y >= 0, y, negative_slope * y)


if __name__ == "__main__":
    key = jax.random.PRNGKey(0)
    k_bn, k_nb, k_x = jax.random.split(key, 3)

    in_c, out_c = 4, 8
    x = jax.random.normal(k_x, (2, in_c, 16, 16), dtype=jnp.float32)

    # Default module config: batchNorm=True (Conv2d bias=False + BN + LeakyReLU).
    p_bn = init_single_conv_params(k_bn, in_c, out_c, batch_norm=True)
    fwd_bn = jax.jit(functools.partial(single_conv_forward, batch_norm=True))
    y_bn = fwd_bn(p_bn, x)
    jax.block_until_ready(y_bn)
    assert y_bn.shape == (2, out_c, 16, 16), y_bn.shape
    assert bool(jnp.all(jnp.isfinite(y_bn)))
    ref_bn = _reference_forward(p_bn, x, batch_norm=True)
    assert bool(jnp.allclose(y_bn, ref_bn, atol=5e-2, rtol=5e-2)), \
        float(jnp.max(jnp.abs(y_bn - ref_bn)))

    # batchNorm=False config: Conv2d(bias=True) + LeakyReLU.
    p_nb = init_single_conv_params(k_nb, in_c, out_c, batch_norm=False)
    fwd_nb = jax.jit(functools.partial(single_conv_forward, batch_norm=False))
    y_nb = fwd_nb(p_nb, x)
    jax.block_until_ready(y_nb)
    ref_nb = _reference_forward(p_nb, x, batch_norm=False)
    assert bool(jnp.allclose(y_nb, ref_nb, atol=5e-2, rtol=5e-2)), \
        float(jnp.max(jnp.abs(y_nb - ref_nb)))

    print("KERNEL_OK")
</pallas_src>

<mosaic_0001>
module attributes {stable_mosaic.version = 11 : i64} {
  func.func @_single_conv_kernel(%arg0: i32, %arg1: i32, %arg2: memref<1x18x18x4xbf16, #tpu.memory_space<vmem>>, %arg3: memref<9x4x8xbf16, #tpu.memory_space<vmem>>, %arg4: memref<1x8xf32, #tpu.memory_space<vmem>>, %arg5: memref<1x8xf32, #tpu.memory_space<vmem>>, %arg6: memref<1x16x16x8xf32, #tpu.memory_space<vmem>>) attributes {dimension_semantics = [#tpu.dimension_semantics<parallel>, #tpu.dimension_semantics<parallel>], iteration_bounds = array<i64: 2, 1>, scalar_prefetch = 0 : i64, scratch_operands = 0 : i64, tpu.core_type = #tpu.core_type<tc>, window_params = [{transform_indices = @transform_0, window_bounds = array<i64: 1, 18, 18, 4>}, {transform_indices = @transform_1, window_bounds = array<i64: 9, 4, 8>}, {transform_indices = @transform_2, window_bounds = array<i64: 1, 8>}, {transform_indices = @transform_3, window_bounds = array<i64: 1, 8>}, {transform_indices = @transform_4, window_bounds = array<i64: 1, 16, 16, 8>}]} {
    %cst = arith.constant 0.000000e+00 : f32
    %0 = vector.broadcast %cst : f32 to vector<256x8xf32>
    %c0 = arith.constant 0 : index
    %c0_0 = arith.constant 0 : index
    %c0_1 = arith.constant 0 : index
    %c0_2 = arith.constant 0 : index
    %1 = vector.load %arg2[%c0, %c0_0, %c0_1, %c0_2] : memref<1x18x18x4xbf16, #tpu.memory_space<vmem>>, vector<1x16x16x4xbf16>
    %2 = vector.shape_cast %1 : vector<1x16x16x4xbf16> to vector<16x16x4xbf16>
    %3 = vector.shape_cast %2 : vector<16x16x4xbf16> to vector<256x4xbf16>
    %c0_3 = arith.constant 0 : index
    %c0_4 = arith.constant 0 : index
    %c0_5 = arith.constant 0 : index
    %4 = vector.load %arg3[%c0_3, %c0_4, %c0_5] : memref<9x4x8xbf16, #tpu.memory_space<vmem>>, vector<1x4x8xbf16>
    %5 = vector.shape_cast %4 : vector<1x4x8xbf16> to vector<4x8xbf16>
    %cst_6 = arith.constant dense<0.000000e+00> : vector<256x8xf32>
    %6 = tpu.matmul %3, %5, %cst_6 {dimension_numbers = #tpu.dot_dimension_numbers<[1], [0], [0], [1], [0, 0, 1, 1], [], []>} : vector<256x4xbf16>, vector<4x8xbf16>, vector<256x8xf32> -> vector<256x8xf32>
    %7 = arith.addf %0, %6 : vector<256x8xf32>
    %c0_7 = arith.constant 0 : index
    %c0_8 = arith.constant 0 : index
    %c1 = arith.constant 1 : index
    %c0_9 = arith.constant 0 : index
    %8 = vector.load %arg2[%c0_7, %c0_8, %c1, %c0_9] : memref<1x18x18x4xbf16, #tpu.memory_space<vmem>>, vector<1x16x16x4xbf16>
    %9 = vector.shape_cast %8 : vector<1x16x16x4xbf16> to vector<16x16x4xbf16>
    %10 = vector.shape_cast %9 : vector<16x16x4xbf16> to vector<256x4xbf16>
    %c1_10 = arith.constant 1 : index
    %c0_11 = arith.constant 0 : index
    %c0_12 = arith.constant 0 : index
    %11 = vector.load %arg3[%c1_10, %c0_11, %c0_12] : memref<9x4x8xbf16, #tpu.memory_space<vmem>>, vector<1x4x8xbf16>
    %12 = vector.shape_cast %11 : vector<1x4x8xbf16> to vector<4x8xbf16>
    %cst_13 = arith.constant dense<0.000000e+00> : vector<256x8xf32>
    %13 = tpu.matmul %10, %12, %cst_13 {dimension_numbers = #tpu.dot_dimension_numbers<[1], [0], [0], [1], [0, 0, 1, 1], [], []>} : vector<256x4xbf16>, vector<4x8xbf16>, vector<256x8xf32> -> vector<256x8xf32>
    %14 = arith.addf %7, %13 : vector<256x8xf32>
    %c0_14 = arith.constant 0 : index
    %c0_15 = arith.constant 0 : index
    %c2 = arith.constant 2 : index
    %c0_16 = arith.constant 0 : index
    %15 = vector.load %arg2[%c0_14, %c0_15, %c2, %c0_16] : memref<1x18x18x4xbf16, #tpu.memory_space<vmem>>, vector<1x16x16x4xbf16>
    %16 = vector.shape_cast %15 : vector<1x16x16x4xbf16> to vector<16x16x4xbf16>
    %17 = vector.shape_cast %16 : vector<16x16x4xbf16> to vector<256x4xbf16>
    %c2_17 = arith.constant 2 : index
    %c0_18 = arith.constant 0 : index
    %c0_19 = arith.constant 0 : index
    %18 = vector.load %arg3[%c2_17, %c0_18, %c0_19] : memref<9x4x8xbf16, #tpu.memory_space<vmem>>, vector<1x4x8xbf16>
    %19 = vector.shape_cast %18 : vector<1x4x8xbf16> to vector<4x8xbf16>
    %cst_20 = arith.constant dense<0.000000e+00> : vector<256x8xf32>
    %20 = tpu.matmul %17, %19, %cst_20 {dimension_numbers = #tpu.dot_dimension_numbers<[1], [0], [0], [1], [0, 0, 1, 1], [], []>} : vector<256x4xbf16>, vector<4x8xbf16>, vector<256x8xf32> -> vector<256x8xf32>
    %21 = arith.addf %14, %20 : vector<256x8xf32>
    %c0_21 = arith.constant 0 : index
    %c1_22 = arith.constant 1 : index
    %c0_23 = arith.constant 0 : index
    %c0_24 = arith.constant 0 : index
    %22 = vector.load %arg2[%c0_21, %c1_22, %c0_23, %c0_24] : memref<1x18x18x4xbf16, #tpu.memory_space<vmem>>, vector<1x16x16x4xbf16>
    %23 = vector.shape_cast %22 : vector<1x16x16x4xbf16> to vector<16x16x4xbf16>
    %24 = vector.shape_cast %23 : vector<16x16x4xbf16> to vector<256x4xbf16>
    %c3 = arith.constant 3 : index
    %c0_25 = arith.constant 0 : index
    %c0_26 = arith.constant 0 : index
    %25 = vector.load %arg3[%c3, %c0_25, %c0_26] : memref<9x4x8xbf16, #tpu.memory_space<vmem>>, vector<1x4x8xbf16>
    %26 = vector.shape_cast %25 : vector<1x4x8xbf16> to vector<4x8xbf16>
    %cst_27 = arith.constant dense<0.000000e+00> : vector<256x8xf32>
    %27 = tpu.matmul %24, %26, %cst_27 {dimension_numbers = #tpu.dot_dimension_numbers<[1], [0], [0], [1], [0, 0, 1, 1], [], []>} : vector<256x4xbf16>, vector<4x8xbf16>, vector<256x8xf32> -> vector<256x8xf32>
    %28 = arith.addf %21, %27 : vector<256x8xf32>
    %c0_28 = arith.constant 0 : index
    %c1_29 = arith.constant 1 : index
    %c1_30 = arith.constant 1 : index
    %c0_31 = arith.constant 0 : index
    %29 = vector.load %arg2[%c0_28, %c1_29, %c1_30, %c0_31] : memref<1x18x18x4xbf16, #tpu.memory_space<vmem>>, vector<1x16x16x4xbf16>
    %30 = vector.shape_cast %29 : vector<1x16x16x4xbf16> to vector<16x16x4xbf16>
    %31 = vector.shape_cast %30 : vector<16x16x4xbf16> to vector<256x4xbf16>
    %c4 = arith.constant 4 : index
    %c0_32 = arith.constant 0 : index
    %c0_33 = arith.constant 0 : index
    %32 = vector.load %arg3[%c4, %c0_32, %c0_33] : memref<9x4x8xbf16, #tpu.memory_space<vmem>>, vector<1x4x8xbf16>
    %33 = vector.shape_cast %32 : vector<1x4x8xbf16> to vector<4x8xbf16>
    %cst_34 = arith.constant dense<0.000000e+00> : vector<256x8xf32>
    %34 = tpu.matmul %31, %33, %cst_34 {dimension_numbers = #tpu.dot_dimension_numbers<[1], [0], [0], [1], [0, 0, 1, 1], [], []>} : vector<256x4xbf16>, vector<4x8xbf16>, vector<256x8xf32> -> vector<256x8xf32>
    %35 = arith.addf %28, %34 : vector<256x8xf32>
    %c0_35 = arith.constant 0 : index
    %c1_36 = arith.constant 1 : index
    %c2_37 = arith.constant 2 : index
    %c0_38 = arith.constant 0 : index
    %36 = vector.load %arg2[%c0_35, %c1_36, %c2_37, %c0_38] : memref<1x18x18x4xbf16, #tpu.memory_space<vmem>>, vector<1x16x16x4xbf16>
    %37 = vector.shape_cast %36 : vector<1x16x16x4xbf16> to vector<16x16x4xbf16>
    %38 = vector.shape_cast %37 : vector<16x16x4xbf16> to vector<256x4xbf16>
    %c5 = arith.constant 5 : index
    %c0_39 = arith.constant 0 : index
    %c0_40 = arith.constant 0 : index
    %39 = vector.load %arg3[%c5, %c0_39, %c0_40] : memref<9x4x8xbf16, #tpu.memory_space<vmem>>, vector<1x4x8xbf16>
    %40 = vector.shape_cast %39 : vector<1x4x8xbf16> to vector<4x8xbf16>
    %cst_41 = arith.constant dense<0.000000e+00> : vector<256x8xf32>
    %41 = tpu.matmul %38, %40, %cst_41 {dimension_numbers = #tpu.dot_dimension_numbers<[1], [0], [0], [1], [0, 0, 1, 1], [], []>} : vector<256x4xbf16>, vector<4x8xbf16>, vector<256x8xf32> -> vector<256x8xf32>
    %42 = arith.addf %35, %41 : vector<256x8xf32>
    %c0_42 = arith.constant 0 : index
    %c2_43 = arith.constant 2 : index
    %c0_44 = arith.constant 0 : index
    %c0_45 = arith.constant 0 : index
    %43 = vector.load %arg2[%c0_42, %c2_43, %c0_44, %c0_45] : memref<1x18x18x4xbf16, #tpu.memory_space<vmem>>, vector<1x16x16x4xbf16>
    %44 = vector.shape_cast %43 : vector<1x16x16x4xbf16> to vector<16x16x4xbf16>
    %45 = vector.shape_cast %44 : vector<16x16x4xbf16> to vector<256x4xbf16>
    %c6 = arith.constant 6 : index
    %c0_46 = arith.constant 0 : index
    %c0_47 = arith.constant 0 : index
    %46 = vector.load %arg3[%c6, %c0_46, %c0_47] : memref<9x4x8xbf16, #tpu.memory_space<vmem>>, vector<1x4x8xbf16>
    %47 = vector.shape_cast %46 : vector<1x4x8xbf16> to vector<4x8xbf16>
    %cst_48 = arith.constant dense<0.000000e+00> : vector<256x8xf32>
    %48 = tpu.matmul %45, %47, %cst_48 {dimension_numbers = #tpu.dot_dimension_numbers<[1], [0], [0], [1], [0, 0, 1, 1], [], []>} : vector<256x4xbf16>, vector<4x8xbf16>, vector<256x8xf32> -> vector<256x8xf32>
    %49 = arith.addf %42, %48 : vector<256x8xf32>
    %c0_49 = arith.constant 0 : index
    %c2_50 = arith.constant 2 : index
    %c1_51 = arith.constant 1 : index
    %c0_52 = arith.constant 0 : index
    %50 = vector.load %arg2[%c0_49, %c2_50, %c1_51, %c0_52] : memref<1x18x18x4xbf16, #tpu.memory_space<vmem>>, vector<1x16x16x4xbf16>
    %51 = vector.shape_cast %50 : vector<1x16x16x4xbf16> to vector<16x16x4xbf16>
    %52 = vector.shape_cast %51 : vector<16x16x4xbf16> to vector<256x4xbf16>
    %c7 = arith.constant 7 : index
    %c0_53 = arith.constant 0 : index
    %c0_54 = arith.constant 0 : index
    %53 = vector.load %arg3[%c7, %c0_53, %c0_54] : memref<9x4x8xbf16, #tpu.memory_space<vmem>>, vector<1x4x8xbf16>
    %54 = vector.shape_cast %53 : vector<1x4x8xbf16> to vector<4x8xbf16>
    %cst_55 = arith.constant dense<0.000000e+00> : vector<256x8xf32>
    %55 = tpu.matmul %52, %54, %cst_55 {dimension_numbers = #tpu.dot_dimension_numbers<[1], [0], [0], [1], [0, 0, 1, 1], [], []>} : vector<256x4xbf16>, vector<4x8xbf16>, vector<256x8xf32> -> vector<256x8xf32>
    %56 = arith.addf %49, %55 : vector<256x8xf32>
    %c0_56 = arith.constant 0 : index
    %c2_57 = arith.constant 2 : index
    %c2_58 = arith.constant 2 : index
    %c0_59 = arith.constant 0 : index
    %57 = vector.load %arg2[%c0_56, %c2_57, %c2_58, %c0_59] : memref<1x18x18x4xbf16, #tpu.memory_space<vmem>>, vector<1x16x16x4xbf16>
    %58 = vector.shape_cast %57 : vector<1x16x16x4xbf16> to vector<16x16x4xbf16>
    %59 = vector.shape_cast %58 : vector<16x16x4xbf16> to vector<256x4xbf16>
    %c8 = arith.constant 8 : index
    %c0_60 = arith.constant 0 : index
    %c0_61 = arith.constant 0 : index
    %60 = vector.load %arg3[%c8, %c0_60, %c0_61] : memref<9x4x8xbf16, #tpu.memory_space<vmem>>, vector<1x4x8xbf16>
    %61 = vector.shape_cast %60 : vector<1x4x8xbf16> to vector<4x8xbf16>
    %cst_62 = arith.constant dense<0.000000e+00> : vector<256x8xf32>
    %62 = tpu.matmul %59, %61, %cst_62 {dimension_numbers = #tpu.dot_dimension_numbers<[1], [0], [0], [1], [0, 0, 1, 1], [], []>} : vector<256x4xbf16>, vector<4x8xbf16>, vector<256x8xf32> -> vector<256x8xf32>
    %63 = arith.addf %56, %62 : vector<256x8xf32>
    %c0_63 = arith.constant 0 : index
    %c0_64 = arith.constant 0 : index
    %64 = vector.load %arg4[%c0_63, %c0_64] : memref<1x8xf32, #tpu.memory_space<vmem>>, vector<1x8xf32>
    %65 = vector.broadcast %64 : vector<1x8xf32> to vector<256x8xf32>
    %66 = arith.mulf %63, %65 : vector<256x8xf32>
    %c0_65 = arith.constant 0 : index
    %c0_66 = arith.constant 0 : index
    %67 = vector.load %arg5[%c0_65, %c0_66] : memref<1x8xf32, #tpu.memory_space<vmem>>, vector<1x8xf32>
    %68 = vector.broadcast %67 : vector<1x8xf32> to vector<256x8xf32>
    %69 = arith.addf %66, %68 : vector<256x8xf32>
    %cst_67 = arith.constant 0.000000e+00 : f32
    %70 = vector.broadcast %cst_67 : f32 to vector<256x8xf32>
    %71 = arith.cmpf oge, %69, %70 : vector<256x8xf32>
    %cst_68 = arith.constant 1.000000e-01 : f32
    %72 = vector.broadcast %cst_68 : f32 to vector<256x8xf32>
    %73 = arith.mulf %72, %69 : vector<256x8xf32>
    %74 = arith.select %71, %69, %73 : vector<256x8xi1>, vector<256x8xf32>
    %75 = vector.shape_cast %74 : vector<256x8xf32> to vector<1x16x16x8xf32>
    %c0_69 = arith.constant 0 : index
    %c0_70 = arith.constant 0 : index
    %c0_71 = arith.constant 0 : index
    %c0_72 = arith.constant 0 : index
    %76 = vector.load %arg6[%c0_69, %c0_70, %c0_71, %c0_72] : memref<1x16x16x8xf32, #tpu.memory_space<vmem>>, vector<1x16x16x8xf32>
    tpu.vector_store %arg6[%c0_69, %c0_70, %c0_71, %c0_72], %75 {strides = array<i32>} : memref<1x16x16x8xf32, #tpu.memory_space<vmem>>, vector<1x16x16x8xf32>,
    return
  }
  func.func @transform_0(%arg0: i32, %arg1: i32) -> (i32, i32, i32, i32) {
    %c0_i32 = arith.constant 0 : i32
    %c0_i32_0 = arith.constant 0 : i32
    %c0_i32_1 = arith.constant 0 : i32
    %c0_i32_2 = arith.constant 0 : i32
    return %arg0, %c0_i32, %c0_i32_0, %c0_i32_1 : i32, i32, i32, i32
  }
  func.func @transform_1(%arg0: i32, %arg1: i32) -> (i32, i32, i32) {
    %c0_i32 = arith.constant 0 : i32
    %c0_i32_0 = arith.constant 0 : i32
    %c0_i32_1 = arith.constant 0 : i32
    return %c0_i32, %c0_i32_0, %arg1 : i32, i32, i32
  }
  func.func @transform_2(%arg0: i32, %arg1: i32) -> (i32, i32) {
    %c0_i32 = arith.constant 0 : i32
    %c0_i32_0 = arith.constant 0 : i32
    return %c0_i32, %arg1 : i32, i32
  }
  func.func @transform_3(%arg0: i32, %arg1: i32) -> (i32, i32) {
    %c0_i32 = arith.constant 0 : i32
    %c0_i32_0 = arith.constant 0 : i32
    return %c0_i32, %arg1 : i32, i32
  }
  func.func @transform_4(%arg0: i32, %arg1: i32) -> (i32, i32, i32, i32) {
    %c0_i32 = arith.constant 0 : i32
    %c0_i32_0 = arith.constant 0 : i32
    %c0_i32_1 = arith.constant 0 : i32
    return %arg0, %c0_i32, %c0_i32_0, %arg1 : i32, i32, i32, i32
  }
}

</mosaic_0001>

<llo_original>
// kernel: single_conv_forward.1
$region0: #{single_conv_forward.1}
  #allocation0 [shape = 'u32[]', space=smem, size = 0x4, offset = 0x4, fixed_abs, tag = 'smem constant byte address 0x4 - core index']
  #allocation1 [shape = 'u32[72,128]{1,0:T(1,128)}', space=vmem, size = 0x9000, scoped, tag = 'internal scratch']
  %s0 = inlined_call_operand.vmem [shape: bf16[2,18,18,4], index: 0, kind: input, shape index: {}]
  %s1 = inlined_call_operand.vmem [shape: bf16[9,4,8], index: 1, kind: input, shape index: {}]
  %s2 = inlined_call_operand.vmem [shape: f32[1,8], index: 2, kind: input, shape index: {}]
  %s3 = inlined_call_operand.vmem [shape: f32[1,8], index: 3, kind: input, shape index: {}]
  %s4 = inlined_call_operand.vmem [shape: f32[2,16,16,8], index: 4, kind: output, shape index: {}]
  %s5 = sld [smem:[#allocation0]]
  $region49: #{single_conv_forward.1} parent=0
    _
  %s7 = ssub.s32 1, %s5
  %s8 = scalar_select 0, %s7, %s5
  loop: start=0, step=1, limit=4
  $region2: #{single_conv_forward.1} parent=0 // loop_pre_header
    _
  $region3: #{single_conv_forward.1} parent=0 // loop_header
    %s10 = sphi 0, %s14
    %p11 = scmp.ge.s32.totalorder %s10, 4
    %s17 = sphi 0, %s29
    %s18 = sphi 0, %s25
    %s19 = sphi 0, %s17
    %s20 = sphi 0, %s18
    %s21 = sphi 0, %s19
    %s22 = sphi 0, %s20
    %s32 = sphi 0, %s34
    %s35 = sphi 0, %s32
    %s36 = sphi 0, %s35
    %s52 = sphi 0, %s36
    %s58 = sphi 0, %s60
    %s61 = sphi 0, %s58
    %s62 = sphi 0, %s61
    %s78 = sphi 0, %s62
    %s84 = sphi 0, %s86
    %s87 = sphi 0, %s84
    %s88 = sphi 0, %s87
    %s104 = sphi 0, %s88
    %s110 = sphi 0, %s112
    %s113 = sphi 0, %s110
    %s114 = sphi 0, %s113
    %s130 = sphi 0, %s114
    %s138 = sphi 0, %s140
    %s141 = sphi 0, %s138
    %s142 = sphi 0, %s141
    %s158 = sphi 0, %s142
  $region4: #{single_conv_forward.1} parent=0 // loop_header_branch
    %13 = sbr.rel (%p11) target = $region8
  $region5: #{single_conv_forward.1} parent=0 // loop_body
    %s15 = ssub.s32 %s10, 1
    %s16 = ssub.s32 %s10, 2
    %s23 = sadd.s32 1, %s18
    %p24 = scmp.ge.s32.totalorder %s23, 1
    %s25 = scalar_select %p24, 0, %s23
    %s26 = sadd.s32 1, %s17
    %s27 = scalar_select %p24, %s26, %s17
    %p28 = scmp.ge.s32.totalorder %s27, 2
    %s29 = scalar_select %p28, 0, %s27
    %s30 = ssub.s32 %s17, %s29
    %p31 = scmp.eq.s32.totalorder %s30, 0
    %s33 = sadd.s32 %s32, 1
    %s34 = scalar_select %p31, %s32, %s33
    %p37 = pneg %p31
    %p38 = scmp.eq.s32.totalorder %s10, 1
    %p39 = por %p37, %p38
    %p40 = scmp.ne.s32.totalorder %s32, %s35
    %p41 = scmp.eq.s32.totalorder %s10, 0
    %p42 = por %p40, %p41
    %p43 = scmp.ne.s32.totalorder %s32, %s35
    %p44 = scmp.eq.s32.totalorder %s15, 1
    %p45 = por %p43, %p44
    %p46 = scmp.ne.s32.totalorder %s35, %s36
    %p47 = scmp.eq.s32.totalorder %s15, 0
    %p48 = por %p46, %p47
    %p49 = scmp.ne.s32.totalorder %s35, %s36
    %p50 = scmp.eq.s32.totalorder %s16, 1
    %p51 = por %p49, %p50
    %p53 = scmp.ne.s32.totalorder %s36, %s52
    %p54 = scmp.eq.s32.totalorder %s16, 0
    %p55 = por %p53, %p54
    %s56 = ssub.s32 %s18, %s25
    %p57 = scmp.eq.s32.totalorder %s56, 0
    %s59 = sadd.s32 %s58, 1
    %s60 = scalar_select %p57, %s58, %s59
    %p63 = pneg %p57
    %p64 = scmp.eq.s32.totalorder %s10, 1
    %p65 = por %p63, %p64
    %p66 = scmp.ne.s32.totalorder %s58, %s61
    %p67 = scmp.eq.s32.totalorder %s10, 0
    %p68 = por %p66, %p67
    %p69 = scmp.ne.s32.totalorder %s58, %s61
    %p70 = scmp.eq.s32.totalorder %s15, 1
    %p71 = por %p69, %p70
    %p72 = scmp.ne.s32.totalorder %s61, %s62
    %p73 = scmp.eq.s32.totalorder %s15, 0
    %p74 = por %p72, %p73
    %p75 = scmp.ne.s32.totalorder %s61, %s62
    %p76 = scmp.eq.s32.totalorder %s16, 1
    %p77 = por %p75, %p76
    %p79 = scmp.ne.s32.totalorder %s62, %s78
    %p80 = scmp.eq.s32.totalorder %s16, 0
    %p81 = por %p79, %p80
    %s82 = ssub.s32 %s18, %s25
    %p83 = scmp.eq.s32.totalorder %s82, 0
    %s85 = sadd.s32 %s84, 1
    %s86 = scalar_select %p83, %s84, %s85
    %p89 = pneg %p83
    %p90 = scmp.eq.s32.totalorder %s10, 1
    %p91 = por %p89, %p90
    %p92 = scmp.ne.s32.totalorder %s84, %s87
    %p93 = scmp.eq.s32.totalorder %s10, 0
    %p94 = por %p92, %p93
    %p95 = scmp.ne.s32.totalorder %s84, %s87
    %p96 = scmp.eq.s32.totalorder %s15, 1
    %p97 = por %p95, %p96
    %p98 = scmp.ne.s32.totalorder %s87, %s88
    %p99 = scmp.eq.s32.totalorder %s15, 0
    %p100 = por %p98, %p99
    %p101 = scmp.ne.s32.totalorder %s87, %s88
    %p102 = scmp.eq.s32.totalorder %s16, 1
    %p103 = por %p101, %p102
    %p105 = scmp.ne.s32.totalorder %s88, %s104
    %p106 = scmp.eq.s32.totalorder %s16, 0
    %p107 = por %p105, %p106
    %s108 = ssub.s32 %s18, %s25
    %p109 = scmp.eq.s32.totalorder %s108, 0
    %s111 = sadd.s32 %s110, 1
    %s112 = scalar_select %p109, %s110, %s111
    %p115 = pneg %p109
    %p116 = scmp.eq.s32.totalorder %s10, 1
    %p117 = por %p115, %p116
    %p118 = scmp.ne.s32.totalorder %s110, %s113
    %p119 = scmp.eq.s32.totalorder %s10, 0
    %p120 = por %p118, %p119
    %p121 = scmp.ne.s32.totalorder %s110, %s113
    %p122 = scmp.eq.s32.totalorder %s15, 1
    %p123 = por %p121, %p122
    %p124 = scmp.ne.s32.totalorder %s113, %s114
    %p125 = scmp.eq.s32.totalorder %s15, 0
    %p126 = por %p124, %p125
    %p127 = scmp.ne.s32.totalorder %s113, %s114
    %p128 = scmp.eq.s32.totalorder %s16, 1
    %p129 = por %p127, %p128
    %p131 = scmp.ne.s32.totalorder %s114, %s130
    %p132 = scmp.eq.s32.totalorder %s16, 0
    %p133 = por %p131, %p132
    %s134 = ssub.s32 %s17, %s29
    %s135 = ssub.s32 %s18, %s25
    %s136 = sor.u32 %s134, %s135
    %p137 = scmp.eq.s32.totalorder %s136, 0
    %s139 = sadd.s32 %s138, 1
    %s140 = scalar_select %p137, %s138, %s139
    %p143 = pneg %p137
    %p144 = scmp.eq.s32.totalorder %s10, 1
    %p145 = por %p143, %p144
    %p146 = scmp.ne.s32.totalorder %s138, %s141
    %p147 = scmp.eq.s32.totalorder %s10, 0
    %p148 = por %p146, %p147
    %p149 = scmp.ne.s32.totalorder %s138, %s141
    %p150 = scmp.eq.s32.totalorder %s15, 1
    %p151 = por %p149, %p150
    %p152 = scmp.ne.s32.totalorder %s141, %s142
    %p153 = scmp.eq.s32.totalorder %s15, 0
    %p154 = por %p152, %p153
    %p155 = scmp.ne.s32.totalorder %s141, %s142
    %p156 = scmp.eq.s32.totalorder %s16, 1
    %p157 = por %p155, %p156
    %p159 = scmp.ne.s32.totalorder %s142, %s158
    %p160 = scmp.eq.s32.totalorder %s16, 0
    %p161 = por %p159, %p160
    %p162 = scmp.le.s32.totalorder 1, %s10
    %p163 = scmp.lt.s32.totalorder %s10, 3
    %p164 = pnand %p162, %p163
    %p165 = pneg %p164
    // Predicated region
    $region9: #{single_conv_forward.1} parent=5 // pred_check
      _
    $region10: #{single_conv_forward.1} parent=5 // pred_check_branch
      %167 = sbr.rel (%p164) target = $region12
    $region11: #{single_conv_forward.1} parent=5 // pred_region
      %s168 = ssub.s32 %s10, 1
      // Predicated region
      $region13: #{single_conv_forward.1} parent=11 // pred_check
        %p169 = pneg %p74
      $region14: #{single_conv_forward.1} parent=11 // pred_check_branch
        %171 = sbr.rel (%p169) target = $region16
      $region15: #{single_conv_forward.1} parent=11 // pred_region
        %p172 = scmp.lt.s32.totalorder %s20, 0
        %s173 = scalar_select %p172, %s20, 0
        %s174 = smul.addr %s173, 2
        %s175 = scalar_lea.vmem %s1, %s174
      $region16: #{single_conv_forward.1} parent=11 // pred_fallthru
        _
      // Predicated region
      $region17: #{single_conv_forward.1} parent=11 // pred_check
        %p176 = pneg %p100
      $region18: #{single_conv_forward.1} parent=11 // pred_check_branch
        %178 = sbr.rel (%p176) target = $region20
      $region19: #{single_conv_forward.1} parent=11 // pred_region
        %p179 = scmp.lt.s32.totalorder %s20, 0
        %s180 = scalar_select %p179, %s20, 0
        %s181 = scalar_lea.vmem %s2, %s180
      $region20: #{single_conv_forward.1} parent=11 // pred_fallthru
        _
      // Predicated region
      $region21: #{single_conv_forward.1} parent=11 // pred_check
        %p182 = pneg %p126
      $region22: #{single_conv_forward.1} parent=11 // pred_check_branch
        %184 = sbr.rel (%p182) target = $region24
      $region23: #{single_conv_forward.1} parent=11 // pred_region
        %p185 = scmp.lt.s32.totalorder %s20, 0
        %s186 = scalar_select %p185, %s20, 0
        %s187 = scalar_lea.vmem %s3, %s186
      $region24: #{single_conv_forward.1} parent=11 // pred_fallthru
        _
    $region12: #{single_conv_forward.1} parent=5 // pred_fallthru
      _
    %p188 = scmp.lt.s32.totalorder %s10, 2
    // Predicated region
    $region25: #{single_conv_forward.1} parent=5 // pred_check
      %p189 = pneg %p188
    $region26: #{single_conv_forward.1} parent=5 // pred_check_branch
      %191 = sbr.rel (%p189) target = $region28
    $region27: #{single_conv_forward.1} parent=5 // pred_region
      // Predicated region
      $region29: #{single_conv_forward.1} parent=27 // pred_check
        %p192 = pneg %p42
      $region30: #{single_conv_forward.1} parent=27 // pred_check_branch
        %194 = sbr.rel (%p192) target = $region32
      $region31: #{single_conv_forward.1} parent=27 // pred_region
        %p195 = scmp.lt.s32.totalorder %s17, 1
        %s196 = scalar_select %p195, %s17, 1
        %s197 = smul.addr %s196, 54
        %s198 = smul.addr %s197, 4
        %s199 = scalar_lea.vmem %s0, %s198
      $region32: #{single_conv_forward.1} parent=27 // pred_fallthru
        _
    $region28: #{single_conv_forward.1} parent=5 // pred_fallthru
      _
    %p200 = scmp.le.s32.totalorder 1, %s10
    %p201 = scmp.lt.s32.totalorder %s10, 3
    %p202 = pnand %p200, %p201
    %p203 = pneg %p202
    // Predicated region
    $region33: #{single_conv_forward.1} parent=5 // pred_check
      _
    $region34: #{single_conv_forward.1} parent=5 // pred_check_branch
      %205 = sbr.rel (%p202) target = $region36
    $region35: #{single_conv_forward.1} parent=5 // pred_region
      %s206 = ssub.s32 %s10, 1
      %p207 = scmp.lt.s32.totalorder %s19, 1
      %s208 = scalar_select %p207, %s19, 1
      %s209 = smul.addr %s208, 54
      %s210 = smul.addr %s209, 4
      %s211 = scalar_lea.vmem %s0, %s210
      %p212 = pneg %p48
      %p213 = pneg %p45
      %p214 = scmp.lt.s32.totalorder %s20, 0
      %s215 = scalar_select %p214, %s20, 0
      %s216 = smul.addr %s215, 2
      %s217 = scalar_lea.vmem %s1, %s216
      %p218 = pneg %p74
      %p219 = pneg %p71
      %p220 = scmp.lt.s32.totalorder %s20, 0
      %s221 = scalar_select %p220, %s20, 0
      %s222 = scalar_lea.vmem %s2, %s221
      %p223 = pneg %p100
      %p224 = pneg %p97
      %p225 = scmp.lt.s32.totalorder %s20, 0
      %s226 = scalar_select %p225, %s20, 0
      %s227 = scalar_lea.vmem %s3, %s226
      %p228 = pneg %p126
      %p229 = pneg %p123
      %p230 = pneg %p154
      %p231 = pneg %p151
      %p232 = scmp.lt.s32.totalorder %s19, 1
      %s233 = scalar_select %p232, %s19, 1
      %p234 = scmp.lt.s32.totalorder %s20, 0
      %s235 = scalar_select %p234, %s20, 0
      %s236 = smul.addr %s233, 32
      %s237 = sadd.s32 %s235, %s236
      %s238 = smul.addr %s237, 8
      %s239 = scalar_lea.vmem %s4, %s238
      %p240 = scmp.lt.s32.totalorder %s19, 1
      %s241 = scalar_select %p240, %s19, 1
      %s242 = smul.addr %s241, 54
      %s243 = smul.addr %s242, 4
      %s244 = scalar_lea.vmem %s0, %s243
      %p245 = scmp.lt.s32.totalorder %s20, 0
      %s246 = scalar_select %p245, %s20, 0
      %s247 = smul.addr %s246, 2
      %s248 = scalar_lea.vmem %s1, %s247
      %p249 = scmp.lt.s32.totalorder %s20, 0
      %s250 = scalar_select %p249, %s20, 0
      %s251 = scalar_lea.vmem %s2, %s250
      %p252 = scmp.lt.s32.totalorder %s20, 0
      %s253 = scalar_select %p252, %s20, 0
      %s254 = scalar_lea.vmem %s3, %s253
      %p255 = scmp.lt.s32.totalorder %s19, 1
      %s256 = scalar_select %p255, %s19, 1
      %p257 = scmp.lt.s32.totalorder %s20, 0
      %s258 = scalar_select %p257, %s20, 0
      %s259 = smul.addr %s256, 32
      %s260 = sadd.s32 %s258, %s259
      %s261 = smul.addr %s260, 8
      %s262 = scalar_lea.vmem %s4, %s261
      %v264 = vld [vmem:[%s244] sm:$0xf]
      %v265 = vld [vmem:[%s244 + $0x4] sm:$0xf]
      %v266 = vld [vmem:[%s244 + $0xc] sm:$0xf]
      %v267 = vld [vmem:[%s244 + $0x10] sm:$0xf]
      %v268 = vld [vmem:[%s244 + $0x18] sm:$0xf]
      %v269 = vld [vmem:[%s244 + $0x1c] sm:$0xf]
      %v270 = vld [vmem:[%s244 + $0x24] sm:$0xf]
      %v271 = vld [vmem:[%s244 + $0x28] sm:$0xf]
      %v272 = vld [vmem:[%s244 + $0x30] sm:$0xf]
      %v273 = vld [vmem:[%s244 + $0x34] sm:$0xf]
      %v274 = vld [vmem:[%s244 + $0x3c] sm:$0xf]
      %v275 = vld [vmem:[%s244 + $0x40] sm:$0xf]
      %v276 = vld [vmem:[%s244 + $0x48] sm:$0xf]
      %v277 = vld [vmem:[%s244 + $0x4c] sm:$0xf]
      %v278 = vld [vmem:[%s244 + $0x54] sm:$0xf]
      %v279 = vld [vmem:[%s244 + $0x58] sm:$0xf]
      %v280 = vld [vmem:[%s244 + $0x60] sm:$0xf]
      %v281 = vld [vmem:[%s244 + $0x64] sm:$0xf]
      %v282 = vld [vmem:[%s244 + $0x6c] sm:$0xf]
      %v283 = vld [vmem:[%s244 + $0x70] sm:$0xf]
      %v284 = vld [vmem:[%s244 + $0x78] sm:$0xf]
      %v285 = vld [vmem:[%s244 + $0x7c] sm:$0xf]
      %v286 = vld [vmem:[%s244 + $0x84] sm:$0xf]
      %v287 = vld [vmem:[%s244 + $0x88] sm:$0xf]
      %v288 = vld [vmem:[%s244 + $0x90] sm:$0xf]
      %v289 = vld [vmem:[%s244 + $0x94] sm:$0xf]
      %v290 = vld [vmem:[%s244 + $0x9c] sm:$0xf]
      %v291 = vld [vmem:[%s244 + $0xa0] sm:$0xf]
      %v292 = vld [vmem:[%s244 + $0xa8] sm:$0xf]
      %v293 = vld [vmem:[%s244 + $0xac] sm:$0xf]
      %v294 = vld [vmem:[%s244 + $0xb4] sm:$0xf]
      %v295 = vld [vmem:[%s244 + $0xb8] sm:$0xf]
      %v296 = vld [vmem:[%s248] sm:$0x3]
      %v297 = vld [vmem:[%s244 + $0x8] sm:$0x1]
      %v298 = vld [vmem:[%s244 + $0x14] sm:$0x1]
      %v299 = vld [vmem:[%s244 + $0x20] sm:$0x1]
      %v300 = vld [vmem:[%s244 + $0x2c] sm:$0x1]
      %v301 = vld [vmem:[%s244 + $0x38] sm:$0x1]
      %v302 = vld [vmem:[%s244 + $0x44] sm:$0x1]
      %v303 = vld [vmem:[%s244 + $0x50] sm:$0x1]
      %v304 = vld [vmem:[%s244 + $0x5c] sm:$0x1]
      %v305 = vld [vmem:[%s244 + $0x68] sm:$0x1]
      %v306 = vld [vmem:[%s244 + $0x74] sm:$0x1]
      %v307 = vld [vmem:[%s244 + $0x80] sm:$0x1]
      %v308 = vld [vmem:[%s244 + $0x8c] sm:$0x1]
      %v309 = vld [vmem:[%s244 + $0x98] sm:$0x1]
      %v310 = vld [vmem:[%s244 + $0xa4] sm:$0x1]
      %v311 = vld [vmem:[%s244 + $0xb0] sm:$0x1]
      %v312 = vld [vmem:[%s244 + $0xbc] sm:$0x1]
      %vm313 = vsmask.f32 3328
      %vm314 = vsmask.f32 7440
      %vm315 = vmor %vm313, %vm314
      %v317 = vshrl.u32 %v264, 16
      %v319 = vrot.slane %v317, 4
      %v320 = vshll.u32 %v264, 16
      %v322 = vrot.slane %v320, 5
      %v323 = vor.u32 %v319, %v322
      %v324 = vrot.slane %v323, 4
      %v326 = vshll.u32 %v265, 16
      %v328 = vrot.slane %v326, 5
      %v329 = vsel %vm315, %v324, %v328
      %v330 = vshrl.u32 %v265, 16
      %v332 = vrot.slane %v330, 4
      %v333 = vor.u32 %v332, %v328
      %v334 = vrot.slane %v333, 4
      %v336 = vshll.u32 %v297, 16
      %v338 = vrot.slane %v336, 5
      %v339 = vsel %vm315, %v334, %v338
      %v341 = vshrl.u32 %v266, 16
      %v343 = vrot.slane %v341, 4
      %v344 = vshll.u32 %v266, 16
      %v346 = vrot.slane %v344, 5
      %v347 = vor.u32 %v343, %v346
      %v348 = vrot.slane %v347, 4
      %v350 = vshll.u32 %v267, 16
      %v352 = vrot.slane %v350, 5
      %v353 = vsel %vm315, %v348, %v352
      %v354 = vshrl.u32 %v267, 16
      %v356 = vrot.slane %v354, 4
      %v357 = vor.u32 %v356, %v352
      %v358 = vrot.slane %v357, 4
      %v360 = vshll.u32 %v298, 16
      %v362 = vrot.slane %v360, 5
      %v363 = vsel %vm315, %v358, %v362
      %v365 = vshrl.u32 %v268, 16
      %v367 = vrot.slane %v365, 4
      %v368 = vshll.u32 %v268, 16
      %v370 = vrot.slane %v368, 5
      %v371 = vor.u32 %v367, %v370
      %v372 = vrot.slane %v371, 4
      %v374 = vshll.u32 %v269, 16
      %v376 = vrot.slane %v374, 5
      %v377 = vsel %vm315, %v372, %v376
      %v378 = vshrl.u32 %v269, 16
      %v380 = vrot.slane %v378, 4
      %v381 = vor.u32 %v380, %v376
      %v382 = vrot.slane %v381, 4
      %v384 = vshll.u32 %v299, 16
      %v386 = vrot.slane %v384, 5
      %v387 = vsel %vm315, %v382, %v386
      %v389 = vshrl.u32 %v270, 16
      %v391 = vrot.slane %v389, 4
      %v392 = vshll.u32 %v270, 16
      %v394 = vrot.slane %v392, 5
      %v395 = vor.u32 %v391, %v394
      %v396 = vrot.slane %v395, 4
      %v398 = vshll.u32 %v271, 16
      %v400 = vrot.slane %v398, 5
      %v401 = vsel %vm315, %v396, %v400
      %v402 = vshrl.u32 %v271, 16
      %v404 = vrot.slane %v402, 4
      %v405 = vor.u32 %v404, %v400
      %v406 = vrot.slane %v405, 4
      %v408 = vshll.u32 %v300, 16
      %v410 = vrot.slane %v408, 5
      %v411 = vsel %vm315, %v406, %v410
      %v413 = vshrl.u32 %v272, 16
      %v415 = vrot.slane %v413, 4
      %v416 = vshll.u32 %v272, 16
      %v418 = vrot.slane %v416, 5
      %v419 = vor.u32 %v415, %v418
      %v420 = vrot.slane %v419, 4
      %v422 = vshll.u32 %v273, 16
      %v424 = vrot.slane %v422, 5
      %v425 = vsel %vm315, %v420, %v424
      %v426 = vshrl.u32 %v273, 16
      %v428 = vrot.slane %v426, 4
      %v429 = vor.u32 %v428, %v424
      %v430 = vrot.slane %v429, 4
      %v432 = vshll.u32 %v301, 16
      %v434 = vrot.slane %v432, 5
      %v435 = vsel %vm315, %v430, %v434
      %v437 = vshrl.u32 %v274, 16
      %v439 = vrot.slane %v437, 4
      %v440 = vshll.u32 %v274, 16
      %v442 = vrot.slane %v440, 5
      %v443 = vor.u32 %v439, %v442
      %v444 = vrot.slane %v443, 4
      %v446 = vshll.u32 %v275, 16
      %v448 = vrot.slane %v446, 5
      %v449 = vsel %vm315, %v444, %v448
      %v450 = vshrl.u32 %v275, 16
      %v452 = vrot.slane %v450, 4
      %v453 = vor.u32 %v452, %v448
      %v454 = vrot.slane %v453, 4
      %v456 = vshll.u32 %v302, 16
      %v458 = vrot.slane %v456, 5
      %v459 = vsel %vm315, %v454, %v458
      %v461 = vshrl.u32 %v276, 16
      %v463 = vrot.slane %v461, 4
      %v464 = vshll.u32 %v276, 16
      %v466 = vrot.slane %v464, 5
      %v467 = vor.u32 %v463, %v466
      %v468 = vrot.slane %v467, 4
      %v470 = vshll.u32 %v277, 16
      %v472 = vrot.slane %v470, 5
      %v473 = vsel %vm315, %v468, %v472
      %v474 = vshrl.u32 %v277, 16
      %v476 = vrot.slane %v474, 4
      %v477 = vor.u32 %v476, %v472
      %v478 = vrot.slane %v477, 4
      %v480 = vshll.u32 %v303, 16
      %v482 = vrot.slane %v480, 5
      %v483 = vsel %vm315, %v478, %v482
      %v485 = vshrl.u32 %v278, 16
      %v487 = vrot.slane %v485, 4
      %v488 = vshll.u32 %v278, 16
      %v490 = vrot.slane %v488, 5
      %v491 = vor.u32 %v487, %v490
      %v492 = vrot.slane %v491, 4
      %v494 = vshll.u32 %v279, 16
      %v496 = vrot.slane %v494, 5
      %v497 = vsel %vm315, %v492, %v496
      %v498 = vshrl.u32 %v279, 16
      %v500 = vrot.slane %v498, 4
      %v501 = vor.u32 %v500, %v496
      %v502 = vrot.slane %v501, 4
      %v504 = vshll.u32 %v304, 16
      %v506 = vrot.slane %v504, 5
      %v507 = vsel %vm315, %v502, %v506
      %v509 = vshrl.u32 %v280, 16
      %v511 = vrot.slane %v509, 4
      %v512 = vshll.u32 %v280, 16
      %v514 = vrot.slane %v512, 5
      %v515 = vor.u32 %v511, %v514
      %v516 = vrot.slane %v515, 4
      %v518 = vshll.u32 %v281, 16
      %v520 = vrot.slane %v518, 5
      %v521 = vsel %vm315, %v516, %v520
      %v522 = vshrl.u32 %v281, 16
      %v524 = vrot.slane %v522, 4
      %v525 = vor.u32 %v524, %v520
      %v526 = vrot.slane %v525, 4
      %v528 = vshll.u32 %v305, 16
      %v530 = vrot.slane %v528, 5
      %v531 = vsel %vm315, %v526, %v530
      %v533 = vshrl.u32 %v282, 16
      %v535 = vrot.slane %v533, 4
      %v536 = vshll.u32 %v282, 16
      %v538 = vrot.slane %v536, 5
      %v539 = vor.u32 %v535, %v538
      %v540 = vrot.slane %v539, 4
      %v542 = vshll.u32 %v283, 16
      %v544 = vrot.slane %v542, 5
      %v545 = vsel %vm315, %v540, %v544
      %v546 = vshrl.u32 %v283, 16
      %v548 = vrot.slane %v546, 4
      %v549 = vor.u32 %v548, %v544
      %v550 = vrot.slane %v549, 4
      %v552 = vshll.u32 %v306, 16
      %v554 = vrot.slane %v552, 5
      %v555 = vsel %vm315, %v550, %v554
      %v557 = vshrl.u32 %v284, 16
      %v559 = vrot.slane %v557, 4
      %v560 = vshll.u32 %v284, 16
      %v562 = vrot.slane %v560, 5
      %v563 = vor.u32 %v559, %v562
      %v564 = vrot.slane %v563, 4
      %v566 = vshll.u32 %v285, 16
      %v568 = vrot.slane %v566, 5
      %v569 = vsel %vm315, %v564, %v568
      %v570 = vshrl.u32 %v285, 16
      %v572 = vrot.slane %v570, 4
      %v573 = vor.u32 %v572, %v568
      %v574 = vrot.slane %v573, 4
      %v576 = vshll.u32 %v307, 16
      %v578 = vrot.slane %v576, 5
      %v579 = vsel %vm315, %v574, %v578
      %v581 = vshrl.u32 %v286, 16
      %v583 = vrot.slane %v581, 4
      %v584 = vshll.u32 %v286, 16
      %v586 = vrot.slane %v584, 5
      %v587 = vor.u32 %v583, %v586
      %v588 = vrot.slane %v587, 4
      %v590 = vshll.u32 %v287, 16
      %v592 = vrot.slane %v590, 5
      %v593 = vsel %vm315, %v588, %v592
      %v594 = vshrl.u32 %v287, 16
      %v596 = vrot.slane %v594, 4
      %v597 = vor.u32 %v596, %v592
      %v598 = vrot.slane %v597, 4
      %v600 = vshll.u32 %v308, 16
      %v602 = vrot.slane %v600, 5
      %v603 = vsel %vm315, %v598, %v602
      %v605 = vshrl.u32 %v288, 16
      %v607 = vrot.slane %v605, 4
      %v608 = vshll.u32 %v288, 16
      %v610 = vrot.slane %v608, 5
      %v611 = vor.u32 %v607, %v610
      %v612 = vrot.slane %v611, 4
      %v614 = vshll.u32 %v289, 16
      %v616 = vrot.slane %v614, 5
      %v617 = vsel %vm315, %v612, %v616
      %v618 = vshrl.u32 %v289, 16
      %v620 = vrot.slane %v618, 4
      %v621 = vor.u32 %v620, %v616
      %v622 = vrot.slane %v621, 4
      %v624 = vshll.u32 %v309, 16
      %v626 = vrot.slane %v624, 5
      %v627 = vsel %vm315, %v622, %v626
      %v629 = vshrl.u32 %v290, 16
      %v631 = vrot.slane %v629, 4
      %v632 = vshll.u32 %v290, 16
      %v634 = vrot.slane %v632, 5
      %v635 = vor.u32 %v631, %v634
      %v636 = vrot.slane %v635, 4
      %v638 = vshll.u32 %v291, 16
      %v640 = vrot.slane %v638, 5
      %v641 = vsel %vm315, %v636, %v640
      %v642 = vshrl.u32 %v291, 16
      %v644 = vrot.slane %v642, 4
      %v645 = vor.u32 %v644, %v640
      %v646 = vrot.slane %v645, 4
      %v648 = vshll.u32 %v310, 16
      %v650 = vrot.slane %v648, 5
      %v651 = vsel %vm315, %v646, %v650
      %v653 = vshrl.u32 %v292, 16
      %v655 = vrot.slane %v653, 4
      %v656 = vshll.u32 %v292, 16
      %v658 = vrot.slane %v656, 5
      %v659 = vor.u32 %v655, %v658
      %v660 = vrot.slane %v659, 4
      %v662 = vshll.u32 %v293, 16
      %v664 = vrot.slane %v662, 5
      %v665 = vsel %vm315, %v660, %v664
      %v666 = vshrl.u32 %v293, 16
      %v668 = vrot.slane %v666, 4
      %v669 = vor.u32 %v668, %v664
      %v670 = vrot.slane %v669, 4
      %v672 = vshll.u32 %v311, 16
      %v674 = vrot.slane %v672, 5
      %v675 = vsel %vm315, %v670, %v674
      %v677 = vshrl.u32 %v294, 16
      %v679 = vrot.slane %v677, 4
      %v680 = vshll.u32 %v294, 16
      %v682 = vrot.slane %v680, 5
      %v683 = vor.u32 %v679, %v682
      %v684 = vrot.slane %v683, 4
      %v686 = vshll.u32 %v295, 16
      %v688 = vrot.slane %v686, 5
      %v689 = vsel %vm315, %v684, %v688
      %v690 = vshrl.u32 %v295, 16
      %v692 = vrot.slane %v690, 4
      %v693 = vor.u32 %v692, %v688
      %v694 = vrot.slane %v693, 4
      %v696 = vshll.u32 %v312, 16
      %v698 = vrot.slane %v696, 5
      %v699 = vsel %vm315, %v694, %v698
      %s700 = scalar_lea.vmem %s248, 2
      %v701 = vld [vmem:[%s700] sm:$0x3]
      %v702 = vunpack.c.l.b16 %v329
      %v703 = vunpack.c.l.b16 %v339
      %v704 = vunpack.c.l.b16 %v353
      %v705 = vunpack.c.l.b16 %v363
      %v706 = vunpack.c.l.b16 %v377
      %v707 = vunpack.c.l.b16 %v387
      %v708 = vunpack.c.l.b16 %v401
      %v709 = vunpack.c.l.b16 %v411
      %v710 = vunpack.c.l.b16 %v425
      %v711 = vunpack.c.l.b16 %v435
      %v712 = vunpack.c.l.b16 %v449
      %v713 = vunpack.c.l.b16 %v459
      %v714 = vunpack.c.l.b16 %v473
      %v715 = vunpack.c.l.b16 %v483
      %v716 = vunpack.c.l.b16 %v497
      %v717 = vunpack.c.l.b16 %v507
      %v718 = vunpack.c.l.b16 %v521
      %v719 = vunpack.c.l.b16 %v531
      %v720 = vunpack.c.l.b16 %v545
      %v721 = vunpack.c.l.b16 %v555
      %v722 = vunpack.c.l.b16 %v569
      %v723 = vunpack.c.l.b16 %v579
      %v724 = vunpack.c.l.b16 %v593
      %v725 = vunpack.c.l.b16 %v603
      %v726 = vunpack.c.l.b16 %v617
      %v727 = vunpack.c.l.b16 %v627
      %v728 = vunpack.c.l.b16 %v641
      %v729 = vunpack.c.l.b16 %v651
      %v730 = vunpack.c.l.b16 %v665
      %v731 = vunpack.c.l.b16 %v675
      %v732 = vunpack.c.l.b16 %v689
      %v733 = vunpack.c.l.b16 %v699
      %v734 = vpack.c.b16 %v703, %v702
      %v735 = vpack.c.b16 %v705, %v704
      %v736 = vpack.c.b16 %v707, %v706
      %v737 = vpack.c.b16 %v709, %v708
      %v738 = vpack.c.b16 %v711, %v710
      %v739 = vpack.c.b16 %v713, %v712
      %v740 = vpack.c.b16 %v715, %v714
      %v741 = vpack.c.b16 %v717, %v716
      %v742 = vpack.c.b16 %v719, %v718
      %v743 = vpack.c.b16 %v721, %v720
      %v744 = vpack.c.b16 %v723, %v722
      %v745 = vpack.c.b16 %v725, %v724
      %v746 = vpack.c.b16 %v727, %v726
      %v747 = vpack.c.b16 %v729, %v728
      %v748 = vpack.c.b16 %v731, %v730
      %v749 = vpack.c.b16 %v733, %v732
      %vm750 = vcmask 31744
      %v752 = vsel %vm750, %v734, 0
      %v755 = vsel %vm750, %v735, 0
      %v758 = vsel %vm750, %v736, 0
      %v761 = vsel %vm750, %v737, 0
      %v764 = vsel %vm750, %v738, 0
      %v767 = vsel %vm750, %v739, 0
      %v770 = vsel %vm750, %v740, 0
      %v773 = vsel %vm750, %v741, 0
      %v776 = vsel %vm750, %v742, 0
      %v779 = vsel %vm750, %v743, 0
      %v782 = vsel %vm750, %v744, 0
      %v785 = vsel %vm750, %v745, 0
      %v788 = vsel %vm750, %v746, 0
      %v791 = vsel %vm750, %v747, 0
      %v794 = vsel %vm750, %v748, 0
      %v797 = vsel %vm750, %v749, 0
      %vm799 = vcmask 1041408
      %v801 = vsel %vm799, %v701, 0
      %803 = vmatpush.bf16.msra.mxu0 0
      %804 = vmatpush.bf16.msra.mxu0 0
      %805 = vmatpush.bf16.msra.mxu0 0
      %806 = vmatpush.bf16.msra.mxu0 0
      %807 = vmatpush.bf16.msra.mxu0 0
      %808 = vmatpush.bf16.msra.mxu0 0
      %809 = vmatpush.bf16.msra.mxu0 0
      %810 = vmatpush.bf16.msra.mxu0 %v801
      %811 = vmatmul.bf16.gmra.mxu0 %v752
      %v812 = vpop.f32.mrf.mxu0
      %v813 = vadd.f32 0.0, %v812
      %v814 = vpop.f32.mrf.mxu0
      %v815 = vadd.f32 0.0, %v814
      %816 = vmatmul.bf16.gmra.mxu0 %v755
      %v817 = vpop.f32.mrf.mxu0
      %v818 = vadd.f32 0.0, %v817
      %v819 = vpop.f32.mrf.mxu0
      %v820 = vadd.f32 0.0, %v819
      %821 = vmatmul.bf16.gmra.mxu0 %v758
      %v822 = vpop.f32.mrf.mxu0
      %v823 = vadd.f32 0.0, %v822
      %v824 = vpop.f32.mrf.mxu0
      %v825 = vadd.f32 0.0, %v824
      %826 = vmatmul.bf16.gmra.mxu0 %v761
      %v827 = vpop.f32.mrf.mxu0
      %v828 = vadd.f32 0.0, %v827
      %v829 = vpop.f32.mrf.mxu0
      %v830 = vadd.f32 0.0, %v829
      %831 = vmatmul.bf16.gmra.mxu0 %v764
      %v832 = vpop.f32.mrf.mxu0
      %v833 = vadd.f32 0.0, %v832
      %v834 = vpop.f32.mrf.mxu0
      %v835 = vadd.f32 0.0, %v834
      %836 = vmatmul.bf16.gmra.mxu0 %v767
      %v837 = vpop.f32.mrf.mxu0
      %v838 = vadd.f32 0.0, %v837
      %v839 = vpop.f32.mrf.mxu0
      %v840 = vadd.f32 0.0, %v839
      %841 = vmatmul.bf16.gmra.mxu0 %v770
      %v842 = vpop.f32.mrf.mxu0
      %v843 = vadd.f32 0.0, %v842
      %v844 = vpop.f32.mrf.mxu0
      %v845 = vadd.f32 0.0, %v844
      %846 = vmatmul.bf16.gmra.mxu0 %v773
      %v847 = vpop.f32.mrf.mxu0
      %v848 = vadd.f32 0.0, %v847
      %v849 = vpop.f32.mrf.mxu0
      %v850 = vadd.f32 0.0, %v849
      %851 = vmatmul.bf16.gmra.mxu0 %v776
      %v852 = vpop.f32.mrf.mxu0
      %v853 = vadd.f32 0.0, %v852
      %v854 = vpop.f32.mrf.mxu0
      %v855 = vadd.f32 0.0, %v854
      %856 = vmatmul.bf16.gmra.mxu0 %v779
      %v857 = vpop.f32.mrf.mxu0
      %v858 = vadd.f32 0.0, %v857
      %v859 = vpop.f32.mrf.mxu0
      %v860 = vadd.f32 0.0, %v859
      %861 = vmatmul.bf16.gmra.mxu0 %v782
      %v862 = vpop.f32.mrf.mxu0
      %v863 = vadd.f32 0.0, %v862
      %v864 = vpop.f32.mrf.mxu0
      %v865 = vadd.f32 0.0, %v864
      %866 = vmatmul.bf16.gmra.mxu0 %v785
      %v867 = vpop.f32.mrf.mxu0
      %v868 = vadd.f32 0.0, %v867
      %v869 = vpop.f32.mrf.mxu0
      %v870 = vadd.f32 0.0, %v869
      %871 = vmatmul.bf16.gmra.mxu0 %v788
      %v872 = vpop.f32.mrf.mxu0
      %v873 = vadd.f32 0.0, %v872
      %v874 = vpop.f32.mrf.mxu0
      %v875 = vadd.f32 0.0, %v874
      %876 = vmatmul.bf16.gmra.mxu0 %v791
      %v877 = vpop.f32.mrf.mxu0
      %v878 = vadd.f32 0.0, %v877
      %v879 = vpop.f32.mrf.mxu0
      %v880 = vadd.f32 0.0, %v879
      %881 = vmatmul.bf16.gmra.mxu0 %v794
      %v882 = vpop.f32.mrf.mxu0
      %v883 = vadd.f32 0.0, %v882
      %v884 = vpop.f32.mrf.mxu0
      %v885 = vadd.f32 0.0, %v884
      %886 = vmatmul.bf16.gmra.mxu0 %v797
      %v887 = vpop.f32.mrf.mxu0
      %v888 = vadd.f32 0.0, %v887
      %v889 = vpop.f32.mrf.mxu0
      %v890 = vadd.f32 0.0, %v889
      %891 = vdwg.mxu0
      %v924 = vunpack.c.l.b16 %v264
      %v925 = vunpack.c.l.b16 %v265
      %v926 = vunpack.c.l.b16 %v266
      %v927 = vunpack.c.l.b16 %v267
      %v928 = vunpack.c.l.b16 %v268
      %v929 = vunpack.c.l.b16 %v269
      %v930 = vunpack.c.l.b16 %v270
      %v931 = vunpack.c.l.b16 %v271
      %v932 = vunpack.c.l.b16 %v272
      %v933 = vunpack.c.l.b16 %v273
      %v934 = vunpack.c.l.b16 %v274
      %v935 = vunpack.c.l.b16 %v275
      %v936 = vunpack.c.l.b16 %v276
      %v937 = vunpack.c.l.b16 %v277
      %v938 = vunpack.c.l.b16 %v278
      %v939 = vunpack.c.l.b16 %v279
      %v940 = vunpack.c.l.b16 %v280
      %v941 = vunpack.c.l.b16 %v281
      %v942 = vunpack.c.l.b16 %v282
      %v943 = vunpack.c.l.b16 %v283
      %v944 = vunpack.c.l.b16 %v284
      %v945 = vunpack.c.l.b16 %v285
      %v946 = vunpack.c.l.b16 %v286
      %v947 = vunpack.c.l.b16 %v287
      %v948 = vunpack.c.l.b16 %v288
      %v949 = vunpack.c.l.b16 %v289
      %v950 = vunpack.c.l.b16 %v290
      %v951 = vunpack.c.l.b16 %v291
      %v952 = vunpack.c.l.b16 %v292
      %v953 = vunpack.c.l.b16 %v293
      %v954 = vunpack.c.l.b16 %v294
      %v955 = vunpack.c.l.b16 %v295
      %v956 = vpack.c.b16 %v925, %v924
      %v957 = vpack.c.b16 %v927, %v926
      %v958 = vpack.c.b16 %v929, %v928
      %v959 = vpack.c.b16 %v931, %v930
      %v960 = vpack.c.b16 %v933, %v932
      %v961 = vpack.c.b16 %v935, %v934
      %v962 = vpack.c.b16 %v937, %v936
      %v963 = vpack.c.b16 %v939, %v938
      %v964 = vpack.c.b16 %v941, %v940
      %v965 = vpack.c.b16 %v943, %v942
      %v966 = vpack.c.b16 %v945, %v944
      %v967 = vpack.c.b16 %v947, %v946
      %v968 = vpack.c.b16 %v949, %v948
      %v969 = vpack.c.b16 %v951, %v950
      %v970 = vpack.c.b16 %v953, %v952
      %v971 = vpack.c.b16 %v955, %v954
      %v973 = vsel %vm750, %v956, 0
      %v976 = vsel %vm750, %v957, 0
      %v979 = vsel %vm750, %v958, 0
      %v982 = vsel %vm750, %v959, 0
      %v985 = vsel %vm750, %v960, 0
      %v988 = vsel %vm750, %v961, 0
      %v991 = vsel %vm750, %v962, 0
      %v994 = vsel %vm750, %v963, 0
      %v997 = vsel %vm750, %v964, 0
      %v1000 = vsel %vm750, %v965, 0
      %v1003 = vsel %vm750, %v966, 0
      %v1006 = vsel %vm750, %v967, 0
      %v1009 = vsel %vm750, %v968, 0
      %v1012 = vsel %vm750, %v969, 0
      %v1015 = vsel %vm750, %v970, 0
      %v1018 = vsel %vm750, %v971, 0
      %v1021 = vsel %vm799, %v296, 0
      %1023 = vmatpush.bf16.msra.mxu0 0
      %1024 = vmatpush.bf16.msra.mxu0 0
      %1025 = vmatpush.bf16.msra.mxu0 0
      %1026 = vmatpush.bf16.msra.mxu0 0
      %1027 = vmatpush.bf16.msra.mxu0 0
      %1028 = vmatpush.bf16.msra.mxu0 0
      %1029 = vmatpush.bf16.msra.mxu0 0
      %1030 = vmatpush.bf16.msra.mxu0 %v1021
      %1031 = vmatmul.bf16.gmra.mxu0 %v973
      %v1032 = vpop.f32.mrf.mxu0
      %v1033 = vadd.f32 %v813, %v1032
      %v1034 = vpop.f32.mrf.mxu0
      %v1035 = vadd.f32 %v815, %v1034
      %1036 = vmatmul.bf16.gmra.mxu0 %v976
      %v1037 = vpop.f32.mrf.mxu0
      %v1038 = vadd.f32 %v818, %v1037
      %v1039 = vpop.f32.mrf.mxu0
      %v1040 = vadd.f32 %v820, %v1039
      %1041 = vmatmul.bf16.gmra.mxu0 %v979
      %v1042 = vpop.f32.mrf.mxu0
      %v1043 = vadd.f32 %v823, %v1042
      %v1044 = vpop.f32.mrf.mxu0
      %v1045 = vadd.f32 %v825, %v1044
      %1046 = vmatmul.bf16.gmra.mxu0 %v982
      %v1047 = vpop.f32.mrf.mxu0
      %v1048 = vadd.f32 %v828, %v1047
      %v1049 = vpop.f32.mrf.mxu0
      %v1050 = vadd.f32 %v830, %v1049
      %1051 = vmatmul.bf16.gmra.mxu0 %v985
      %v1052 = vpop.f32.mrf.mxu0
      %v1053 = vadd.f32 %v833, %v1052
      %v1054 = vpop.f32.mrf.mxu0
      %v1055 = vadd.f32 %v835, %v1054
      %1056 = vmatmul.bf16.gmra.mxu0 %v988
      %v1057 = vpop.f32.mrf.mxu0
      %v1058 = vadd.f32 %v838, %v1057
      %v1059 = vpop.f32.mrf.mxu0
      %v1060 = vadd.f32 %v840, %v1059
      %1061 = vmatmul.bf16.gmra.mxu0 %v991
      %v1062 = vpop.f32.mrf.mxu0
      %v1063 = vadd.f32 %v843, %v1062
      %v1064 = vpop.f32.mrf.mxu0
      %v1065 = vadd.f32 %v845, %v1064
      %1066 = vmatmul.bf16.gmra.mxu0 %v994
      %v1067 = vpop.f32.mrf.mxu0
      %v1068 = vadd.f32 %v848, %v1067
      %v1069 = vpop.f32.mrf.mxu0
      %v1070 = vadd.f32 %v850, %v1069
      %1071 = vmatmul.bf16.gmra.mxu0 %v997
      %v1072 = vpop.f32.mrf.mxu0
      %v1073 = vadd.f32 %v853, %v1072
      %v1074 = vpop.f32.mrf.mxu0
      %v1075 = vadd.f32 %v855, %v1074
      %1076 = vmatmul.bf16.gmra.mxu0 %v1000
      %v1077 = vpop.f32.mrf.mxu0
      %v1078 = vadd.f32 %v858, %v1077
      %v1079 = vpop.f32.mrf.mxu0
      %v1080 = vadd.f32 %v860, %v1079
      %1081 = vmatmul.bf16.gmra.mxu0 %v1003
      %v1082 = vpop.f32.mrf.mxu0
      %v1083 = vadd.f32 %v863, %v1082
      %v1084 = vpop.f32.mrf.mxu0
      %v1085 = vadd.f32 %v865, %v1084
      %1086 = vmatmul.bf16.gmra.mxu0 %v1006
      %v1087 = vpop.f32.mrf.mxu0
      %v1088 = vadd.f32 %v868, %v1087
      %v1089 = vpop.f32.mrf.mxu0
      %v1090 = vadd.f32 %v870, %v1089
      %1091 = vmatmul.bf16.gmra.mxu0 %v1009
      %v1092 = vpop.f32.mrf.mxu0
      %v1093 = vadd.f32 %v873, %v1092
      %v1094 = vpop.f32.mrf.mxu0
      %v1095 = vadd.f32 %v875, %v1094
      %1096 = vmatmul.bf16.gmra.mxu0 %v1012
      %v1097 = vpop.f32.mrf.mxu0
      %v1098 = vadd.f32 %v878, %v1097
      %v1099 = vpop.f32.mrf.mxu0
      %v1100 = vadd.f32 %v880, %v1099
      %1101 = vmatmul.bf16.gmra.mxu0 %v1015
      %v1102 = vpop.f32.mrf.mxu0
      %v1103 = vadd.f32 %v883, %v1102
      %v1104 = vpop.f32.mrf.mxu0
      %v1105 = vadd.f32 %v885, %v1104
      %1106 = vmatmul.bf16.gmra.mxu0 %v1018
      %v1107 = vpop.f32.mrf.mxu0
      %v1108 = vadd.f32 %v888, %v1107
      %v1109 = vpop.f32.mrf.mxu0
      %v1110 = vadd.f32 %v890, %v1109
      %1111 = vdwg.mxu0
      %v1112 = vld [vmem:[%s244] sm:$0xe]
      %v1113 = vld [vmem:[%s244 + $0xc] sm:$0xe]
      %v1114 = vld [vmem:[%s244 + $0x18] sm:$0xe]
      %v1115 = vld [vmem:[%s244 + $0x24] sm:$0xe]
      %v1116 = vld [vmem:[%s244 + $0x30] sm:$0xe]
      %v1117 = vld [vmem:[%s244 + $0x3c] sm:$0xe]
      %v1118 = vld [vmem:[%s244 + $0x48] sm:$0xe]
      %v1119 = vld [vmem:[%s244 + $0x54] sm:$0xe]
      %v1120 = vld [vmem:[%s244 + $0x60] sm:$0xe]
      %v1121 = vld [vmem:[%s244 + $0x6c] sm:$0xe]
      %v1122 = vld [vmem:[%s244 + $0x78] sm:$0xe]
      %v1123 = vld [vmem:[%s244 + $0x84] sm:$0xe]
      %v1124 = vld [vmem:[%s244 + $0x90] sm:$0xe]
      %v1125 = vld [vmem:[%s244 + $0x9c] sm:$0xe]
      %v1126 = vld [vmem:[%s244 + $0xa8] sm:$0xe]
      %v1127 = vld [vmem:[%s244 + $0xb4] sm:$0xe]
      %vm1160 = vcmask 1042432
      %vm1161 = vcmask 1046532
      %vm1162 = vmor %vm1160, %vm1161
      %v1163 = vrot.slane %v1112, 5
      %v1164 = vrot.slane %v1163, 4
      %v1165 = vrot.slane %v265, 5
      %v1166 = vsel %vm1162, %v1164, %v1165
      %v1167 = vrot.slane %v1165, 4
      %v1168 = vrot.slane %v297, 5
      %v1169 = vsel %vm1162, %v1167, %v1168
      %v1170 = vrot.slane %v1113, 5
      %v1171 = vrot.slane %v1170, 4
      %v1172 = vrot.slane %v267, 5
      %v1173 = vsel %vm1162, %v1171, %v1172
      %v1174 = vrot.slane %v1172, 4
      %v1175 = vrot.slane %v298, 5
      %v1176 = vsel %vm1162, %v1174, %v1175
      %v1177 = vrot.slane %v1114, 5
      %v1178 = vrot.slane %v1177, 4
      %v1179 = vrot.slane %v269, 5
      %v1180 = vsel %vm1162, %v1178, %v1179
      %v1181 = vrot.slane %v1179, 4
      %v1182 = vrot.slane %v299, 5
      %v1183 = vsel %vm1162, %v1181, %v1182
      %v1184 = vrot.slane %v1115, 5
      %v1185 = vrot.slane %v1184, 4
      %v1186 = vrot.slane %v271, 5
      %v1187 = vsel %vm1162, %v1185, %v1186
      %v1188 = vrot.slane %v1186, 4
      %v1189 = vrot.slane %v300, 5
      %v1190 = vsel %vm1162, %v1188, %v1189
      %v1191 = vrot.slane %v1116, 5
      %v1192 = vrot.slane %v1191, 4
      %v1193 = vrot.slane %v273, 5
      %v1194 = vsel %vm1162, %v1192, %v1193
      %v1195 = vrot.slane %v1193, 4
      %v1196 = vrot.slane %v301, 5
      %v1197 = vsel %vm1162, %v1195, %v1196
      %v1198 = vrot.slane %v1117, 5
      %v1199 = vrot.slane %v1198, 4
      %v1200 = vrot.slane %v275, 5
      %v1201 = vsel %vm1162, %v1199, %v1200
      %v1202 = vrot.slane %v1200, 4
      %v1203 = vrot.slane %v302, 5
      %v1204 = vsel %vm1162, %v1202, %v1203
      %v1205 = vrot.slane %v1118, 5
      %v1206 = vrot.slane %v1205, 4
      %v1207 = vrot.slane %v277, 5
      %v1208 = vsel %vm1162, %v1206, %v1207
      %v1209 = vrot.slane %v1207, 4
      %v1210 = vrot.slane %v303, 5
      %v1211 = vsel %vm1162, %v1209, %v1210
      %v1212 = vrot.slane %v1119, 5
      %v1213 = vrot.slane %v1212, 4
      %v1214 = vrot.slane %v279, 5
      %v1215 = vsel %vm1162, %v1213, %v1214
      %v1216 = vrot.slane %v1214, 4
      %v1217 = vrot.slane %v304, 5
      %v1218 = vsel %vm1162, %v1216, %v1217
      %v1219 = vrot.slane %v1120, 5
      %v1220 = vrot.slane %v1219, 4
      %v1221 = vrot.slane %v281, 5
      %v1222 = vsel %vm1162, %v1220, %v1221
      %v1223 = vrot.slane %v1221, 4
      %v1224 = vrot.slane %v305, 5
      %v1225 = vsel %vm1162, %v1223, %v1224
      %v1226 = vrot.slane %v1121, 5
      %v1227 = vrot.slane %v1226, 4
      %v1228 = vrot.slane %v283, 5
      %v1229 = vsel %vm1162, %v1227, %v1228
      %v1230 = vrot.slane %v1228, 4
      %v1231 = vrot.slane %v306, 5
      %v1232 = vsel %vm1162, %v1230, %v1231
      %v1233 = vrot.slane %v1122, 5
      %v1234 = vrot.slane %v1233, 4
      %v1235 = vrot.slane %v285, 5
      %v1236 = vsel %vm1162, %v1234, %v1235
      %v1237 = vrot.slane %v1235, 4
      %v1238 = vrot.slane %v307, 5
      %v1239 = vsel %vm1162, %v1237, %v1238
      %v1240 = vrot.slane %v1123, 5
      %v1241 = vrot.slane %v1240, 4
      %v1242 = vrot.slane %v287, 5
      %v1243 = vsel %vm1162, %v1241, %v1242
      %v1244 = vrot.slane %v1242, 4
      %v1245 = vrot.slane %v308, 5
      %v1246 = vsel %vm1162, %v1244, %v1245
      %v1247 = vrot.slane %v1124, 5
      %v1248 = vrot.slane %v1247, 4
      %v1249 = vrot.slane %v289, 5
      %v1250 = vsel %vm1162, %v1248, %v1249
      %v1251 = vrot.slane %v1249, 4
      %v1252 = vrot.slane %v309, 5
      %v1253 = vsel %vm1162, %v1251, %v1252
      %v1254 = vrot.slane %v1125, 5
      %v1255 = vrot.slane %v1254, 4
      %v1256 = vrot.slane %v291, 5
      %v1257 = vsel %vm1162, %v1255, %v1256
      %v1258 = vrot.slane %v1256, 4
      %v1259 = vrot.slane %v310, 5
      %v1260 = vsel %vm1162, %v1258, %v1259
      %v1261 = vrot.slane %v1126, 5
      %v1262 = vrot.slane %v1261, 4
      %v1263 = vrot.slane %v293, 5
      %v1264 = vsel %vm1162, %v1262, %v1263
      %v1265 = vrot.slane %v1263, 4
      %v1266 = vrot.slane %v311, 5
      %v1267 = vsel %vm1162, %v1265, %v1266
      %v1268 = vrot.slane %v1127, 5
      %v1269 = vrot.slane %v1268, 4
      %v1270 = vrot.slane %v295, 5
      %v1271 = vsel %vm1162, %v1269, %v1270
      %v1272 = vrot.slane %v1270, 4
      %v1273 = vrot.slane %v312, 5
      %v1274 = vsel %vm1162, %v1272, %v1273
      %s1275 = scalar_lea.vmem %s248, 4
      %v1276 = vld [vmem:[%s1275] sm:$0x3]
      %v1277 = vunpack.c.l.b16 %v1166
      %v1278 = vunpack.c.l.b16 %v1169
      %v1279 = vunpack.c.l.b16 %v1173
      %v1280 = vunpack.c.l.b16 %v1176
      %v1281 = vunpack.c.l.b16 %v1180
      %v1282 = vunpack.c.l.b16 %v1183
      %v1283 = vunpack.c.l.b16 %v1187
      %v1284 = vunpack.c.l.b16 %v1190
      %v1285 = vunpack.c.l.b16 %v1194
      %v1286 = vunpack.c.l.b16 %v1197
      %v1287 = vunpack.c.l.b16 %v1201
      %v1288 = vunpack.c.l.b16 %v1204
      %v1289 = vunpack.c.l.b16 %v1208
      %v1290 = vunpack.c.l.b16 %v1211
      %v1291 = vunpack.c.l.b16 %v1215
      %v1292 = vunpack.c.l.b16 %v1218
      %v1293 = vunpack.c.l.b16 %v1222
      %v1294 = vunpack.c.l.b16 %v1225
      %v1295 = vunpack.c.l.b16 %v1229
      %v1296 = vunpack.c.l.b16 %v1232
      %v1297 = vunpack.c.l.b16 %v1236
      %v1298 = vunpack.c.l.b16 %v1239
      %v1299 = vunpack.c.l.b16 %v1243
      %v1300 = vunpack.c.l.b16 %v1246
      %v1301 = vunpack.c.l.b16 %v1250
      %v1302 = vunpack.c.l.b16 %v1253
      %v1303 = vunpack.c.l.b16 %v1257
      %v1304 = vunpack.c.l.b16 %v1260
      %v1305 = vunpack.c.l.b16 %v1264
      %v1306 = vunpack.c.l.b16 %v1267
      %v1307 = vunpack.c.l.b16 %v1271
      %v1308 = vunpack.c.l.b16 %v1274
      %v1309 = vpack.c.b16 %v1278, %v1277
      %v1310 = vpack.c.b16 %v1280, %v1279
      %v1311 = vpack.c.b16 %v1282, %v1281
      %v1312 = vpack.c.b16 %v1284, %v1283
      %v1313 = vpack.c.b16 %v1286, %v1285
      %v1314 = vpack.c.b16 %v1288, %v1287
      %v1315 = vpack.c.b16 %v1290, %v1289
      %v1316 = vpack.c.b16 %v1292, %v1291
      %v1317 = vpack.c.b16 %v1294, %v1293
      %v1318 = vpack.c.b16 %v1296, %v1295
      %v1319 = vpack.c.b16 %v1298, %v1297
      %v1320 = vpack.c.b16 %v1300, %v1299
      %v1321 = vpack.c.b16 %v1302, %v1301
      %v1322 = vpack.c.b16 %v1304, %v1303
      %v1323 = vpack.c.b16 %v1306, %v1305
      %v1324 = vpack.c.b16 %v1308, %v1307
      %v1326 = vsel %vm750, %v1309, 0
      %v1329 = vsel %vm750, %v1310, 0
      %v1332 = vsel %vm750, %v1311, 0
      %v1335 = vsel %vm750, %v1312, 0
      %v1338 = vsel %vm750, %v1313, 0
      %v1341 = vsel %vm750, %v1314, 0
      %v1344 = vsel %vm750, %v1315, 0
      %v1347 = vsel %vm750, %v1316, 0
      %v1350 = vsel %vm750, %v1317, 0
      %v1353 = vsel %vm750, %v1318, 0
      %v1356 = vsel %vm750, %v1319, 0
      %v1359 = vsel %vm750, %v1320, 0
      %v1362 = vsel %vm750, %v1321, 0
      %v1365 = vsel %vm750, %v1322, 0
      %v1368 = vsel %vm750, %v1323, 0
      %v1371 = vsel %vm750, %v1324, 0
      %v1374 = vsel %vm799, %v1276, 0
      %1376 = vmatpush.bf16.msra.mxu0 0
      %1377 = vmatpush.bf16.msra.mxu0 0
      %1378 = vmatpush.bf16.msra.mxu0 0
      %1379 = vmatpush.bf16.msra.mxu0 0
      %1380 = vmatpush.bf16.msra.mxu0 0
      %1381 = vmatpush.bf16.msra.mxu0 0
      %1382 = vmatpush.bf16.msra.mxu0 0
      %1383 = vmatpush.bf16.msra.mxu0 %v1374
      %1384 = vmatmul.bf16.gmra.mxu0 %v1326
      %v1385 = vpop.f32.mrf.mxu0
      %v1386 = vadd.f32 0.0, %v1385
      %v1387 = vpop.f32.mrf.mxu0
      %v1388 = vadd.f32 0.0, %v1387
      %1389 = vmatmul.bf16.gmra.mxu0 %v1329
      %v1390 = vpop.f32.mrf.mxu0
      %v1391 = vadd.f32 0.0, %v1390
      %v1392 = vpop.f32.mrf.mxu0
      %v1393 = vadd.f32 0.0, %v1392
      %1394 = vmatmul.bf16.gmra.mxu0 %v1332
      %v1395 = vpop.f32.mrf.mxu0
      %v1396 = vadd.f32 0.0, %v1395
      %v1397 = vpop.f32.mrf.mxu0
      %v1398 = vadd.f32 0.0, %v1397
      %1399 = vmatmul.bf16.gmra.mxu0 %v1335
      %v1400 = vpop.f32.mrf.mxu0
      %v1401 = vadd.f32 0.0, %v1400
      %v1402 = vpop.f32.mrf.mxu0
      %v1403 = vadd.f32 0.0, %v1402
      %1404 = vmatmul.bf16.gmra.mxu0 %v1338
      %v1405 = vpop.f32.mrf.mxu0
      %v1406 = vadd.f32 0.0, %v1405
      %v1407 = vpop.f32.mrf.mxu0
      %v1408 = vadd.f32 0.0, %v1407
      %1409 = vmatmul.bf16.gmra.mxu0 %v1341
      %v1410 = vpop.f32.mrf.mxu0
      %v1411 = vadd.f32 0.0, %v1410
      %v1412 = vpop.f32.mrf.mxu0
      %v1413 = vadd.f32 0.0, %v1412
      %1414 = vmatmul.bf16.gmra.mxu0 %v1344
      %v1415 = vpop.f32.mrf.mxu0
      %v1416 = vadd.f32 0.0, %v1415
      %v1417 = vpop.f32.mrf.mxu0
      %v1418 = vadd.f32 0.0, %v1417
      %1419 = vmatmul.bf16.gmra.mxu0 %v1347
      %v1420 = vpop.f32.mrf.mxu0
      %v1421 = vadd.f32 0.0, %v1420
      %v1422 = vpop.f32.mrf.mxu0
      %v1423 = vadd.f32 0.0, %v1422
      %1424 = vmatmul.bf16.gmra.mxu0 %v1350
      %v1425 = vpop.f32.mrf.mxu0
      %v1426 = vadd.f32 0.0, %v1425
      %v1427 = vpop.f32.mrf.mxu0
      %v1428 = vadd.f32 0.0, %v1427
      %1429 = vmatmul.bf16.gmra.mxu0 %v1353
      %v1430 = vpop.f32.mrf.mxu0
      %v1431 = vadd.f32 0.0, %v1430
      %v1432 = vpop.f32.mrf.mxu0
      %v1433 = vadd.f32 0.0, %v1432
      %1434 = vmatmul.bf16.gmra.mxu0 %v1356
      %v1435 = vpop.f32.mrf.mxu0
      %v1436 = vadd.f32 0.0, %v1435
      %v1437 = vpop.f32.mrf.mxu0
      %v1438 = vadd.f32 0.0, %v1437
      %1439 = vmatmul.bf16.gmra.mxu0 %v1359
      %v1440 = vpop.f32.mrf.mxu0
      %v1441 = vadd.f32 0.0, %v1440
      %v1442 = vpop.f32.mrf.mxu0
      %v1443 = vadd.f32 0.0, %v1442
      %1444 = vmatmul.bf16.gmra.mxu0 %v1362
      %v1445 = vpop.f32.mrf.mxu0
      %v1446 = vadd.f32 0.0, %v1445
      %v1447 = vpop.f32.mrf.mxu0
      %v1448 = vadd.f32 0.0, %v1447
      %1449 = vmatmul.bf16.gmra.mxu0 %v1365
      %v1450 = vpop.f32.mrf.mxu0
      %v1451 = vadd.f32 0.0, %v1450
      %v1452 = vpop.f32.mrf.mxu0
      %v1453 = vadd.f32 0.0, %v1452
      %1454 = vmatmul.bf16.gmra.mxu0 %v1368
      %v1455 = vpop.f32.mrf.mxu0
      %v1456 = vadd.f32 0.0, %v1455
      %v1457 = vpop.f32.mrf.mxu0
      %v1458 = vadd.f32 0.0, %v1457
      %1459 = vmatmul.bf16.gmra.mxu0 %v1371
      %v1460 = vpop.f32.mrf.mxu0
      %v1461 = vadd.f32 0.0, %v1460
      %v1462 = vpop.f32.mrf.mxu0
      %v1463 = vadd.f32 0.0, %v1462
      %1464 = vdwg.mxu0
      %v1465 = vadd.f32 %v1033, %v1386
      %v1466 = vadd.f32 %v1035, %v1388
      %v1467 = vadd.f32 %v1038, %v1391
      %v1468 = vadd.f32 %v1040, %v1393
      %v1469 = vadd.f32 %v1043, %v1396
      %v1470 = vadd.f32 %v1045, %v1398
      %v1471 = vadd.f32 %v1048, %v1401
      %v1472 = vadd.f32 %v1050, %v1403
      %v1473 = vadd.f32 %v1053, %v1406
      %v1474 = vadd.f32 %v1055, %v1408
      %v1475 = vadd.f32 %v1058, %v1411
      %v1476 = vadd.f32 %v1060, %v1413
      %v1477 = vadd.f32 %v1063, %v1416
      %v1478 = vadd.f32 %v1065, %v1418
      %v1479 = vadd.f32 %v1068, %v1421
      %v1480 = vadd.f32 %v1070, %v1423
      %v1481 = vadd.f32 %v1073, %v1426
      %v1482 = vadd.f32 %v1075, %v1428
      %v1483 = vadd.f32 %v1078, %v1431
      %v1484 = vadd.f32 %v1080, %v1433
      %v1485 = vadd.f32 %v1083, %v1436
      %v1486 = vadd.f32 %v1085, %v1438
      %v1487 = vadd.f32 %v1088, %v1441
      %v1488 = vadd.f32 %v1090, %v1443
      %v1489 = vadd.f32 %v1093, %v1446
      %v1490 = vadd.f32 %v1095, %v1448
      %v1491 = vadd.f32 %v1098, %v1451
      %v1492 = vadd.f32 %v1100, %v1453
      %v1493 = vadd.f32 %v1103, %v1456
      %v1494 = vadd.f32 %v1105, %v1458
      %v1495 = vadd.f32 %v1108, %v1461
      %v1496 = vadd.f32 %v1110, %v1463
      %s1497 = scalar_lea.vmem %s244, 12
      %v1498 = vld [vmem:[%s1497] sm:$0xf]
      %v1499 = vld [vmem:[%s1497 + $0x4] sm:$0xf]
      %v1500 = vld [vmem:[%s1497 + $0xc] sm:$0xf]
      %v1501 = vld [vmem:[%s1497 + $0x10] sm:$0xf]
      %v1502 = vld [vmem:[%s1497 + $0x18] sm:$0xf]
      %v1503 = vld [vmem:[%s1497 + $0x1c] sm:$0xf]
      %v1504 = vld [vmem:[%s1497 + $0x24] sm:$0xf]
      %v1505 = vld [vmem:[%s1497 + $0x28] sm:$0xf]
      %v1506 = vld [vmem:[%s1497 + $0x30] sm:$0xf]
      %v1507 = vld [vmem:[%s1497 + $0x34] sm:$0xf]
      %v1508 = vld [vmem:[%s1497 + $0x3c] sm:$0xf]
      %v1509 = vld [vmem:[%s1497 + $0x40] sm:$0xf]
      %v1510 = vld [vmem:[%s1497 + $0x48] sm:$0xf]
      %v1511 = vld [vmem:[%s1497 + $0x4c] sm:$0xf]
      %v1512 = vld [vmem:[%s1497 + $0x54] sm:$0xf]
      %v1513 = vld [vmem:[%s1497 + $0x58] sm:$0xf]
      %v1514 = vld [vmem:[%s1497 + $0x60] sm:$0xf]
      %v1515 = vld [vmem:[%s1497 + $0x64] sm:$0xf]
      %v1516 = vld [vmem:[%s1497 + $0x6c] sm:$0xf]
      %v1517 = vld [vmem:[%s1497 + $0x70] sm:$0xf]
      %v1518 = vld [vmem:[%s1497 + $0x78] sm:$0xf]
      %v1519 = vld [vmem:[%s1497 + $0x7c] sm:$0xf]
      %v1520 = vld [vmem:[%s1497 + $0x84] sm:$0xf]
      %v1521 = vld [vmem:[%s1497 + $0x88] sm:$0xf]
      %v1522 = vld [vmem:[%s1497 + $0x90] sm:$0xf]
      %v1523 = vld [vmem:[%s1497 + $0x94] sm:$0xf]
      %v1524 = vld [vmem:[%s1497 + $0x9c] sm:$0xf]
      %v1525 = vld [vmem:[%s1497 + $0xa0] sm:$0xf]
      %v1526 = vld [vmem:[%s1497 + $0xa8] sm:$0xf]
      %v1527 = vld [vmem:[%s1497 + $0xac] sm:$0xf]
      %v1528 = vld [vmem:[%s1497 + $0xb4] sm:$0xf]
      %v1529 = vld [vmem:[%s1497 + $0xb8] sm:$0xf]
      %s1530 = scalar_lea.vmem %s248, 6
      %v1531 = vld [vmem:[%s1530] sm:$0x3]
      %v1564 = vunpack.c.l.b16 %v1498
      %v1565 = vunpack.c.l.b16 %v1499
      %v1566 = vunpack.c.l.b16 %v1500
      %v1567 = vunpack.c.l.b16 %v1501
      %v1568 = vunpack.c.l.b16 %v1502
      %v1569 = vunpack.c.l.b16 %v1503
      %v1570 = vunpack.c.l.b16 %v1504
      %v1571 = vunpack.c.l.b16 %v1505
      %v1572 = vunpack.c.l.b16 %v1506
      %v1573 = vunpack.c.l.b16 %v1507
      %v1574 = vunpack.c.l.b16 %v1508
      %v1575 = vunpack.c.l.b16 %v1509
      %v1576 = vunpack.c.l.b16 %v1510
      %v1577 = vunpack.c.l.b16 %v1511
      %v1578 = vunpack.c.l.b16 %v1512
      %v1579 = vunpack.c.l.b16 %v1513
      %v1580 = vunpack.c.l.b16 %v1514
      %v1581 = vunpack.c.l.b16 %v1515
      %v1582 = vunpack.c.l.b16 %v1516
      %v1583 = vunpack.c.l.b16 %v1517
      %v1584 = vunpack.c.l.b16 %v1518
      %v1585 = vunpack.c.l.b16 %v1519
      %v1586 = vunpack.c.l.b16 %v1520
      %v1587 = vunpack.c.l.b16 %v1521
      %v1588 = vunpack.c.l.b16 %v1522
      %v1589 = vunpack.c.l.b16 %v1523
      %v1590 = vunpack.c.l.b16 %v1524
      %v1591 = vunpack.c.l.b16 %v1525
      %v1592 = vunpack.c.l.b16 %v1526
      %v1593 = vunpack.c.l.b16 %v1527
      %v1594 = vunpack.c.l.b16 %v1528
      %v1595 = vunpack.c.l.b16 %v1529
      %v1596 = vpack.c.b16 %v1565, %v1564
      %v1597 = vpack.c.b16 %v1567, %v1566
      %v1598 = vpack.c.b16 %v1569, %v1568
      %v1599 = vpack.c.b16 %v1571, %v1570
      %v1600 = vpack.c.b16 %v1573, %v1572
      %v1601 = vpack.c.b16 %v1575, %v1574
      %v1602 = vpack.c.b16 %v1577, %v1576
      %v1603 = vpack.c.b16 %v1579, %v1578
      %v1604 = vpack.c.b16 %v1581, %v1580
      %v1605 = vpack.c.b16 %v1583, %v1582
      %v1606 = vpack.c.b16 %v1585, %v1584
      %v1607 = vpack.c.b16 %v1587, %v1586
      %v1608 = vpack.c.b16 %v1589, %v1588
      %v1609 = vpack.c.b16 %v1591, %v1590
      %v1610 = vpack.c.b16 %v1593, %v1592
      %v1611 = vpack.c.b16 %v1595, %v1594
      %v1613 = vsel %vm750, %v1596, 0
      %v1616 = vsel %vm750, %v1597, 0
      %v1619 = vsel %vm750, %v1598, 0
      %v1622 = vsel %vm750, %v1599, 0
      %v1625 = vsel %vm750, %v1600, 0
      %v1628 = vsel %vm750, %v1601, 0
      %v1631 = vsel %vm750, %v1602, 0
      %v1634 = vsel %vm750, %v1603, 0
      %v1637 = vsel %vm750, %v1604, 0
      %v1640 = vsel %vm750, %v1605, 0
      %v1643 = vsel %vm750, %v1606, 0
      %v1646 = vsel %vm750, %v1607, 0
      %v1649 = vsel %vm750, %v1608, 0
      %v1652 = vsel %vm750, %v1609, 0
      %v1655 = vsel %vm750, %v1610, 0
      %v1658 = vsel %vm750, %v1611, 0
      %v1661 = vsel %vm799, %v1531, 0
      %1663 = vmatpush.bf16.msra.mxu0 0
      %1664 = vmatpush.bf16.msra.mxu0 0
      %1665 = vmatpush.bf16.msra.mxu0 0
      %1666 = vmatpush.bf16.msra.mxu0 0
      %1667 = vmatpush.bf16.msra.mxu0 0
      %1668 = vmatpush.bf16.msra.mxu0 0
      %1669 = vmatpush.bf16.msra.mxu0 0
      %1670 = vmatpush.bf16.msra.mxu0 %v1661
      %1671 = vmatmul.bf16.gmra.mxu0 %v1613
      %v1672 = vpop.f32.mrf.mxu0
      %v1673 = vadd.f32 0.0, %v1672
      %v1674 = vpop.f32.mrf.mxu0
      %v1675 = vadd.f32 0.0, %v1674
      %1676 = vmatmul.bf16.gmra.mxu0 %v1616
      %v1677 = vpop.f32.mrf.mxu0
      %v1678 = vadd.f32 0.0, %v1677
      %v1679 = vpop.f32.mrf.mxu0
      %v1680 = vadd.f32 0.0, %v1679
      %1681 = vmatmul.bf16.gmra.mxu0 %v1619
      %v1682 = vpop.f32.mrf.mxu0
      %v1683 = vadd.f32 0.0, %v1682
      %v1684 = vpop.f32.mrf.mxu0
      %v1685 = vadd.f32 0.0, %v1684
      %1686 = vmatmul.bf16.gmra.mxu0 %v1622
      %v1687 = vpop.f32.mrf.mxu0
      %v1688 = vadd.f32 0.0, %v1687
      %v1689 = vpop.f32.mrf.mxu0
      %v1690 = vadd.f32 0.0, %v1689
      %1691 = vmatmul.bf16.gmra.mxu0 %v1625
      %v1692 = vpop.f32.mrf.mxu0
      %v1693 = vadd.f32 0.0, %v1692
      %v1694 = vpop.f32.mrf.mxu0
      %v1695 = vadd.f32 0.0, %v1694
      %1696 = vmatmul.bf16.gmra.mxu0 %v1628
      %v1697 = vpop.f32.mrf.mxu0
      %v1698 = vadd.f32 0.0, %v1697
      %v1699 = vpop.f32.mrf.mxu0
      %v1700 = vadd.f32 0.0, %v1699
      %1701 = vmatmul.bf16.gmra.mxu0 %v1631
      %v1702 = vpop.f32.mrf.mxu0
      %v1703 = vadd.f32 0.0, %v1702
      %v1704 = vpop.f32.mrf.mxu0
      %v1705 = vadd.f32 0.0, %v1704
      %1706 = vmatmul.bf16.gmra.mxu0 %v1634
      %v1707 = vpop.f32.mrf.mxu0
      %v1708 = vadd.f32 0.0, %v1707
      %v1709 = vpop.f32.mrf.mxu0
      %v1710 = vadd.f32 0.0, %v1709
      %1711 = vmatmul.bf16.gmra.mxu0 %v1637
      %v1712 = vpop.f32.mrf.mxu0
      %v1713 = vadd.f32 0.0, %v1712
      %v1714 = vpop.f32.mrf.mxu0
      %v1715 = vadd.f32 0.0, %v1714
      %1716 = vmatmul.bf16.gmra.mxu0 %v1640
      %v1717 = vpop.f32.mrf.mxu0
      %v1718 = vadd.f32 0.0, %v1717
      %v1719 = vpop.f32.mrf.mxu0
      %v1720 = vadd.f32 0.0, %v1719
      %1721 = vmatmul.bf16.gmra.mxu0 %v1643
      %v1722 = vpop.f32.mrf.mxu0
      %v1723 = vadd.f32 0.0, %v1722
      %v1724 = vpop.f32.mrf.mxu0
      %v1725 = vadd.f32 0.0, %v1724
      %1726 = vmatmul.bf16.gmra.mxu0 %v1646
      %v1727 = vpop.f32.mrf.mxu0
      %v1728 = vadd.f32 0.0, %v1727
      %v1729 = vpop.f32.mrf.mxu0
      %v1730 = vadd.f32 0.0, %v1729
      %1731 = vmatmul.bf16.gmra.mxu0 %v1649
      %v1732 = vpop.f32.mrf.mxu0
      %v1733 = vadd.f32 0.0, %v1732
      %v1734 = vpop.f32.mrf.mxu0
      %v1735 = vadd.f32 0.0, %v1734
      %1736 = vmatmul.bf16.gmra.mxu0 %v1652
      %v1737 = vpop.f32.mrf.mxu0
      %v1738 = vadd.f32 0.0, %v1737
      %v1739 = vpop.f32.mrf.mxu0
      %v1740 = vadd.f32 0.0, %v1739
      %1741 = vmatmul.bf16.gmra.mxu0 %v1655
      %v1742 = vpop.f32.mrf.mxu0
      %v1743 = vadd.f32 0.0, %v1742
      %v1744 = vpop.f32.mrf.mxu0
      %v1745 = vadd.f32 0.0, %v1744
      %1746 = vmatmul.bf16.gmra.mxu0 %v1658
      %v1747 = vpop.f32.mrf.mxu0
      %v1748 = vadd.f32 0.0, %v1747
      %v1749 = vpop.f32.mrf.mxu0
      %v1750 = vadd.f32 0.0, %v1749
      %1751 = vdwg.mxu0
      %v1752 = vadd.f32 %v1465, %v1673
      %v1753 = vadd.f32 %v1466, %v1675
      %v1754 = vadd.f32 %v1467, %v1678
      %v1755 = vadd.f32 %v1468, %v1680
      %v1756 = vadd.f32 %v1469, %v1683
      %v1757 = vadd.f32 %v1470, %v1685
      %v1758 = vadd.f32 %v1471, %v1688
      %v1759 = vadd.f32 %v1472, %v1690
      %v1760 = vadd.f32 %v1473, %v1693
      %v1761 = vadd.f32 %v1474, %v1695
      %v1762 = vadd.f32 %v1475, %v1698
      %v1763 = vadd.f32 %v1476, %v1700
      %v1764 = vadd.f32 %v1477, %v1703
      %v1765 = vadd.f32 %v1478, %v1705
      %v1766 = vadd.f32 %v1479, %v1708
      %v1767 = vadd.f32 %v1480, %v1710
      %v1768 = vadd.f32 %v1481, %v1713
      %v1769 = vadd.f32 %v1482, %v1715
      %v1770 = vadd.f32 %v1483, %v1718
      %v1771 = vadd.f32 %v1484, %v1720
      %v1772 = vadd.f32 %v1485, %v1723
      %v1773 = vadd.f32 %v1486, %v1725
      %v1774 = vadd.f32 %v1487, %v1728
      %v1775 = vadd.f32 %v1488, %v1730
      %v1776 = vadd.f32 %v1489, %v1733
      %v1777 = vadd.f32 %v1490, %v1735
      %v1778 = vadd.f32 %v1491, %v1738
      %v1779 = vadd.f32 %v1492, %v1740
      %v1780 = vadd.f32 %v1493, %v1743
      %v1781 = vadd.f32 %v1494, %v1745
      %v1782 = vadd.f32 %v1495, %v1748
      %v1783 = vadd.f32 %v1496, %v1750
      %v1784 = vld [vmem:[%s1497] sm:$0xf]
      %v1785 = vld [vmem:[%s1497 + $0x4] sm:$0xf]
      %v1786 = vld [vmem:[%s1497 + $0x8] sm:$0x1]
      %v1787 = vld [vmem:[%s1497 + $0xc] sm:$0xf]
      %v1788 = vld [vmem:[%s1497 + $0x10] sm:$0xf]
      %v1789 = vld [vmem:[%s1497 + $0x14] sm:$0x1]
      %v1790 = vld [vmem:[%s1497 + $0x18] sm:$0xf]
      %v1791 = vld [vmem:[%s1497 + $0x1c] sm:$0xf]
      %v1792 = vld [vmem:[%s1497 + $0x20] sm:$0x1]
      %v1793 = vld [vmem:[%s1497 + $0x24] sm:$0xf]
      %v1794 = vld [vmem:[%s1497 + $0x28] sm:$0xf]
      %v1795 = vld [vmem:[%s1497 + $0x2c] sm:$0x1]
      %v1796 = vld [vmem:[%s1497 + $0x30] sm:$0xf]
      %v1797 = vld [vmem:[%s1497 + $0x34] sm:$0xf]
      %v1798 = vld [vmem:[%s1497 + $0x38] sm:$0x1]
      %v1799 = vld [vmem:[%s1497 + $0x3c] sm:$0xf]
      %v1800 = vld [vmem:[%s1497 + $0x40] sm:$0xf]
      %v1801 = vld [vmem:[%s1497 + $0x44] sm:$0x1]
      %v1802 = vld [vmem:[%s1497 + $0x48] sm:$0xf]
      %v1803 = vld [vmem:[%s1497 + $0x4c] sm:$0xf]
      %v1804 = vld [vmem:[%s1497 + $0x50] sm:$0x1]
      %v1805 = vld [vmem:[%s1497 + $0x54] sm:$0xf]
      %v1806 = vld [vmem:[%s1497 + $0x58] sm:$0xf]
      %v1807 = vld [vmem:[%s1497 + $0x5c] sm:$0x1]
      %v1808 = vld [vmem:[%s1497 + $0x60] sm:$0xf]
      %v1809 = vld [vmem:[%s1497 + $0x64] sm:$0xf]
      %v1810 = vld [vmem:[%s1497 + $0x68] sm:$0x1]
      %v1811 = vld [vmem:[%s1497 + $0x6c] sm:$0xf]
      %v1812 = vld [vmem:[%s1497 + $0x70] sm:$0xf]
      %v1813 = vld [vmem:[%s1497 + $0x74] sm:$0x1]
      %v1814 = vld [vmem:[%s1497 + $0x78] sm:$0xf]
      %v1815 = vld [vmem:[%s1497 + $0x7c] sm:$0xf]
      %v1816 = vld [vmem:[%s1497 + $0x80] sm:$0x1]
      %v1817 = vld [vmem:[%s1497 + $0x84] sm:$0xf]
      %v1818 = vld [vmem:[%s1497 + $0x88] sm:$0xf]
      %v1819 = vld [vmem:[%s1497 + $0x8c] sm:$0x1]
      %v1820 = vld [vmem:[%s1497 + $0x90] sm:$0xf]
      %v1821 = vld [vmem:[%s1497 + $0x94] sm:$0xf]
      %v1822 = vld [vmem:[%s1497 + $0x98] sm:$0x1]
      %v1823 = vld [vmem:[%s1497 + $0x9c] sm:$0xf]
      %v1824 = vld [vmem:[%s1497 + $0xa0] sm:$0xf]
      %v1825 = vld [vmem:[%s1497 + $0xa4] sm:$0x1]
      %v1826 = vld [vmem:[%s1497 + $0xa8] sm:$0xf]
      %v1827 = vld [vmem:[%s1497 + $0xac] sm:$0xf]
      %v1828 = vld [vmem:[%s1497 + $0xb0] sm:$0x1]
      %v1829 = vld [vmem:[%s1497 + $0xb4] sm:$0xf]
      %v1830 = vld [vmem:[%s1497 + $0xb8] sm:$0xf]
      %v1831 = vld [vmem:[%s1497 + $0xbc] sm:$0x1]
      %v1833 = vshrl.u32 %v1784, 16
      %v1835 = vrot.slane %v1833, 4
      %v1836 = vshll.u32 %v1784, 16
      %v1838 = vrot.slane %v1836, 5
      %v1839 = vor.u32 %v1835, %v1838
      %v1840 = vrot.slane %v1839, 4
      %v1842 = vshll.u32 %v1785, 16
      %v1844 = vrot.slane %v1842, 5
      %v1845 = vsel %vm315, %v1840, %v1844
      %v1846 = vshrl.u32 %v1785, 16
      %v1848 = vrot.slane %v1846, 4
      %v1849 = vor.u32 %v1848, %v1844
      %v1850 = vrot.slane %v1849, 4
      %v1852 = vshll.u32 %v1786, 16
      %v1854 = vrot.slane %v1852, 5
      %v1855 = vsel %vm315, %v1850, %v1854
      %v1857 = vshrl.u32 %v1787, 16
      %v1859 = vrot.slane %v1857, 4
      %v1860 = vshll.u32 %v1787, 16
      %v1862 = vrot.slane %v1860, 5
      %v1863 = vor.u32 %v1859, %v1862
      %v1864 = vrot.slane %v1863, 4
      %v1866 = vshll.u32 %v1788, 16
      %v1868 = vrot.slane %v1866, 5
      %v1869 = vsel %vm315, %v1864, %v1868
      %v1870 = vshrl.u32 %v1788, 16
      %v1872 = vrot.slane %v1870, 4
      %v1873 = vor.u32 %v1872, %v1868
      %v1874 = vrot.slane %v1873, 4
      %v1876 = vshll.u32 %v1789, 16
      %v1878 = vrot.slane %v1876, 5
      %v1879 = vsel %vm315, %v1874, %v1878
      %v1881 = vshrl.u32 %v1790, 16
      %v1883 = vrot.slane %v1881, 4
      %v1884 = vshll.u32 %v1790, 16
      %v1886 = vrot.slane %v1884, 5
      %v1887 = vor.u32 %v1883, %v1886
      %v1888 = vrot.slane %v1887, 4
      %v1890 = vshll.u32 %v1791, 16
      %v1892 = vrot.slane %v1890, 5
      %v1893 = vsel %vm315, %v1888, %v1892
      %v1894 = vshrl.u32 %v1791, 16
      %v1896 = vrot.slane %v1894, 4
      %v1897 = vor.u32 %v1896, %v1892
      %v1898 = vrot.slane %v1897, 4
      %v1900 = vshll.u32 %v1792, 16
      %v1902 = vrot.slane %v1900, 5
      %v1903 = vsel %vm315, %v1898, %v1902
      %v1905 = vshrl.u32 %v1793, 16
      %v1907 = vrot.slane %v1905, 4
      %v1908 = vshll.u32 %v1793, 16
      %v1910 = vrot.slane %v1908, 5
      %v1911 = vor.u32 %v1907, %v1910
      %v1912 = vrot.slane %v1911, 4
      %v1914 = vshll.u32 %v1794, 16
      %v1916 = vrot.slane %v1914, 5
      %v1917 = vsel %vm315, %v1912, %v1916
      %v1918 = vshrl.u32 %v1794, 16
      %v1920 = vrot.slane %v1918, 4
      %v1921 = vor.u32 %v1920, %v1916
      %v1922 = vrot.slane %v1921, 4
      %v1924 = vshll.u32 %v1795, 16
      %v1926 = vrot.slane %v1924, 5
      %v1927 = vsel %vm315, %v1922, %v1926
      %v1929 = vshrl.u32 %v1796, 16
      %v1931 = vrot.slane %v1929, 4
      %v1932 = vshll.u32 %v1796, 16
      %v1934 = vrot.slane %v1932, 5
      %v1935 = vor.u32 %v1931, %v1934
      %v1936 = vrot.slane %v1935, 4
      %v1938 = vshll.u32 %v1797, 16
      %v1940 = vrot.slane %v1938, 5
      %v1941 = vsel %vm315, %v1936, %v1940
      %v1942 = vshrl.u32 %v1797, 16
      %v1944 = vrot.slane %v1942, 4
      %v1945 = vor.u32 %v1944, %v1940
      %v1946 = vrot.slane %v1945, 4
      %v1948 = vshll.u32 %v1798, 16
      %v1950 = vrot.slane %v1948, 5
      %v1951 = vsel %vm315, %v1946, %v1950
      %v1953 = vshrl.u32 %v1799, 16
      %v1955 = vrot.slane %v1953, 4
      %v1956 = vshll.u32 %v1799, 16
      %v1958 = vrot.slane %v1956, 5
      %v1959 = vor.u32 %v1955, %v1958
      %v1960 = vrot.slane %v1959, 4
      %v1962 = vshll.u32 %v1800, 16
      %v1964 = vrot.slane %v1962, 5
      %v1965 = vsel %vm315, %v1960, %v1964
      %v1966 = vshrl.u32 %v1800, 16
      %v1968 = vrot.slane %v1966, 4
      %v1969 = vor.u32 %v1968, %v1964
      %v1970 = vrot.slane %v1969, 4
      %v1972 = vshll.u32 %v1801, 16
      %v1974 = vrot.slane %v1972, 5
      %v1975 = vsel %vm315, %v1970, %v1974
      %v1977 = vshrl.u32 %v1802, 16
      %v1979 = vrot.slane %v1977, 4
      %v1980 = vshll.u32 %v1802, 16
      %v1982 = vrot.slane %v1980, 5
      %v1983 = vor.u32 %v1979, %v1982
      %v1984 = vrot.slane %v1983, 4
      %v1986 = vshll.u32 %v1803, 16
      %v1988 = vrot.slane %v1986, 5
      %v1989 = vsel %vm315, %v1984, %v1988
      %v1990 = vshrl.u32 %v1803, 16
      %v1992 = vrot.slane %v1990, 4
      %v1993 = vor.u32 %v1992, %v1988
      %v1994 = vrot.slane %v1993, 4
      %v1996 = vshll.u32 %v1804, 16
      %v1998 = vrot.slane %v1996, 5
      %v1999 = vsel %vm315, %v1994, %v1998
      %v2001 = vshrl.u32 %v1805, 16
      %v2003 = vrot.slane %v2001, 4
      %v2004 = vshll.u32 %v1805, 16
      %v2006 = vrot.slane %v2004, 5
      %v2007 = vor.u32 %v2003, %v2006
      %v2008 = vrot.slane %v2007, 4
      %v2010 = vshll.u32 %v1806, 16
      %v2012 = vrot.slane %v2010, 5
      %v2013 = vsel %vm315, %v2008, %v2012
      %v2014 = vshrl.u32 %v1806, 16
      %v2016 = vrot.slane %v2014, 4
      %v2017 = vor.u32 %v2016, %v2012
      %v2018 = vrot.slane %v2017, 4
      %v2020 = vshll.u32 %v1807, 16
      %v2022 = vrot.slane %v2020, 5
      %v2023 = vsel %vm315, %v2018, %v2022
      %v2025 = vshrl.u32 %v1808, 16
      %v2027 = vrot.slane %v2025, 4
      %v2028 = vshll.u32 %v1808, 16
      %v2030 = vrot.slane %v2028, 5
      %v2031 = vor.u32 %v2027, %v2030
      %v2032 = vrot.slane %v2031, 4
      %v2034 = vshll.u32 %v1809, 16
      %v2036 = vrot.slane %v2034, 5
      %v2037 = vsel %vm315, %v2032, %v2036
      %v2038 = vshrl.u32 %v1809, 16
      %v2040 = vrot.slane %v2038, 4
      %v2041 = vor.u32 %v2040, %v2036
      %v2042 = vrot.slane %v2041, 4
      %v2044 = vshll.u32 %v1810, 16
      %v2046 = vrot.slane %v2044, 5
      %v2047 = vsel %vm315, %v2042, %v2046
      %v2049 = vshrl.u32 %v1811, 16
      %v2051 = vrot.slane %v2049, 4
      %v2052 = vshll.u32 %v1811, 16
      %v2054 = vrot.slane %v2052, 5
      %v2055 = vor.u32 %v2051, %v2054
      %v2056 = vrot.slane %v2055, 4
      %v2058 = vshll.u32 %v1812, 16
      %v2060 = vrot.slane %v2058, 5
      %v2061 = vsel %vm315, %v2056, %v2060
      %v2062 = vshrl.u32 %v1812, 16
      %v2064 = vrot.slane %v2062, 4
      %v2065 = vor.u32 %v2064, %v2060
      %v2066 = vrot.slane %v2065, 4
      %v2068 = vshll.u32 %v1813, 16
      %v2070 = vrot.slane %v2068, 5
      %v2071 = vsel %vm315, %v2066, %v2070
      %v2073 = vshrl.u32 %v1814, 16
      %v2075 = vrot.slane %v2073, 4
      %v2076 = vshll.u32 %v1814, 16
      %v2078 = vrot.slane %v2076, 5
      %v2079 = vor.u32 %v2075, %v2078
      %v2080 = vrot.slane %v2079, 4
      %v2082 = vshll.u32 %v1815, 16
      %v2084 = vrot.slane %v2082, 5
      %v2085 = vsel %vm315, %v2080, %v2084
      %v2086 = vshrl.u32 %v1815, 16
      %v2088 = vrot.slane %v2086, 4
      %v2089 = vor.u32 %v2088, %v2084
      %v2090 = vrot.slane %v2089, 4
      %v2092 = vshll.u32 %v1816, 16
      %v2094 = vrot.slane %v2092, 5
      %v2095 = vsel %vm315, %v2090, %v2094
      %v2097 = vshrl.u32 %v1817, 16
      %v2099 = vrot.slane %v2097, 4
      %v2100 = vshll.u32 %v1817, 16
      %v2102 = vrot.slane %v2100, 5
      %v2103 = vor.u32 %v2099, %v2102
      %v2104 = vrot.slane %v2103, 4
      %v2106 = vshll.u32 %v1818, 16
      %v2108 = vrot.slane %v2106, 5
      %v2109 = vsel %vm315, %v2104, %v2108
      %v2110 = vshrl.u32 %v1818, 16
      %v2112 = vrot.slane %v2110, 4
      %v2113 = vor.u32 %v2112, %v2108
      %v2114 = vrot.slane %v2113, 4
      %v2116 = vshll.u32 %v1819, 16
      %v2118 = vrot.slane %v2116, 5
      %v2119 = vsel %vm315, %v2114, %v2118
      %v2121 = vshrl.u32 %v1820, 16
      %v2123 = vrot.slane %v2121, 4
      %v2124 = vshll.u32 %v1820, 16
      %v2126 = vrot.slane %v2124, 5
      %v2127 = vor.u32 %v2123, %v2126
      %v2128 = vrot.slane %v2127, 4
      %v2130 = vshll.u32 %v1821, 16
      %v2132 = vrot.slane %v2130, 5
      %v2133 = vsel %vm315, %v2128, %v2132
      %v2134 = vshrl.u32 %v1821, 16
      %v2136 = vrot.slane %v2134, 4
      %v2137 = vor.u32 %v2136, %v2132
      %v2138 = vrot.slane %v2137, 4
      %v2140 = vshll.u32 %v1822, 16
      %v2142 = vrot.slane %v2140, 5
      %v2143 = vsel %vm315, %v2138, %v2142
      %v2145 = vshrl.u32 %v1823, 16
      %v2147 = vrot.slane %v2145, 4
      %v2148 = vshll.u32 %v1823, 16
      %v2150 = vrot.slane %v2148, 5
      %v2151 = vor.u32 %v2147, %v2150
      %v2152 = vrot.slane %v2151, 4
      %v2154 = vshll.u32 %v1824, 16
      %v2156 = vrot.slane %v2154, 5
      %v2157 = vsel %vm315, %v2152, %v2156
      %v2158 = vshrl.u32 %v1824, 16
      %v2160 = vrot.slane %v2158, 4
      %v2161 = vor.u32 %v2160, %v2156
      %v2162 = vrot.slane %v2161, 4
      %v2164 = vshll.u32 %v1825, 16
      %v2166 = vrot.slane %v2164, 5
      %v2167 = vsel %vm315, %v2162, %v2166
      %v2169 = vshrl.u32 %v1826, 16
      %v2171 = vrot.slane %v2169, 4
      %v2172 = vshll.u32 %v1826, 16
      %v2174 = vrot.slane %v2172, 5
      %v2175 = vor.u32 %v2171, %v2174
      %v2176 = vrot.slane %v2175, 4
      %v2178 = vshll.u32 %v1827, 16
      %v2180 = vrot.slane %v2178, 5
      %v2181 = vsel %vm315, %v2176, %v2180
      %v2182 = vshrl.u32 %v1827, 16
      %v2184 = vrot.slane %v2182, 4
      %v2185 = vor.u32 %v2184, %v2180
      %v2186 = vrot.slane %v2185, 4
      %v2188 = vshll.u32 %v1828, 16
      %v2190 = vrot.slane %v2188, 5
      %v2191 = vsel %vm315, %v2186, %v2190
      %v2193 = vshrl.u32 %v1829, 16
      %v2195 = vrot.slane %v2193, 4
      %v2196 = vshll.u32 %v1829, 16
      %v2198 = vrot.slane %v2196, 5
      %v2199 = vor.u32 %v2195, %v2198
      %v2200 = vrot.slane %v2199, 4
      %v2202 = vshll.u32 %v1830, 16
      %v2204 = vrot.slane %v2202, 5
      %v2205 = vsel %vm315, %v2200, %v2204
      %v2206 = vshrl.u32 %v1830, 16
      %v2208 = vrot.slane %v2206, 4
      %v2209 = vor.u32 %v2208, %v2204
      %v2210 = vrot.slane %v2209, 4
      %v2212 = vshll.u32 %v1831, 16
      %v2214 = vrot.slane %v2212, 5
      %v2215 = vsel %vm315, %v2210, %v2214
      %s2216 = scalar_lea.vmem %s248, 8
      %v2217 = vld [vmem:[%s2216] sm:$0x3]
      %v2218 = vunpack.c.l.b16 %v1845
      %v2219 = vunpack.c.l.b16 %v1855
      %v2220 = vunpack.c.l.b16 %v1869
      %v2221 = vunpack.c.l.b16 %v1879
      %v2222 = vunpack.c.l.b16 %v1893
      %v2223 = vunpack.c.l.b16 %v1903
      %v2224 = vunpack.c.l.b16 %v1917
      %v2225 = vunpack.c.l.b16 %v1927
      %v2226 = vunpack.c.l.b16 %v1941
      %v2227 = vunpack.c.l.b16 %v1951
      %v2228 = vunpack.c.l.b16 %v1965
      %v2229 = vunpack.c.l.b16 %v1975
      %v2230 = vunpack.c.l.b16 %v1989
      %v2231 = vunpack.c.l.b16 %v1999
      %v2232 = vunpack.c.l.b16 %v2013
      %v2233 = vunpack.c.l.b16 %v2023
      %v2234 = vunpack.c.l.b16 %v2037
      %v2235 = vunpack.c.l.b16 %v2047
      %v2236 = vunpack.c.l.b16 %v2061
      %v2237 = vunpack.c.l.b16 %v2071
      %v2238 = vunpack.c.l.b16 %v2085
      %v2239 = vunpack.c.l.b16 %v2095
      %v2240 = vunpack.c.l.b16 %v2109
      %v2241 = vunpack.c.l.b16 %v2119
      %v2242 = vunpack.c.l.b16 %v2133
      %v2243 = vunpack.c.l.b16 %v2143
      %v2244 = vunpack.c.l.b16 %v2157
      %v2245 = vunpack.c.l.b16 %v2167
      %v2246 = vunpack.c.l.b16 %v2181
      %v2247 = vunpack.c.l.b16 %v2191
      %v2248 = vunpack.c.l.b16 %v2205
      %v2249 = vunpack.c.l.b16 %v2215
      %v2250 = vpack.c.b16 %v2219, %v2218
      %v2251 = vpack.c.b16 %v2221, %v2220
      %v2252 = vpack.c.b16 %v2223, %v2222
      %v2253 = vpack.c.b16 %v2225, %v2224
      %v2254 = vpack.c.b16 %v2227, %v2226
      %v2255 = vpack.c.b16 %v2229, %v2228
      %v2256 = vpack.c.b16 %v2231, %v2230
      %v2257 = vpack.c.b16 %v2233, %v2232
      %v2258 = vpack.c.b16 %v2235, %v2234
      %v2259 = vpack.c.b16 %v2237, %v2236
      %v2260 = vpack.c.b16 %v2239, %v2238
      %v2261 = vpack.c.b16 %v2241, %v2240
      %v2262 = vpack.c.b16 %v2243, %v2242
      %v2263 = vpack.c.b16 %v2245, %v2244
      %v2264 = vpack.c.b16 %v2247, %v2246
      %v2265 = vpack.c.b16 %v2249, %v2248
      %v2267 = vsel %vm750, %v2250, 0
      %v2270 = vsel %vm750, %v2251, 0
      %v2273 = vsel %vm750, %v2252, 0
      %v2276 = vsel %vm750, %v2253, 0
      %v2279 = vsel %vm750, %v2254, 0
      %v2282 = vsel %vm750, %v2255, 0
      %v2285 = vsel %vm750, %v2256, 0
      %v2288 = vsel %vm750, %v2257, 0
      %v2291 = vsel %vm750, %v2258, 0
      %v2294 = vsel %vm750, %v2259, 0
      %v2297 = vsel %vm750, %v2260, 0
      %v2300 = vsel %vm750, %v2261, 0
      %v2303 = vsel %vm750, %v2262, 0
      %v2306 = vsel %vm750, %v2263, 0
      %v2309 = vsel %vm750, %v2264, 0
      %v2312 = vsel %vm750, %v2265, 0
      %v2315 = vsel %vm799, %v2217, 0
      %2317 = vmatpush.bf16.msra.mxu0 0
      %2318 = vmatpush.bf16.msra.mxu0 0
      %2319 = vmatpush.bf16.msra.mxu0 0
      %2320 = vmatpush.bf16.msra.mxu0 0
      %2321 = vmatpush.bf16.msra.mxu0 0
      %2322 = vmatpush.bf16.msra.mxu0 0
      %2323 = vmatpush.bf16.msra.mxu0 0
      %2324 = vmatpush.bf16.msra.mxu0 %v2315
      %2325 = vmatmul.bf16.gmra.mxu0 %v2267
      %v2326 = vpop.f32.mrf.mxu0
      %v2327 = vadd.f32 0.0, %v2326
      %v2328 = vpop.f32.mrf.mxu0
      %v2329 = vadd.f32 0.0, %v2328
      %2330 = vmatmul.bf16.gmra.mxu0 %v2270
      %v2331 = vpop.f32.mrf.mxu0
      %v2332 = vadd.f32 0.0, %v2331
      %v2333 = vpop.f32.mrf.mxu0
      %v2334 = vadd.f32 0.0, %v2333
      %2335 = vmatmul.bf16.gmra.mxu0 %v2273
      %v2336 = vpop.f32.mrf.mxu0
      %v2337 = vadd.f32 0.0, %v2336
      %v2338 = vpop.f32.mrf.mxu0
      %v2339 = vadd.f32 0.0, %v2338
      %2340 = vmatmul.bf16.gmra.mxu0 %v2276
      %v2341 = vpop.f32.mrf.mxu0
      %v2342 = vadd.f32 0.0, %v2341
      %v2343 = vpop.f32.mrf.mxu0
      %v2344 = vadd.f32 0.0, %v2343
      %2345 = vmatmul.bf16.gmra.mxu0 %v2279
      %v2346 = vpop.f32.mrf.mxu0
      %v2347 = vadd.f32 0.0, %v2346
      %v2348 = vpop.f32.mrf.mxu0
      %v2349 = vadd.f32 0.0, %v2348
      %2350 = vmatmul.bf16.gmra.mxu0 %v2282
      %v2351 = vpop.f32.mrf.mxu0
      %v2352 = vadd.f32 0.0, %v2351
      %v2353 = vpop.f32.mrf.mxu0
      %v2354 = vadd.f32 0.0, %v2353
      %2355 = vmatmul.bf16.gmra.mxu0 %v2285
      %v2356 = vpop.f32.mrf.mxu0
      %v2357 = vadd.f32 0.0, %v2356
      %v2358 = vpop.f32.mrf.mxu0
      %v2359 = vadd.f32 0.0, %v2358
      %2360 = vmatmul.bf16.gmra.mxu0 %v2288
      %v2361 = vpop.f32.mrf.mxu0
      %v2362 = vadd.f32 0.0, %v2361
      %v2363 = vpop.f32.mrf.mxu0
      %v2364 = vadd.f32 0.0, %v2363
      %2365 = vmatmul.bf16.gmra.mxu0 %v2291
      %v2366 = vpop.f32.mrf.mxu0
      %v2367 = vadd.f32 0.0, %v2366
      %v2368 = vpop.f32.mrf.mxu0
      %v2369 = vadd.f32 0.0, %v2368
      %2370 = vmatmul.bf16.gmra.mxu0 %v2294
      %v2371 = vpop.f32.mrf.mxu0
      %v2372 = vadd.f32 0.0, %v2371
      %v2373 = vpop.f32.mrf.mxu0
      %v2374 = vadd.f32 0.0, %v2373
      %2375 = vmatmul.bf16.gmra.mxu0 %v2297
      %v2376 = vpop.f32.mrf.mxu0
      %v2377 = vadd.f32 0.0, %v2376
      %v2378 = vpop.f32.mrf.mxu0
      %v2379 = vadd.f32 0.0, %v2378
      %2380 = vmatmul.bf16.gmra.mxu0 %v2300
      %v2381 = vpop.f32.mrf.mxu0
      %v2382 = vadd.f32 0.0, %v2381
      %v2383 = vpop.f32.mrf.mxu0
      %v2384 = vadd.f32 0.0, %v2383
      %2385 = vmatmul.bf16.gmra.mxu0 %v2303
      %v2386 = vpop.f32.mrf.mxu0
      %v2387 = vadd.f32 0.0, %v2386
      %v2388 = vpop.f32.mrf.mxu0
      %v2389 = vadd.f32 0.0, %v2388
      %2390 = vmatmul.bf16.gmra.mxu0 %v2306
      %v2391 = vpop.f32.mrf.mxu0
      %v2392 = vadd.f32 0.0, %v2391
      %v2393 = vpop.f32.mrf.mxu0
      %v2394 = vadd.f32 0.0, %v2393
      %2395 = vmatmul.bf16.gmra.mxu0 %v2309
      %v2396 = vpop.f32.mrf.mxu0
      %v2397 = vadd.f32 0.0, %v2396
      %v2398 = vpop.f32.mrf.mxu0
      %v2399 = vadd.f32 0.0, %v2398
      %2400 = vmatmul.bf16.gmra.mxu0 %v2312
      %v2401 = vpop.f32.mrf.mxu0
      %v2402 = vadd.f32 0.0, %v2401
      %v2403 = vpop.f32.mrf.mxu0
      %v2404 = vadd.f32 0.0, %v2403
      %2405 = vdwg.mxu0
      %v2406 = vadd.f32 %v1752, %v2327
      %v2407 = vadd.f32 %v1753, %v2329
      %v2408 = vadd.f32 %v1754, %v2332
      %v2409 = vadd.f32 %v1755, %v2334
      %v2410 = vadd.f32 %v1756, %v2337
      %v2411 = vadd.f32 %v1757, %v2339
      %v2412 = vadd.f32 %v1758, %v2342
      %v2413 = vadd.f32 %v1759, %v2344
      %v2414 = vadd.f32 %v1760, %v2347
      %v2415 = vadd.f32 %v1761, %v2349
      %v2416 = vadd.f32 %v1762, %v2352
      %v2417 = vadd.f32 %v1763, %v2354
      %v2418 = vadd.f32 %v1764, %v2357
      %v2419 = vadd.f32 %v1765, %v2359
      %v2420 = vadd.f32 %v1766, %v2362
      %v2421 = vadd.f32 %v1767, %v2364
      %v2422 = vadd.f32 %v1768, %v2367
      %v2423 = vadd.f32 %v1769, %v2369
      %v2424 = vadd.f32 %v1770, %v2372
      %v2425 = vadd.f32 %v1771, %v2374
      %v2426 = vadd.f32 %v1772, %v2377
      %v2427 = vadd.f32 %v1773, %v2379
      %v2428 = vadd.f32 %v1774, %v2382
      %v2429 = vadd.f32 %v1775, %v2384
      %v2430 = vadd.f32 %v1776, %v2387
      %v2431 = vadd.f32 %v1777, %v2389
      %v2432 = vadd.f32 %v1778, %v2392
      %v2433 = vadd.f32 %v1779, %v2394
      %v2434 = vadd.f32 %v1780, %v2397
      %v2435 = vadd.f32 %v1781, %v2399
      %v2436 = vadd.f32 %v1782, %v2402
      %v2437 = vadd.f32 %v1783, %v2404
      %v2438 = vld [vmem:[%s1497] sm:$0xe]
      %v2439 = vld [vmem:[%s1497 + $0xc] sm:$0xe]
      %v2440 = vld [vmem:[%s1497 + $0x18] sm:$0xe]
      %v2441 = vld [vmem:[%s1497 + $0x24] sm:$0xe]
      %v2442 = vld [vmem:[%s1497 + $0x30] sm:$0xe]
      %v2443 = vld [vmem:[%s1497 + $0x3c] sm:$0xe]
      %v2444 = vld [vmem:[%s1497 + $0x48] sm:$0xe]
      %v2445 = vld [vmem:[%s1497 + $0x54] sm:$0xe]
      %v2446 = vld [vmem:[%s1497 + $0x60] sm:$0xe]
      %v2447 = vld [vmem:[%s1497 + $0x6c] sm:$0xe]
      %v2448 = vld [vmem:[%s1497 + $0x78] sm:$0xe]
      %v2449 = vld [vmem:[%s1497 + $0x84] sm:$0xe]
      %v2450 = vld [vmem:[%s1497 + $0x90] sm:$0xe]
      %v2451 = vld [vmem:[%s1497 + $0x9c] sm:$0xe]
      %v2452 = vld [vmem:[%s1497 + $0xa8] sm:$0xe]
      %v2453 = vld [vmem:[%s1497 + $0xb4] sm:$0xe]
      %v2502 = vrot.slane %v2438, 5
      %v2503 = vrot.slane %v2502, 4
      %v2504 = vrot.slane %v1785, 5
      %v2505 = vsel %vm1162, %v2503, %v2504
      %v2506 = vrot.slane %v2504, 4
      %v2507 = vrot.slane %v1786, 5
      %v2508 = vsel %vm1162, %v2506, %v2507
      %v2509 = vrot.slane %v2439, 5
      %v2510 = vrot.slane %v2509, 4
      %v2511 = vrot.slane %v1788, 5
      %v2512 = vsel %vm1162, %v2510, %v2511
      %v2513 = vrot.slane %v2511, 4
      %v2514 = vrot.slane %v1789, 5
      %v2515 = vsel %vm1162, %v2513, %v2514
      %v2516 = vrot.slane %v2440, 5
      %v2517 = vrot.slane %v2516, 4
      %v2518 = vrot.slane %v1791, 5
      %v2519 = vsel %vm1162, %v2517, %v2518
      %v2520 = vrot.slane %v2518, 4
      %v2521 = vrot.slane %v1792, 5
      %v2522 = vsel %vm1162, %v2520, %v2521
      %v2523 = vrot.slane %v2441, 5
      %v2524 = vrot.slane %v2523, 4
      %v2525 = vrot.slane %v1794, 5
      %v2526 = vsel %vm1162, %v2524, %v2525
      %v2527 = vrot.slane %v2525, 4
      %v2528 = vrot.slane %v1795, 5
      %v2529 = vsel %vm1162, %v2527, %v2528
      %v2530 = vrot.slane %v2442, 5
      %v2531 = vrot.slane %v2530, 4
      %v2532 = vrot.slane %v1797, 5
      %v2533 = vsel %vm1162, %v2531, %v2532
      %v2534 = vrot.slane %v2532, 4
      %v2535 = vrot.slane %v1798, 5
      %v2536 = vsel %vm1162, %v2534, %v2535
      %v2537 = vrot.slane %v2443, 5
      %v2538 = vrot.slane %v2537, 4
      %v2539 = vrot.slane %v1800, 5
      %v2540 = vsel %vm1162, %v2538, %v2539
      %v2541 = vrot.slane %v2539, 4
      %v2542 = vrot.slane %v1801, 5
      %v2543 = vsel %vm1162, %v2541, %v2542
      %v2544 = vrot.slane %v2444, 5
      %v2545 = vrot.slane %v2544, 4
      %v2546 = vrot.slane %v1803, 5
      %v2547 = vsel %vm1162, %v2545, %v2546
      %v2548 = vrot.slane %v2546, 4
      %v2549 = vrot.slane %v1804, 5
      %v2550 = vsel %vm1162, %v2548, %v2549
      %v2551 = vrot.slane %v2445, 5
      %v2552 = vrot.slane %v2551, 4
      %v2553 = vrot.slane %v1806, 5
      %v2554 = vsel %vm1162, %v2552, %v2553
      %v2555 = vrot.slane %v2553, 4
      %v2556 = vrot.slane %v1807, 5
      %v2557 = vsel %vm1162, %v2555, %v2556
      %v2558 = vrot.slane %v2446, 5
      %v2559 = vrot.slane %v2558, 4
      %v2560 = vrot.slane %v1809, 5
      %v2561 = vsel %vm1162, %v2559, %v2560
      %v2562 = vrot.slane %v2560, 4
      %v2563 = vrot.slane %v1810, 5
      %v2564 = vsel %vm1162, %v2562, %v2563
      %v2565 = vrot.slane %v2447, 5
      %v2566 = vrot.slane %v2565, 4
      %v2567 = vrot.slane %v1812, 5
      %v2568 = vsel %vm1162, %v2566, %v2567
      %v2569 = vrot.slane %v2567, 4
      %v2570 = vrot.slane %v1813, 5
      %v2571 = vsel %vm1162, %v2569, %v2570
      %v2572 = vrot.slane %v2448, 5
      %v2573 = vrot.slane %v2572, 4
      %v2574 = vrot.slane %v1815, 5
      %v2575 = vsel %vm1162, %v2573, %v2574
      %v2576 = vrot.slane %v2574, 4
      %v2577 = vrot.slane %v1816, 5
      %v2578 = vsel %vm1162, %v2576, %v2577
      %v2579 = vrot.slane %v2449, 5
      %v2580 = vrot.slane %v2579, 4
      %v2581 = vrot.slane %v1818, 5
      %v2582 = vsel %vm1162, %v2580, %v2581
      %v2583 = vrot.slane %v2581, 4
      %v2584 = vrot.slane %v1819, 5
      %v2585 = vsel %vm1162, %v2583, %v2584
      %v2586 = vrot.slane %v2450, 5
      %v2587 = vrot.slane %v2586, 4
      %v2588 = vrot.slane %v1821, 5
      %v2589 = vsel %vm1162, %v2587, %v2588
      %v2590 = vrot.slane %v2588, 4
      %v2591 = vrot.slane %v1822, 5
      %v2592 = vsel %vm1162, %v2590, %v2591
      %v2593 = vrot.slane %v2451, 5
      %v2594 = vrot.slane %v2593, 4
      %v2595 = vrot.slane %v1824, 5
      %v2596 = vsel %vm1162, %v2594, %v2595
      %v2597 = vrot.slane %v2595, 4
      %v2598 = vrot.slane %v1825, 5
      %v2599 = vsel %vm1162, %v2597, %v2598
      %v2600 = vrot.slane %v2452, 5
      %v2601 = vrot.slane %v2600, 4
      %v2602 = vrot.slane %v1827, 5
      %v2603 = vsel %vm1162, %v2601, %v2602
      %v2604 = vrot.slane %v2602, 4
      %v2605 = vrot.slane %v1828, 5
      %v2606 = vsel %vm1162, %v2604, %v2605
      %v2607 = vrot.slane %v2453, 5
      %v2608 = vrot.slane %v2607, 4
      %v2609 = vrot.slane %v1830, 5
      %v2610 = vsel %vm1162, %v2608, %v2609
      %v2611 = vrot.slane %v2609, 4
      %v2612 = vrot.slane %v1831, 5
      %v2613 = vsel %vm1162, %v2611, %v2612
      %s2614 = scalar_lea.vmem %s248, 10
      %v2615 = vld [vmem:[%s2614] sm:$0x3]
      %v2616 = vunpack.c.l.b16 %v2505
      %v2617 = vunpack.c.l.b16 %v2508
      %v2618 = vunpack.c.l.b16 %v2512
      %v2619 = vunpack.c.l.b16 %v2515
      %v2620 = vunpack.c.l.b16 %v2519
      %v2621 = vunpack.c.l.b16 %v2522
      %v2622 = vunpack.c.l.b16 %v2526
      %v2623 = vunpack.c.l.b16 %v2529
      %v2624 = vunpack.c.l.b16 %v2533
      %v2625 = vunpack.c.l.b16 %v2536
      %v2626 = vunpack.c.l.b16 %v2540
      %v2627 = vunpack.c.l.b16 %v2543
      %v2628 = vunpack.c.l.b16 %v2547
      %v2629 = vunpack.c.l.b16 %v2550
      %v2630 = vunpack.c.l.b16 %v2554
      %v2631 = vunpack.c.l.b16 %v2557
      %v2632 = vunpack.c.l.b16 %v2561
      %v2633 = vunpack.c.l.b16 %v2564
      %v2634 = vunpack.c.l.b16 %v2568
      %v2635 = vunpack.c.l.b16 %v2571
      %v2636 = vunpack.c.l.b16 %v2575
      %v2637 = vunpack.c.l.b16 %v2578
      %v2638 = vunpack.c.l.b16 %v2582
      %v2639 = vunpack.c.l.b16 %v2585
      %v2640 = vunpack.c.l.b16 %v2589
      %v2641 = vunpack.c.l.b16 %v2592
      %v2642 = vunpack.c.l.b16 %v2596
      %v2643 = vunpack.c.l.b16 %v2599
      %v2644 = vunpack.c.l.b16 %v2603
      %v2645 = vunpack.c.l.b16 %v2606
      %v2646 = vunpack.c.l.b16 %v2610
      %v2647 = vunpack.c.l.b16 %v2613
      %v2648 = vpack.c.b16 %v2617, %v2616
      %v2649 = vpack.c.b16 %v2619, %v2618
      %v2650 = vpack.c.b16 %v2621, %v2620
      %v2651 = vpack.c.b16 %v2623, %v2622
      %v2652 = vpack.c.b16 %v2625, %v2624
      %v2653 = vpack.c.b16 %v2627, %v2626
      %v2654 = vpack.c.b16 %v2629, %v2628
      %v2655 = vpack.c.b16 %v2631, %v2630
      %v2656 = vpack.c.b16 %v2633, %v2632
      %v2657 = vpack.c.b16 %v2635, %v2634
      %v2658 = vpack.c.b16 %v2637, %v2636
      %v2659 = vpack.c.b16 %v2639, %v2638
      %v2660 = vpack.c.b16 %v2641, %v2640
      %v2661 = vpack.c.b16 %v2643, %v2642
      %v2662 = vpack.c.b16 %v2645, %v2644
      %v2663 = vpack.c.b16 %v2647, %v2646
      %v2665 = vsel %vm750, %v2648, 0
      %v2668 = vsel %vm750, %v2649, 0
      %v2671 = vsel %vm750, %v2650, 0
      %v2674 = vsel %vm750, %v2651, 0
      %v2677 = vsel %vm750, %v2652, 0
      %v2680 = vsel %vm750, %v2653, 0
      %v2683 = vsel %vm750, %v2654, 0
      %v2686 = vsel %vm750, %v2655, 0
      %v2689 = vsel %vm750, %v2656, 0
      %v2692 = vsel %vm750, %v2657, 0
      %v2695 = vsel %vm750, %v2658, 0
      %v2698 = vsel %vm750, %v2659, 0
      %v2701 = vsel %vm750, %v2660, 0
      %v2704 = vsel %vm750, %v2661, 0
      %v2707 = vsel %vm750, %v2662, 0
      %v2710 = vsel %vm750, %v2663, 0
      %v2713 = vsel %vm799, %v2615, 0
      %2715 = vmatpush.bf16.msra.mxu0 0
      %2716 = vmatpush.bf16.msra.mxu0 0
      %2717 = vmatpush.bf16.msra.mxu0 0
      %2718 = vmatpush.bf16.msra.mxu0 0
      %2719 = vmatpush.bf16.msra.mxu0 0
      %2720 = vmatpush.bf16.msra.mxu0 0
      %2721 = vmatpush.bf16.msra.mxu0 0
      %2722 = vmatpush.bf16.msra.mxu0 %v2713
      %2723 = vmatmul.bf16.gmra.mxu0 %v2665
      %v2724 = vpop.f32.mrf.mxu0
      %v2725 = vadd.f32 0.0, %v2724
      %v2726 = vpop.f32.mrf.mxu0
      %v2727 = vadd.f32 0.0, %v2726
      %2728 = vmatmul.bf16.gmra.mxu0 %v2668
      %v2729 = vpop.f32.mrf.mxu0
      %v2730 = vadd.f32 0.0, %v2729
      %v2731 = vpop.f32.mrf.mxu0
      %v2732 = vadd.f32 0.0, %v2731
      %2733 = vmatmul.bf16.gmra.mxu0 %v2671
      %v2734 = vpop.f32.mrf.mxu0
      %v2735 = vadd.f32 0.0, %v2734
      %v2736 = vpop.f32.mrf.mxu0
      %v2737 = vadd.f32 0.0, %v2736
      %2738 = vmatmul.bf16.gmra.mxu0 %v2674
      %v2739 = vpop.f32.mrf.mxu0
      %v2740 = vadd.f32 0.0, %v2739
      %v2741 = vpop.f32.mrf.mxu0
      %v2742 = vadd.f32 0.0, %v2741
      %2743 = vmatmul.bf16.gmra.mxu0 %v2677
      %v2744 = vpop.f32.mrf.mxu0
      %v2745 = vadd.f32 0.0, %v2744
      %v2746 = vpop.f32.mrf.mxu0
      %v2747 = vadd.f32 0.0, %v2746
      %2748 = vmatmul.bf16.gmra.mxu0 %v2680
      %v2749 = vpop.f32.mrf.mxu0
      %v2750 = vadd.f32 0.0, %v2749
      %v2751 = vpop.f32.mrf.mxu0
      %v2752 = vadd.f32 0.0, %v2751
      %2753 = vmatmul.bf16.gmra.mxu0 %v2683
      %v2754 = vpop.f32.mrf.mxu0
      %v2755 = vadd.f32 0.0, %v2754
      %v2756 = vpop.f32.mrf.mxu0
      %v2757 = vadd.f32 0.0, %v2756
      %2758 = vmatmul.bf16.gmra.mxu0 %v2686
      %v2759 = vpop.f32.mrf.mxu0
      %v2760 = vadd.f32 0.0, %v2759
      %v2761 = vpop.f32.mrf.mxu0
      %v2762 = vadd.f32 0.0, %v2761
      %2763 = vmatmul.bf16.gmra.mxu0 %v2689
      %v2764 = vpop.f32.mrf.mxu0
      %v2765 = vadd.f32 0.0, %v2764
      %v2766 = vpop.f32.mrf.mxu0
      %v2767 = vadd.f32 0.0, %v2766
      %2768 = vmatmul.bf16.gmra.mxu0 %v2692
      %v2769 = vpop.f32.mrf.mxu0
      %v2770 = vadd.f32 0.0, %v2769
      %v2771 = vpop.f32.mrf.mxu0
      %v2772 = vadd.f32 0.0, %v2771
      %2773 = vmatmul.bf16.gmra.mxu0 %v2695
      %v2774 = vpop.f32.mrf.mxu0
      %v2775 = vadd.f32 0.0, %v2774
      %v2776 = vpop.f32.mrf.mxu0
      %v2777 = vadd.f32 0.0, %v2776
      %2778 = vmatmul.bf16.gmra.mxu0 %v2698
      %v2779 = vpop.f32.mrf.mxu0
      %v2780 = vadd.f32 0.0, %v2779
      %v2781 = vpop.f32.mrf.mxu0
      %v2782 = vadd.f32 0.0, %v2781
      %2783 = vmatmul.bf16.gmra.mxu0 %v2701
      %v2784 = vpop.f32.mrf.mxu0
      %v2785 = vadd.f32 0.0, %v2784
      %v2786 = vpop.f32.mrf.mxu0
      %v2787 = vadd.f32 0.0, %v2786
      %2788 = vmatmul.bf16.gmra.mxu0 %v2704
      %v2789 = vpop.f32.mrf.mxu0
      %v2790 = vadd.f32 0.0, %v2789
      %v2791 = vpop.f32.mrf.mxu0
      %v2792 = vadd.f32 0.0, %v2791
      %2793 = vmatmul.bf16.gmra.mxu0 %v2707
      %v2794 = vpop.f32.mrf.mxu0
      %v2795 = vadd.f32 0.0, %v2794
      %v2796 = vpop.f32.mrf.mxu0
      %v2797 = vadd.f32 0.0, %v2796
      %2798 = vmatmul.bf16.gmra.mxu0 %v2710
      %v2799 = vpop.f32.mrf.mxu0
      %v2800 = vadd.f32 0.0, %v2799
      %v2801 = vpop.f32.mrf.mxu0
      %v2802 = vadd.f32 0.0, %v2801
      %2803 = vdwg.mxu0
      %v2804 = vadd.f32 %v2406, %v2725
      %v2805 = vadd.f32 %v2407, %v2727
      %v2806 = vadd.f32 %v2408, %v2730
      %v2807 = vadd.f32 %v2409, %v2732
      %v2808 = vadd.f32 %v2410, %v2735
      %v2809 = vadd.f32 %v2411, %v2737
      %v2810 = vadd.f32 %v2412, %v2740
      %v2811 = vadd.f32 %v2413, %v2742
      %v2812 = vadd.f32 %v2414, %v2745
      %v2813 = vadd.f32 %v2415, %v2747
      %v2814 = vadd.f32 %v2416, %v2750
      %v2815 = vadd.f32 %v2417, %v2752
      %v2816 = vadd.f32 %v2418, %v2755
      %v2817 = vadd.f32 %v2419, %v2757
      %v2818 = vadd.f32 %v2420, %v2760
      %v2819 = vadd.f32 %v2421, %v2762
      %v2820 = vadd.f32 %v2422, %v2765
      %v2821 = vadd.f32 %v2423, %v2767
      %v2822 = vadd.f32 %v2424, %v2770
      %v2823 = vadd.f32 %v2425, %v2772
      %v2824 = vadd.f32 %v2426, %v2775
      %v2825 = vadd.f32 %v2427, %v2777
      %v2826 = vadd.f32 %v2428, %v2780
      %v2827 = vadd.f32 %v2429, %v2782
      %v2828 = vadd.f32 %v2430, %v2785
      %v2829 = vadd.f32 %v2431, %v2787
      %v2830 = vadd.f32 %v2432, %v2790
      %v2831 = vadd.f32 %v2433, %v2792
      %v2832 = vadd.f32 %v2434, %v2795
      %v2833 = vadd.f32 %v2435, %v2797
      %v2834 = vadd.f32 %v2436, %v2800
      %v2835 = vadd.f32 %v2437, %v2802
      %s2836 = scalar_lea.vmem %s244, 24
      %v2837 = vld [vmem:[%s2836] sm:$0xf]
      %v2838 = vld [vmem:[%s2836 + $0x4] sm:$0xf]
      %v2839 = vld [vmem:[%s2836 + $0xc] sm:$0xf]
      %v2840 = vld [vmem:[%s2836 + $0x10] sm:$0xf]
      %v2841 = vld [vmem:[%s2836 + $0x18] sm:$0xf]
      %v2842 = vld [vmem:[%s2836 + $0x1c] sm:$0xf]
      %v2843 = vld [vmem:[%s2836 + $0x24] sm:$0xf]
      %v2844 = vld [vmem:[%s2836 + $0x28] sm:$0xf]
      %v2845 = vld [vmem:[%s2836 + $0x30] sm:$0xf]
      %v2846 = vld [vmem:[%s2836 + $0x34] sm:$0xf]
      %v2847 = vld [vmem:[%s2836 + $0x3c] sm:$0xf]
      %v2848 = vld [vmem:[%s2836 + $0x40] sm:$0xf]
      %v2849 = vld [vmem:[%s2836 + $0x48] sm:$0xf]
      %v2850 = vld [vmem:[%s2836 + $0x4c] sm:$0xf]
      %v2851 = vld [vmem:[%s2836 + $0x54] sm:$0xf]
      %v2852 = vld [vmem:[%s2836 + $0x58] sm:$0xf]
      %v2853 = vld [vmem:[%s2836 + $0x60] sm:$0xf]
      %v2854 = vld [vmem:[%s2836 + $0x64] sm:$0xf]
      %v2855 = vld [vmem:[%s2836 + $0x6c] sm:$0xf]
      %v2856 = vld [vmem:[%s2836 + $0x70] sm:$0xf]
      %v2857 = vld [vmem:[%s2836 + $0x78] sm:$0xf]
      %v2858 = vld [vmem:[%s2836 + $0x7c] sm:$0xf]
      %v2859 = vld [vmem:[%s2836 + $0x84] sm:$0xf]
      %v2860 = vld [vmem:[%s2836 + $0x88] sm:$0xf]
      %v2861 = vld [vmem:[%s2836 + $0x90] sm:$0xf]
      %v2862 = vld [vmem:[%s2836 + $0x94] sm:$0xf]
      %v2863 = vld [vmem:[%s2836 + $0x9c] sm:$0xf]
      %v2864 = vld [vmem:[%s2836 + $0xa0] sm:$0xf]
      %v2865 = vld [vmem:[%s2836 + $0xa8] sm:$0xf]
      %v2866 = vld [vmem:[%s2836 + $0xac] sm:$0xf]
      %v2867 = vld [vmem:[%s2836 + $0xb4] sm:$0xf]
      %v2868 = vld [vmem:[%s2836 + $0xb8] sm:$0xf]
      %s2869 = scalar_lea.vmem %s248, 12
      %v2870 = vld [vmem:[%s2869] sm:$0x3]
      %v2903 = vunpack.c.l.b16 %v2837
      %v2904 = vunpack.c.l.b16 %v2838
      %v2905 = vunpack.c.l.b16 %v2839
      %v2906 = vunpack.c.l.b16 %v2840
      %v2907 = vunpack.c.l.b16 %v2841
      %v2908 = vunpack.c.l.b16 %v2842
      %v2909 = vunpack.c.l.b16 %v2843
      %v2910 = vunpack.c.l.b16 %v2844
      %v2911 = vunpack.c.l.b16 %v2845
      %v2912 = vunpack.c.l.b16 %v2846
      %v2913 = vunpack.c.l.b16 %v2847
      %v2914 = vunpack.c.l.b16 %v2848
      %v2915 = vunpack.c.l.b16 %v2849
      %v2916 = vunpack.c.l.b16 %v2850
      %v2917 = vunpack.c.l.b16 %v2851
      %v2918 = vunpack.c.l.b16 %v2852
      %v2919 = vunpack.c.l.b16 %v2853
      %v2920 = vunpack.c.l.b16 %v2854
      %v2921 = vunpack.c.l.b16 %v2855
      %v2922 = vunpack.c.l.b16 %v2856
      %v2923 = vunpack.c.l.b16 %v2857
      %v2924 = vunpack.c.l.b16 %v2858
      %v2925 = vunpack.c.l.b16 %v2859
      %v2926 = vunpack.c.l.b16 %v2860
      %v2927 = vunpack.c.l.b16 %v2861
      %v2928 = vunpack.c.l.b16 %v2862
      %v2929 = vunpack.c.l.b16 %v2863
      %v2930 = vunpack.c.l.b16 %v2864
      %v2931 = vunpack.c.l.b16 %v2865
      %v2932 = vunpack.c.l.b16 %v2866
      %v2933 = vunpack.c.l.b16 %v2867
      %v2934 = vunpack.c.l.b16 %v2868
      %v2935 = vpack.c.b16 %v2904, %v2903
      %v2936 = vpack.c.b16 %v2906, %v2905
      %v2937 = vpack.c.b16 %v2908, %v2907
      %v2938 = vpack.c.b16 %v2910, %v2909
      %v2939 = vpack.c.b16 %v2912, %v2911
      %v2940 = vpack.c.b16 %v2914, %v2913
      %v2941 = vpack.c.b16 %v2916, %v2915
      %v2942 = vpack.c.b16 %v2918, %v2917
      %v2943 = vpack.c.b16 %v2920, %v2919
      %v2944 = vpack.c.b16 %v2922, %v2921
      %v2945 = vpack.c.b16 %v2924, %v2923
      %v2946 = vpack.c.b16 %v2926, %v2925
      %v2947 = vpack.c.b16 %v2928, %v2927
      %v2948 = vpack.c.b16 %v2930, %v2929
      %v2949 = vpack.c.b16 %v2932, %v2931
      %v2950 = vpack.c.b16 %v2934, %v2933
      %v2952 = vsel %vm750, %v2935, 0
      %v2955 = vsel %vm750, %v2936, 0
      %v2958 = vsel %vm750, %v2937, 0
      %v2961 = vsel %vm750, %v2938, 0
      %v2964 = vsel %vm750, %v2939, 0
      %v2967 = vsel %vm750, %v2940, 0
      %v2970 = vsel %vm750, %v2941, 0
      %v2973 = vsel %vm750, %v2942, 0
      %v2976 = vsel %vm750, %v2943, 0
      %v2979 = vsel %vm750, %v2944, 0
      %v2982 = vsel %vm750, %v2945, 0
      %v2985 = vsel %vm750, %v2946, 0
      %v2988 = vsel %vm750, %v2947, 0
      %v2991 = vsel %vm750, %v2948, 0
      %v2994 = vsel %vm750, %v2949, 0
      %v2997 = vsel %vm750, %v2950, 0
      %v3000 = vsel %vm799, %v2870, 0
      %3002 = vmatpush.bf16.msra.mxu0 0
      %3003 = vmatpush.bf16.msra.mxu0 0
      %3004 = vmatpush.bf16.msra.mxu0 0
      %3005 = vmatpush.bf16.msra.mxu0 0
      %3006 = vmatpush.bf16.msra.mxu0 0
      %3007 = vmatpush.bf16.msra.mxu0 0
      %3008 = vmatpush.bf16.msra.mxu0 0
      %3009 = vmatpush.bf16.msra.mxu0 %v3000
      %3010 = vmatmul.bf16.gmra.mxu0 %v2952
      %v3011 = vpop.f32.mrf.mxu0
      %v3012 = vadd.f32 0.0, %v3011
      %v3013 = vpop.f32.mrf.mxu0
      %v3014 = vadd.f32 0.0, %v3013
      %3015 = vmatmul.bf16.gmra.mxu0 %v2955
      %v3016 = vpop.f32.mrf.mxu0
      %v3017 = vadd.f32 0.0, %v3016
      %v3018 = vpop.f32.mrf.mxu0
      %v3019 = vadd.f32 0.0, %v3018
      %3020 = vmatmul.bf16.gmra.mxu0 %v2958
      %v3021 = vpop.f32.mrf.mxu0
      %v3022 = vadd.f32 0.0, %v3021
      %v3023 = vpop.f32.mrf.mxu0
      %v3024 = vadd.f32 0.0, %v3023
      %3025 = vmatmul.bf16.gmra.mxu0 %v2961
      %v3026 = vpop.f32.mrf.mxu0
      %v3027 = vadd.f32 0.0, %v3026
      %v3028 = vpop.f32.mrf.mxu0
      %v3029 = vadd.f32 0.0, %v3028
      %3030 = vmatmul.bf16.gmra.mxu0 %v2964
      %v3031 = vpop.f32.mrf.mxu0
      %v3032 = vadd.f32 0.0, %v3031
      %v3033 = vpop.f32.mrf.mxu0
      %v3034 = vadd.f32 0.0, %v3033
      %3035 = vmatmul.bf16.gmra.mxu0 %v2967
      %v3036 = vpop.f32.mrf.mxu0
      %v3037 = vadd.f32 0.0, %v3036
      %v3038 = vpop.f32.mrf.mxu0
      %v3039 = vadd.f32 0.0, %v3038
      %3040 = vmatmul.bf16.gmra.mxu0 %v2970
      %v3041 = vpop.f32.mrf.mxu0
      %v3042 = vadd.f32 0.0, %v3041
      %v3043 = vpop.f32.mrf.mxu0
      %v3044 = vadd.f32 0.0, %v3043
      %3045 = vmatmul.bf16.gmra.mxu0 %v2973
      %v3046 = vpop.f32.mrf.mxu0
      %v3047 = vadd.f32 0.0, %v3046
      %v3048 = vpop.f32.mrf.mxu0
      %v3049 = vadd.f32 0.0, %v3048
      %3050 = vmatmul.bf16.gmra.mxu0 %v2976
      %v3051 = vpop.f32.mrf.mxu0
      %v3052 = vadd.f32 0.0, %v3051
      %v3053 = vpop.f32.mrf.mxu0
      %v3054 = vadd.f32 0.0, %v3053
      %3055 = vmatmul.bf16.gmra.mxu0 %v2979
      %v3056 = vpop.f32.mrf.mxu0
      %v3057 = vadd.f32 0.0, %v3056
      %v3058 = vpop.f32.mrf.mxu0
      %v3059 = vadd.f32 0.0, %v3058
      %3060 = vmatmul.bf16.gmra.mxu0 %v2982
      %v3061 = vpop.f32.mrf.mxu0
      %v3062 = vadd.f32 0.0, %v3061
      %v3063 = vpop.f32.mrf.mxu0
      %v3064 = vadd.f32 0.0, %v3063
      %3065 = vmatmul.bf16.gmra.mxu0 %v2985
      %v3066 = vpop.f32.mrf.mxu0
      %v3067 = vadd.f32 0.0, %v3066
      %v3068 = vpop.f32.mrf.mxu0
      %v3069 = vadd.f32 0.0, %v3068
      %3070 = vmatmul.bf16.gmra.mxu0 %v2988
      %v3071 = vpop.f32.mrf.mxu0
      %v3072 = vadd.f32 0.0, %v3071
      %v3073 = vpop.f32.mrf.mxu0
      %v3074 = vadd.f32 0.0, %v3073
      %3075 = vmatmul.bf16.gmra.mxu0 %v2991
      %v3076 = vpop.f32.mrf.mxu0
      %v3077 = vadd.f32 0.0, %v3076
      %v3078 = vpop.f32.mrf.mxu0
      %v3079 = vadd.f32 0.0, %v3078
      %3080 = vmatmul.bf16.gmra.mxu0 %v2994
      %v3081 = vpop.f32.mrf.mxu0
      %v3082 = vadd.f32 0.0, %v3081
      %v3083 = vpop.f32.mrf.mxu0
      %v3084 = vadd.f32 0.0, %v3083
      %3085 = vmatmul.bf16.gmra.mxu0 %v2997
      %v3086 = vpop.f32.mrf.mxu0
      %v3087 = vadd.f32 0.0, %v3086
      %v3088 = vpop.f32.mrf.mxu0
      %v3089 = vadd.f32 0.0, %v3088
      %3090 = vdwg.mxu0
      %v3091 = vadd.f32 %v2804, %v3012
      %v3092 = vadd.f32 %v2805, %v3014
      %v3093 = vadd.f32 %v2806, %v3017
      %v3094 = vadd.f32 %v2807, %v3019
      %v3095 = vadd.f32 %v2808, %v3022
      %v3096 = vadd.f32 %v2809, %v3024
      %v3097 = vadd.f32 %v2810, %v3027
      %v3098 = vadd.f32 %v2811, %v3029
      %v3099 = vadd.f32 %v2812, %v3032
      %v3100 = vadd.f32 %v2813, %v3034
      %v3101 = vadd.f32 %v2814, %v3037
      %v3102 = vadd.f32 %v2815, %v3039
      %v3103 = vadd.f32 %v2816, %v3042
      %v3104 = vadd.f32 %v2817, %v3044
      %v3105 = vadd.f32 %v2818, %v3047
      %v3106 = vadd.f32 %v2819, %v3049
      %v3107 = vadd.f32 %v2820, %v3052
      %v3108 = vadd.f32 %v2821, %v3054
      %v3109 = vadd.f32 %v2822, %v3057
      %v3110 = vadd.f32 %v2823, %v3059
      %v3111 = vadd.f32 %v2824, %v3062
      %v3112 = vadd.f32 %v2825, %v3064
      %v3113 = vadd.f32 %v2826, %v3067
      %v3114 = vadd.f32 %v2827, %v3069
      %v3115 = vadd.f32 %v2828, %v3072
      %v3116 = vadd.f32 %v2829, %v3074
      %v3117 = vadd.f32 %v2830, %v3077
      %v3118 = vadd.f32 %v2831, %v3079
      %v3119 = vadd.f32 %v2832, %v3082
      %v3120 = vadd.f32 %v2833, %v3084
      %v3121 = vadd.f32 %v2834, %v3087
      %v3122 = vadd.f32 %v2835, %v3089
      %v3123 = vld [vmem:[%s2836] sm:$0xf]
      %v3124 = vld [vmem:[%s2836 + $0x4] sm:$0xf]
      %v3125 = vld [vmem:[%s2836 + $0x8] sm:$0x1]
      %v3126 = vld [vmem:[%s2836 + $0xc] sm:$0xf]
      %v3127 = vld [vmem:[%s2836 + $0x10] sm:$0xf]
      %v3128 = vld [vmem:[%s2836 + $0x14] sm:$0x1]
      %v3129 = vld [vmem:[%s2836 + $0x18] sm:$0xf]
      %v3130 = vld [vmem:[%s2836 + $0x1c] sm:$0xf]
      %v3131 = vld [vmem:[%s2836 + $0x20] sm:$0x1]
      %v3132 = vld [vmem:[%s2836 + $0x24] sm:$0xf]
      %v3133 = vld [vmem:[%s2836 + $0x28] sm:$0xf]
      %v3134 = vld [vmem:[%s2836 + $0x2c] sm:$0x1]
      %v3135 = vld [vmem:[%s2836 + $0x30] sm:$0xf]
      %v3136 = vld [vmem:[%s2836 + $0x34] sm:$0xf]
      %v3137 = vld [vmem:[%s2836 + $0x38] sm:$0x1]
      %v3138 = vld [vmem:[%s2836 + $0x3c] sm:$0xf]
      %v3139 = vld [vmem:[%s2836 + $0x40] sm:$0xf]
      %v3140 = vld [vmem:[%s2836 + $0x44] sm:$0x1]
      %v3141 = vld [vmem:[%s2836 + $0x48] sm:$0xf]
      %v3142 = vld [vmem:[%s2836 + $0x4c] sm:$0xf]
      %v3143 = vld [vmem:[%s2836 + $0x50] sm:$0x1]
      %v3144 = vld [vmem:[%s2836 + $0x54] sm:$0xf]
      %v3145 = vld [vmem:[%s2836 + $0x58] sm:$0xf]
      %v3146 = vld [vmem:[%s2836 + $0x5c] sm:$0x1]
      %v3147 = vld [vmem:[%s2836 + $0x60] sm:$0xf]
      %v3148 = vld [vmem:[%s2836 + $0x64] sm:$0xf]
      %v3149 = vld [vmem:[%s2836 + $0x68] sm:$0x1]
      %v3150 = vld [vmem:[%s2836 + $0x6c] sm:$0xf]
      %v3151 = vld [vmem:[%s2836 + $0x70] sm:$0xf]
      %v3152 = vld [vmem:[%s2836 + $0x74] sm:$0x1]
      %v3153 = vld [vmem:[%s2836 + $0x78] sm:$0xf]
      %v3154 = vld [vmem:[%s2836 + $0x7c] sm:$0xf]
      %v3155 = vld [vmem:[%s2836 + $0x80] sm:$0x1]
      %v3156 = vld [vmem:[%s2836 + $0x84] sm:$0xf]
      %v3157 = vld [vmem:[%s2836 + $0x88] sm:$0xf]
      %v3158 = vld [vmem:[%s2836 + $0x8c] sm:$0x1]
      %v3159 = vld [vmem:[%s2836 + $0x90] sm:$0xf]
      %v3160 = vld [vmem:[%s2836 + $0x94] sm:$0xf]
      %v3161 = vld [vmem:[%s2836 + $0x98] sm:$0x1]
      %v3162 = vld [vmem:[%s2836 + $0x9c] sm:$0xf]
      %v3163 = vld [vmem:[%s2836 + $0xa0] sm:$0xf]
      %v3164 = vld [vmem:[%s2836 + $0xa4] sm:$0x1]
      %v3165 = vld [vmem:[%s2836 + $0xa8] sm:$0xf]
      %v3166 = vld [vmem:[%s2836 + $0xac] sm:$0xf]
      %v3167 = vld [vmem:[%s2836 + $0xb0] sm:$0x1]
      %v3168 = vld [vmem:[%s2836 + $0xb4] sm:$0xf]
      %v3169 = vld [vmem:[%s2836 + $0xb8] sm:$0xf]
      %v3170 = vld [vmem:[%s2836 + $0xbc] sm:$0x1]
      %v3172 = vshrl.u32 %v3123, 16
      %v3174 = vrot.slane %v3172, 4
      %v3175 = vshll.u32 %v3123, 16
      %v3177 = vrot.slane %v3175, 5
      %v3178 = vor.u32 %v3174, %v3177
      %v3179 = vrot.slane %v3178, 4
      %v3181 = vshll.u32 %v3124, 16
      %v3183 = vrot.slane %v3181, 5
      %v3184 = vsel %vm315, %v3179, %v3183
      %v3185 = vshrl.u32 %v3124, 16
      %v3187 = vrot.slane %v3185, 4
      %v3188 = vor.u32 %v3187, %v3183
      %v3189 = vrot.slane %v3188, 4
      %v3191 = vshll.u32 %v3125, 16
      %v3193 = vrot.slane %v3191, 5
      %v3194 = vsel %vm315, %v3189, %v3193
      %v3196 = vshrl.u32 %v3126, 16
      %v3198 = vrot.slane %v3196, 4
      %v3199 = vshll.u32 %v3126, 16
      %v3201 = vrot.slane %v3199, 5
      %v3202 = vor.u32 %v3198, %v3201
      %v3203 = vrot.slane %v3202, 4
      %v3205 = vshll.u32 %v3127, 16
      %v3207 = vrot.slane %v3205, 5
      %v3208 = vsel %vm315, %v3203, %v3207
      %v3209 = vshrl.u32 %v3127, 16
      %v3211 = vrot.slane %v3209, 4
      %v3212 = vor.u32 %v3211, %v3207
      %v3213 = vrot.slane %v3212, 4
      %v3215 = vshll.u32 %v3128, 16
      %v3217 = vrot.slane %v3215, 5
      %v3218 = vsel %vm315, %v3213, %v3217
      %v3220 = vshrl.u32 %v3129, 16
      %v3222 = vrot.slane %v3220, 4
      %v3223 = vshll.u32 %v3129, 16
      %v3225 = vrot.slane %v3223, 5
      %v3226 = vor.u32 %v3222, %v3225
      %v3227 = vrot.slane %v3226, 4
      %v3229 = vshll.u32 %v3130, 16
      %v3231 = vrot.slane %v3229, 5
      %v3232 = vsel %vm315, %v3227, %v3231
      %v3233 = vshrl.u32 %v3130, 16
      %v3235 = vrot.slane %v3233, 4
      %v3236 = vor.u32 %v3235, %v3231
      %v3237 = vrot.slane %v3236, 4
      %v3239 = vshll.u32 %v3131, 16
      %v3241 = vrot.slane %v3239, 5
      %v3242 = vsel %vm315, %v3237, %v3241
      %v3244 = vshrl.u32 %v3132, 16
      %v3246 = vrot.slane %v3244, 4
      %v3247 = vshll.u32 %v3132, 16
      %v3249 = vrot.slane %v3247, 5
      %v3250 = vor.u32 %v3246, %v3249
      %v3251 = vrot.slane %v3250, 4
      %v3253 = vshll.u32 %v3133, 16
      %v3255 = vrot.slane %v3253, 5
      %v3256 = vsel %vm315, %v3251, %v3255
      %v3257 = vshrl.u32 %v3133, 16
      %v3259 = vrot.slane %v3257, 4
      %v3260 = vor.u32 %v3259, %v3255
      %v3261 = vrot.slane %v3260, 4
      %v3263 = vshll.u32 %v3134, 16
      %v3265 = vrot.slane %v3263, 5
      %v3266 = vsel %vm315, %v3261, %v3265
      %v3268 = vshrl.u32 %v3135, 16
      %v3270 = vrot.slane %v3268, 4
      %v3271 = vshll.u32 %v3135, 16
      %v3273 = vrot.slane %v3271, 5
      %v3274 = vor.u32 %v3270, %v3273
      %v3275 = vrot.slane %v3274, 4
      %v3277 = vshll.u32 %v3136, 16
      %v3279 = vrot.slane %v3277, 5
      %v3280 = vsel %vm315, %v3275, %v3279
      %v3281 = vshrl.u32 %v3136, 16
      %v3283 = vrot.slane %v3281, 4
      %v3284 = vor.u32 %v3283, %v3279
      %v3285 = vrot.slane %v3284, 4
      %v3287 = vshll.u32 %v3137, 16
      %v3289 = vrot.slane %v3287, 5
      %v3290 = vsel %vm315, %v3285, %v3289
      %v3292 = vshrl.u32 %v3138, 16
      %v3294 = vrot.slane %v3292, 4
      %v3295 = vshll.u32 %v3138, 16
      %v3297 = vrot.slane %v3295, 5
      %v3298 = vor.u32 %v3294, %v3297
      %v3299 = vrot.slane %v3298, 4
      %v3301 = vshll.u32 %v3139, 16
      %v3303 = vrot.slane %v3301, 5
      %v3304 = vsel %vm315, %v3299, %v3303
      %v3305 = vshrl.u32 %v3139, 16
      %v3307 = vrot.slane %v3305, 4
      %v3308 = vor.u32 %v3307, %v3303
      %v3309 = vrot.slane %v3308, 4
      %v3311 = vshll.u32 %v3140, 16
      %v3313 = vrot.slane %v3311, 5
      %v3314 = vsel %vm315, %v3309, %v3313
      %v3316 = vshrl.u32 %v3141, 16
      %v3318 = vrot.slane %v3316, 4
      %v3319 = vshll.u32 %v3141, 16
      %v3321 = vrot.slane %v3319, 5
      %v3322 = vor.u32 %v3318, %v3321
      %v3323 = vrot.slane %v3322, 4
      %v3325 = vshll.u32 %v3142, 16
      %v3327 = vrot.slane %v3325, 5
      %v3328 = vsel %vm315, %v3323, %v3327
      %v3329 = vshrl.u32 %v3142, 16
      %v3331 = vrot.slane %v3329, 4
      %v3332 = vor.u32 %v3331, %v3327
      %v3333 = vrot.slane %v3332, 4
      %v3335 = vshll.u32 %v3143, 16
      %v3337 = vrot.slane %v3335, 5
      %v3338 = vsel %vm315, %v3333, %v3337
      %v3340 = vshrl.u32 %v3144, 16
      %v3342 = vrot.slane %v3340, 4
      %v3343 = vshll.u32 %v3144, 16
      %v3345 = vrot.slane %v3343, 5
      %v3346 = vor.u32 %v3342, %v3345
      %v3347 = vrot.slane %v3346, 4
      %v3349 = vshll.u32 %v3145, 16
      %v3351 = vrot.slane %v3349, 5
      %v3352 = vsel %vm315, %v3347, %v3351
      %v3353 = vshrl.u32 %v3145, 16
      %v3355 = vrot.slane %v3353, 4
      %v3356 = vor.u32 %v3355, %v3351
      %v3357 = vrot.slane %v3356, 4
      %v3359 = vshll.u32 %v3146, 16
      %v3361 = vrot.slane %v3359, 5
      %v3362 = vsel %vm315, %v3357, %v3361
      %v3364 = vshrl.u32 %v3147, 16
      %v3366 = vrot.slane %v3364, 4
      %v3367 = vshll.u32 %v3147, 16
      %v3369 = vrot.slane %v3367, 5
      %v3370 = vor.u32 %v3366, %v3369
      %v3371 = vrot.slane %v3370, 4
      %v3373 = vshll.u32 %v3148, 16
      %v3375 = vrot.slane %v3373, 5
      %v3376 = vsel %vm315, %v3371, %v3375
      %v3377 = vshrl.u32 %v3148, 16
      %v3379 = vrot.slane %v3377, 4
      %v3380 = vor.u32 %v3379, %v3375
      %v3381 = vrot.slane %v3380, 4
      %v3383 = vshll.u32 %v3149, 16
      %v3385 = vrot.slane %v3383, 5
      %v3386 = vsel %vm315, %v3381, %v3385
      %v3388 = vshrl.u32 %v3150, 16
      %v3390 = vrot.slane %v3388, 4
      %v3391 = vshll.u32 %v3150, 16
      %v3393 = vrot.slane %v3391, 5
      %v3394 = vor.u32 %v3390, %v3393
      %v3395 = vrot.slane %v3394, 4
      %v3397 = vshll.u32 %v3151, 16
      %v3399 = vrot.slane %v3397, 5
      %v3400 = vsel %vm315, %v3395, %v3399
      %v3401 = vshrl.u32 %v3151, 16
      %v3403 = vrot.slane %v3401, 4
      %v3404 = vor.u32 %v3403, %v3399
      %v3405 = vrot.slane %v3404, 4
      %v3407 = vshll.u32 %v3152, 16
      %v3409 = vrot.slane %v3407, 5
      %v3410 = vsel %vm315, %v3405, %v3409
      %v3412 = vshrl.u32 %v3153, 16
      %v3414 = vrot.slane %v3412, 4
      %v3415 = vshll.u32 %v3153, 16
      %v3417 = vrot.slane %v3415, 5
      %v3418 = vor.u32 %v3414, %v3417
      %v3419 = vrot.slane %v3418, 4
      %v3421 = vshll.u32 %v3154, 16
      %v3423 = vrot.slane %v3421, 5
      %v3424 = vsel %vm315, %v3419, %v3423
      %v3425 = vshrl.u32 %v3154, 16
      %v3427 = vrot.slane %v3425, 4
      %v3428 = vor.u32 %v3427, %v3423
      %v3429 = vrot.slane %v3428, 4
      %v3431 = vshll.u32 %v3155, 16
      %v3433 = vrot.slane %v3431, 5
      %v3434 = vsel %vm315, %v3429, %v3433
      %v3436 = vshrl.u32 %v3156, 16
      %v3438 = vrot.slane %v3436, 4
      %v3439 = vshll.u32 %v3156, 16
      %v3441 = vrot.slane %v3439, 5
      %v3442 = vor.u32 %v3438, %v3441
      %v3443 = vrot.slane %v3442, 4
      %v3445 = vshll.u32 %v3157, 16
      %v3447 = vrot.slane %v3445, 5
      %v3448 = vsel %vm315, %v3443, %v3447
      %v3449 = vshrl.u32 %v3157, 16
      %v3451 = vrot.slane %v3449, 4
      %v3452 = vor.u32 %v3451, %v3447
      %v3453 = vrot.slane %v3452, 4
      %v3455 = vshll.u32 %v3158, 16
      %v3457 = vrot.slane %v3455, 5
      %v3458 = vsel %vm315, %v3453, %v3457
      %v3460 = vshrl.u32 %v3159, 16
      %v3462 = vrot.slane %v3460, 4
      %v3463 = vshll.u32 %v3159, 16
      %v3465 = vrot.slane %v3463, 5
      %v3466 = vor.u32 %v3462, %v3465
      %v3467 = vrot.slane %v3466, 4
      %v3469 = vshll.u32 %v3160, 16
      %v3471 = vrot.slane %v3469, 5
      %v3472 = vsel %vm315, %v3467, %v3471
      %v3473 = vshrl.u32 %v3160, 16
      %v3475 = vrot.slane %v3473, 4
      %v3476 = vor.u32 %v3475, %v3471
      %v3477 = vrot.slane %v3476, 4
      %v3479 = vshll.u32 %v3161, 16
      %v3481 = vrot.slane %v3479, 5
      %v3482 = vsel %vm315, %v3477, %v3481
      %v3484 = vshrl.u32 %v3162, 16
      %v3486 = vrot.slane %v3484, 4
      %v3487 = vshll.u32 %v3162, 16
      %v3489 = vrot.slane %v3487, 5
      %v3490 = vor.u32 %v3486, %v3489
      %v3491 = vrot.slane %v3490, 4
      %v3493 = vshll.u32 %v3163, 16
      %v3495 = vrot.slane %v3493, 5
      %v3496 = vsel %vm315, %v3491, %v3495
      %v3497 = vshrl.u32 %v3163, 16
      %v3499 = vrot.slane %v3497, 4
      %v3500 = vor.u32 %v3499, %v3495
      %v3501 = vrot.slane %v3500, 4
      %v3503 = vshll.u32 %v3164, 16
      %v3505 = vrot.slane %v3503, 5
      %v3506 = vsel %vm315, %v3501, %v3505
      %v3508 = vshrl.u32 %v3165, 16
      %v3510 = vrot.slane %v3508, 4
      %v3511 = vshll.u32 %v3165, 16
      %v3513 = vrot.slane %v3511, 5
      %v3514 = vor.u32 %v3510, %v3513
      %v3515 = vrot.slane %v3514, 4
      %v3517 = vshll.u32 %v3166, 16
      %v3519 = vrot.slane %v3517, 5
      %v3520 = vsel %vm315, %v3515, %v3519
      %v3521 = vshrl.u32 %v3166, 16
      %v3523 = vrot.slane %v3521, 4
      %v3524 = vor.u32 %v3523, %v3519
      %v3525 = vrot.slane %v3524, 4
      %v3527 = vshll.u32 %v3167, 16
      %v3529 = vrot.slane %v3527, 5
      %v3530 = vsel %vm315, %v3525, %v3529
      %v3532 = vshrl.u32 %v3168, 16
      %v3534 = vrot.slane %v3532, 4
      %v3535 = vshll.u32 %v3168, 16
      %v3537 = vrot.slane %v3535, 5
      %v3538 = vor.u32 %v3534, %v3537
      %v3539 = vrot.slane %v3538, 4
      %v3541 = vshll.u32 %v3169, 16
      %v3543 = vrot.slane %v3541, 5
      %v3544 = vsel %vm315, %v3539, %v3543
      %v3545 = vshrl.u32 %v3169, 16
      %v3547 = vrot.slane %v3545, 4
      %v3548 = vor.u32 %v3547, %v3543
      %v3549 = vrot.slane %v3548, 4
      %v3551 = vshll.u32 %v3170, 16
      %v3553 = vrot.slane %v3551, 5
      %v3554 = vsel %vm315, %v3549, %v3553
      %s3555 = scalar_lea.vmem %s248, 14
      %v3556 = vld [vmem:[%s3555] sm:$0x3]
      %v3557 = vunpack.c.l.b16 %v3184
      %v3558 = vunpack.c.l.b16 %v3194
      %v3559 = vunpack.c.l.b16 %v3208
      %v3560 = vunpack.c.l.b16 %v3218
      %v3561 = vunpack.c.l.b16 %v3232
      %v3562 = vunpack.c.l.b16 %v3242
      %v3563 = vunpack.c.l.b16 %v3256
      %v3564 = vunpack.c.l.b16 %v3266
      %v3565 = vunpack.c.l.b16 %v3280
      %v3566 = vunpack.c.l.b16 %v3290
      %v3567 = vunpack.c.l.b16 %v3304
      %v3568 = vunpack.c.l.b16 %v3314
      %v3569 = vunpack.c.l.b16 %v3328
      %v3570 = vunpack.c.l.b16 %v3338
      %v3571 = vunpack.c.l.b16 %v3352
      %v3572 = vunpack.c.l.b16 %v3362
      %v3573 = vunpack.c.l.b16 %v3376
      %v3574 = vunpack.c.l.b16 %v3386
      %v3575 = vunpack.c.l.b16 %v3400
      %v3576 = vunpack.c.l.b16 %v3410
      %v3577 = vunpack.c.l.b16 %v3424
      %v3578 = vunpack.c.l.b16 %v3434
      %v3579 = vunpack.c.l.b16 %v3448
      %v3580 = vunpack.c.l.b16 %v3458
      %v3581 = vunpack.c.l.b16 %v3472
      %v3582 = vunpack.c.l.b16 %v3482
      %v3583 = vunpack.c.l.b16 %v3496
      %v3584 = vunpack.c.l.b16 %v3506
      %v3585 = vunpack.c.l.b16 %v3520
      %v3586 = vunpack.c.l.b16 %v3530
      %v3587 = vunpack.c.l.b16 %v3544
      %v3588 = vunpack.c.l.b16 %v3554
      %v3589 = vpack.c.b16 %v3558, %v3557
      %v3590 = vpack.c.b16 %v3560, %v3559
      %v3591 = vpack.c.b16 %v3562, %v3561
      %v3592 = vpack.c.b16 %v3564, %v3563
      %v3593 = vpack.c.b16 %v3566, %v3565
      %v3594 = vpack.c.b16 %v3568, %v3567
      %v3595 = vpack.c.b16 %v3570, %v3569
      %v3596 = vpack.c.b16 %v3572, %v3571
      %v3597 = vpack.c.b16 %v3574, %v3573
      %v3598 = vpack.c.b16 %v3576, %v3575
      %v3599 = vpack.c.b16 %v3578, %v3577
      %v3600 = vpack.c.b16 %v3580, %v3579
      %v3601 = vpack.c.b16 %v3582, %v3581
      %v3602 = vpack.c.b16 %v3584, %v3583
      %v3603 = vpack.c.b16 %v3586, %v3585
      %v3604 = vpack.c.b16 %v3588, %v3587
      %v3606 = vsel %vm750, %v3589, 0
      %v3609 = vsel %vm750, %v3590, 0
      %v3612 = vsel %vm750, %v3591, 0
      %v3615 = vsel %vm750, %v3592, 0
      %v3618 = vsel %vm750, %v3593, 0
      %v3621 = vsel %vm750, %v3594, 0
      %v3624 = vsel %vm750, %v3595, 0
      %v3627 = vsel %vm750, %v3596, 0
      %v3630 = vsel %vm750, %v3597, 0
      %v3633 = vsel %vm750, %v3598, 0
      %v3636 = vsel %vm750, %v3599, 0
      %v3639 = vsel %vm750, %v3600, 0
      %v3642 = vsel %vm750, %v3601, 0
      %v3645 = vsel %vm750, %v3602, 0
      %v3648 = vsel %vm750, %v3603, 0
      %v3651 = vsel %vm750, %v3604, 0
      %v3654 = vsel %vm799, %v3556, 0
      %3656 = vmatpush.bf16.msra.mxu0 0
      %3657 = vmatpush.bf16.msra.mxu0 0
      %3658 = vmatpush.bf16.msra.mxu0 0
      %3659 = vmatpush.bf16.msra.mxu0 0
      %3660 = vmatpush.bf16.msra.mxu0 0
      %3661 = vmatpush.bf16.msra.mxu0 0
      %3662 = vmatpush.bf16.msra.mxu0 0
      %3663 = vmatpush.bf16.msra.mxu0 %v3654
      %3664 = vmatmul.bf16.gmra.mxu0 %v3606
      %v3665 = vpop.f32.mrf.mxu0
      %v3666 = vadd.f32 0.0, %v3665
      %v3667 = vpop.f32.mrf.mxu0
      %v3668 = vadd.f32 0.0, %v3667
      %3669 = vmatmul.bf16.gmra.mxu0 %v3609
      %v3670 = vpop.f32.mrf.mxu0
      %v3671 = vadd.f32 0.0, %v3670
      %v3672 = vpop.f32.mrf.mxu0
      %v3673 = vadd.f32 0.0, %v3672
      %3674 = vmatmul.bf16.gmra.mxu0 %v3612
      %v3675 = vpop.f32.mrf.mxu0
      %v3676 = vadd.f32 0.0, %v3675
      %v3677 = vpop.f32.mrf.mxu0
      %v3678 = vadd.f32 0.0, %v3677
      %3679 = vmatmul.bf16.gmra.mxu0 %v3615
      %v3680 = vpop.f32.mrf.mxu0
      %v3681 = vadd.f32 0.0, %v3680
      %v3682 = vpop.f32.mrf.mxu0
      %v3683 = vadd.f32 0.0, %v3682
      %3684 = vmatmul.bf16.gmra.mxu0 %v3618
      %v3685 = vpop.f32.mrf.mxu0
      %v3686 = vadd.f32 0.0, %v3685
      %v3687 = vpop.f32.mrf.mxu0
      %v3688 = vadd.f32 0.0, %v3687
      %3689 = vmatmul.bf16.gmra.mxu0 %v3621
      %v3690 = vpop.f32.mrf.mxu0
      %v3691 = vadd.f32 0.0, %v3690
      %v3692 = vpop.f32.mrf.mxu0
      %v3693 = vadd.f32 0.0, %v3692
      %3694 = vmatmul.bf16.gmra.mxu0 %v3624
      %v3695 = vpop.f32.mrf.mxu0
      %v3696 = vadd.f32 0.0, %v3695
      %v3697 = vpop.f32.mrf.mxu0
      %v3698 = vadd.f32 0.0, %v3697
      %3699 = vmatmul.bf16.gmra.mxu0 %v3627
      %v3700 = vpop.f32.mrf.mxu0
      %v3701 = vadd.f32 0.0, %v3700
      %v3702 = vpop.f32.mrf.mxu0
      %v3703 = vadd.f32 0.0, %v3702
      %3704 = vmatmul.bf16.gmra.mxu0 %v3630
      %v3705 = vpop.f32.mrf.mxu0
      %v3706 = vadd.f32 0.0, %v3705
      %v3707 = vpop.f32.mrf.mxu0
      %v3708 = vadd.f32 0.0, %v3707
      %3709 = vmatmul.bf16.gmra.mxu0 %v3633
      %v3710 = vpop.f32.mrf.mxu0
      %v3711 = vadd.f32 0.0, %v3710
      %v3712 = vpop.f32.mrf.mxu0
      %v3713 = vadd.f32 0.0, %v3712
      %3714 = vmatmul.bf16.gmra.mxu0 %v3636
      %v3715 = vpop.f32.mrf.mxu0
      %v3716 = vadd.f32 0.0, %v3715
      %v3717 = vpop.f32.mrf.mxu0
      %v3718 = vadd.f32 0.0, %v3717
      %3719 = vmatmul.bf16.gmra.mxu0 %v3639
      %v3720 = vpop.f32.mrf.mxu0
      %v3721 = vadd.f32 0.0, %v3720
      %v3722 = vpop.f32.mrf.mxu0
      %v3723 = vadd.f32 0.0, %v3722
      %3724 = vmatmul.bf16.gmra.mxu0 %v3642
      %v3725 = vpop.f32.mrf.mxu0
      %v3726 = vadd.f32 0.0, %v3725
      %v3727 = vpop.f32.mrf.mxu0
      %v3728 = vadd.f32 0.0, %v3727
      %3729 = vmatmul.bf16.gmra.mxu0 %v3645
      %v3730 = vpop.f32.mrf.mxu0
      %v3731 = vadd.f32 0.0, %v3730
      %v3732 = vpop.f32.mrf.mxu0
      %v3733 = vadd.f32 0.0, %v3732
      %3734 = vmatmul.bf16.gmra.mxu0 %v3648
      %v3735 = vpop.f32.mrf.mxu0
      %v3736 = vadd.f32 0.0, %v3735
      %v3737 = vpop.f32.mrf.mxu0
      %v3738 = vadd.f32 0.0, %v3737
      %3739 = vmatmul.bf16.gmra.mxu0 %v3651
      %v3740 = vpop.f32.mrf.mxu0
      %v3741 = vadd.f32 0.0, %v3740
      %v3742 = vpop.f32.mrf.mxu0
      %v3743 = vadd.f32 0.0, %v3742
      %3744 = vdwg.mxu0
      %v3745 = vadd.f32 %v3091, %v3666
      %v3746 = vadd.f32 %v3092, %v3668
      %v3747 = vadd.f32 %v3093, %v3671
      %v3748 = vadd.f32 %v3094, %v3673
      %v3749 = vadd.f32 %v3095, %v3676
      %v3750 = vadd.f32 %v3096, %v3678
      %v3751 = vadd.f32 %v3097, %v3681
      %v3752 = vadd.f32 %v3098, %v3683
      %v3753 = vadd.f32 %v3099, %v3686
      %v3754 = vadd.f32 %v3100, %v3688
      %v3755 = vadd.f32 %v3101, %v3691
      %v3756 = vadd.f32 %v3102, %v3693
      %v3757 = vadd.f32 %v3103, %v3696
      %v3758 = vadd.f32 %v3104, %v3698
      %v3759 = vadd.f32 %v3105, %v3701
      %v3760 = vadd.f32 %v3106, %v3703
      %v3761 = vadd.f32 %v3107, %v3706
      %v3762 = vadd.f32 %v3108, %v3708
      %v3763 = vadd.f32 %v3109, %v3711
      %v3764 = vadd.f32 %v3110, %v3713
      %v3765 = vadd.f32 %v3111, %v3716
      %v3766 = vadd.f32 %v3112, %v3718
      %v3767 = vadd.f32 %v3113, %v3721
      %v3768 = vadd.f32 %v3114, %v3723
      %v3769 = vadd.f32 %v3115, %v3726
      %v3770 = vadd.f32 %v3116, %v3728
      %v3771 = vadd.f32 %v3117, %v3731
      %v3772 = vadd.f32 %v3118, %v3733
      %v3773 = vadd.f32 %v3119, %v3736
      %v3774 = vadd.f32 %v3120, %v3738
      %v3775 = vadd.f32 %v3121, %v3741
      %v3776 = vadd.f32 %v3122, %v3743
      %v3777 = vld [vmem:[%s2836] sm:$0xe]
      %v3778 = vld [vmem:[%s2836 + $0xc] sm:$0xe]
      %v3779 = vld [vmem:[%s2836 + $0x18] sm:$0xe]
      %v3780 = vld [vmem:[%s2836 + $0x24] sm:$0xe]
      %v3781 = vld [vmem:[%s2836 + $0x30] sm:$0xe]
      %v3782 = vld [vmem:[%s2836 + $0x3c] sm:$0xe]
      %v3783 = vld [vmem:[%s2836 + $0x48] sm:$0xe]
      %v3784 = vld [vmem:[%s2836 + $0x54] sm:$0xe]
      %v3785 = vld [vmem:[%s2836 + $0x60] sm:$0xe]
      %v3786 = vld [vmem:[%s2836 + $0x6c] sm:$0xe]
      %v3787 = vld [vmem:[%s2836 + $0x78] sm:$0xe]
      %v3788 = vld [vmem:[%s2836 + $0x84] sm:$0xe]
      %v3789 = vld [vmem:[%s2836 + $0x90] sm:$0xe]
      %v3790 = vld [vmem:[%s2836 + $0x9c] sm:$0xe]
      %v3791 = vld [vmem:[%s2836 + $0xa8] sm:$0xe]
      %v3792 = vld [vmem:[%s2836 + $0xb4] sm:$0xe]
      %v3841 = vrot.slane %v3777, 5
      %v3842 = vrot.slane %v3841, 4
      %v3843 = vrot.slane %v3124, 5
      %v3844 = vsel %vm1162, %v3842, %v3843
      %v3845 = vrot.slane %v3843, 4
      %v3846 = vrot.slane %v3125, 5
      %v3847 = vsel %vm1162, %v3845, %v3846
      %v3848 = vrot.slane %v3778, 5
      %v3849 = vrot.slane %v3848, 4
      %v3850 = vrot.slane %v3127, 5
      %v3851 = vsel %vm1162, %v3849, %v3850
      %v3852 = vrot.slane %v3850, 4
      %v3853 = vrot.slane %v3128, 5
      %v3854 = vsel %vm1162, %v3852, %v3853
      %v3855 = vrot.slane %v3779, 5
      %v3856 = vrot.slane %v3855, 4
      %v3857 = vrot.slane %v3130, 5
      %v3858 = vsel %vm1162, %v3856, %v3857
      %v3859 = vrot.slane %v3857, 4
      %v3860 = vrot.slane %v3131, 5
      %v3861 = vsel %vm1162, %v3859, %v3860
      %v3862 = vrot.slane %v3780, 5
      %v3863 = vrot.slane %v3862, 4
      %v3864 = vrot.slane %v3133, 5
      %v3865 = vsel %vm1162, %v3863, %v3864
      %v3866 = vrot.slane %v3864, 4
      %v3867 = vrot.slane %v3134, 5
      %v3868 = vsel %vm1162, %v3866, %v3867
      %v3869 = vrot.slane %v3781, 5
      %v3870 = vrot.slane %v3869, 4
      %v3871 = vrot.slane %v3136, 5
      %v3872 = vsel %vm1162, %v3870, %v3871
      %v3873 = vrot.slane %v3871, 4
      %v3874 = vrot.slane %v3137, 5
      %v3875 = vsel %vm1162, %v3873, %v3874
      %v3876 = vrot.slane %v3782, 5
      %v3877 = vrot.slane %v3876, 4
      %v3878 = vrot.slane %v3139, 5
      %v3879 = vsel %vm1162, %v3877, %v3878
      %v3880 = vrot.slane %v3878, 4
      %v3881 = vrot.slane %v3140, 5
      %v3882 = vsel %vm1162, %v3880, %v3881
      %v3883 = vrot.slane %v3783, 5
      %v3884 = vrot.slane %v3883, 4
      %v3885 = vrot.slane %v3142, 5
      %v3886 = vsel %vm1162, %v3884, %v3885
      %v3887 = vrot.slane %v3885, 4
      %v3888 = vrot.slane %v3143, 5
      %v3889 = vsel %vm1162, %v3887, %v3888
      %v3890 = vrot.slane %v3784, 5
      %v3891 = vrot.slane %v3890, 4
      %v3892 = vrot.slane %v3145, 5
      %v3893 = vsel %vm1162, %v3891, %v3892
      %v3894 = vrot.slane %v3892, 4
      %v3895 = vrot.slane %v3146, 5
      %v3896 = vsel %vm1162, %v3894, %v3895
      %v3897 = vrot.slane %v3785, 5
      %v3898 = vrot.slane %v3897, 4
      %v3899 = vrot.slane %v3148, 5
      %v3900 = vsel %vm1162, %v3898, %v3899
      %v3901 = vrot.slane %v3899, 4
      %v3902 = vrot.slane %v3149, 5
      %v3903 = vsel %vm1162, %v3901, %v3902
      %v3904 = vrot.slane %v3786, 5
      %v3905 = vrot.slane %v3904, 4
      %v3906 = vrot.slane %v3151, 5
      %v3907 = vsel %vm1162, %v3905, %v3906
      %v3908 = vrot.slane %v3906, 4
      %v3909 = vrot.slane %v3152, 5
      %v3910 = vsel %vm1162, %v3908, %v3909
      %v3911 = vrot.slane %v3787, 5
      %v3912 = vrot.slane %v3911, 4
      %v3913 = vrot.slane %v3154, 5
      %v3914 = vsel %vm1162, %v3912, %v3913
      %v3915 = vrot.slane %v3913, 4
      %v3916 = vrot.slane %v3155, 5
      %v3917 = vsel %vm1162, %v3915, %v3916
      %v3918 = vrot.slane %v3788, 5
      %v3919 = vrot.slane %v3918, 4
      %v3920 = vrot.slane %v3157, 5
      %v3921 = vsel %vm1162, %v3919, %v3920
      %v3922 = vrot.slane %v3920, 4
      %v3923 = vrot.slane %v3158, 5
      %v3924 = vsel %vm1162, %v3922, %v3923
      %v3925 = vrot.slane %v3789, 5
      %v3926 = vrot.slane %v3925, 4
      %v3927 = vrot.slane %v3160, 5
      %v3928 = vsel %vm1162, %v3926, %v3927
      %v3929 = vrot.slane %v3927, 4
      %v3930 = vrot.slane %v3161, 5
      %v3931 = vsel %vm1162, %v3929, %v3930
      %v3932 = vrot.slane %v3790, 5
      %v3933 = vrot.slane %v3932, 4
      %v3934 = vrot.slane %v3163, 5
      %v3935 = vsel %vm1162, %v3933, %v3934
      %v3936 = vrot.slane %v3934, 4
      %v3937 = vrot.slane %v3164, 5
      %v3938 = vsel %vm1162, %v3936, %v3937
      %v3939 = vrot.slane %v3791, 5
      %v3940 = vrot.slane %v3939, 4
      %v3941 = vrot.slane %v3166, 5
      %v3942 = vsel %vm1162, %v3940, %v3941
      %v3943 = vrot.slane %v3941, 4
      %v3944 = vrot.slane %v3167, 5
      %v3945 = vsel %vm1162, %v3943, %v3944
      %v3946 = vrot.slane %v3792, 5
      %v3947 = vrot.slane %v3946, 4
      %v3948 = vrot.slane %v3169, 5
      %v3949 = vsel %vm1162, %v3947, %v3948
      %v3950 = vrot.slane %v3948, 4
      %v3951 = vrot.slane %v3170, 5
      %v3952 = vsel %vm1162, %v3950, %v3951
      %s3953 = scalar_lea.vmem %s248, 16
      %v3954 = vld [vmem:[%s3953] sm:$0x3]
      %v3955 = vunpack.c.l.b16 %v3844
      %v3956 = vunpack.c.l.b16 %v3847
      %v3957 = vunpack.c.l.b16 %v3851
      %v3958 = vunpack.c.l.b16 %v3854
      %v3959 = vunpack.c.l.b16 %v3858
      %v3960 = vunpack.c.l.b16 %v3861
      %v3961 = vunpack.c.l.b16 %v3865
      %v3962 = vunpack.c.l.b16 %v3868
      %v3963 = vunpack.c.l.b16 %v3872
      %v3964 = vunpack.c.l.b16 %v3875
      %v3965 = vunpack.c.l.b16 %v3879
      %v3966 = vunpack.c.l.b16 %v3882
      %v3967 = vunpack.c.l.b16 %v3886
      %v3968 = vunpack.c.l.b16 %v3889
      %v3969 = vunpack.c.l.b16 %v3893
      %v3970 = vunpack.c.l.b16 %v3896
      %v3971 = vunpack.c.l.b16 %v3900
      %v3972 = vunpack.c.l.b16 %v3903
      %v3973 = vunpack.c.l.b16 %v3907
      %v3974 = vunpack.c.l.b16 %v3910
      %v3975 = vunpack.c.l.b16 %v3914
      %v3976 = vunpack.c.l.b16 %v3917
      %v3977 = vunpack.c.l.b16 %v3921
      %v3978 = vunpack.c.l.b16 %v3924
      %v3979 = vunpack.c.l.b16 %v3928
      %v3980 = vunpack.c.l.b16 %v3931
      %v3981 = vunpack.c.l.b16 %v3935
      %v3982 = vunpack.c.l.b16 %v3938
      %v3983 = vunpack.c.l.b16 %v3942
      %v3984 = vunpack.c.l.b16 %v3945
      %v3985 = vunpack.c.l.b16 %v3949
      %v3986 = vunpack.c.l.b16 %v3952
      %v3987 = vpack.c.b16 %v3956, %v3955
      %v3988 = vpack.c.b16 %v3958, %v3957
      %v3989 = vpack.c.b16 %v3960, %v3959
      %v3990 = vpack.c.b16 %v3962, %v3961
      %v3991 = vpack.c.b16 %v3964, %v3963
      %v3992 = vpack.c.b16 %v3966, %v3965
      %v3993 = vpack.c.b16 %v3968, %v3967
      %v3994 = vpack.c.b16 %v3970, %v3969
      %v3995 = vpack.c.b16 %v3972, %v3971
      %v3996 = vpack.c.b16 %v3974, %v3973
      %v3997 = vpack.c.b16 %v3976, %v3975
      %v3998 = vpack.c.b16 %v3978, %v3977
      %v3999 = vpack.c.b16 %v3980, %v3979
      %v4000 = vpack.c.b16 %v3982, %v3981
      %v4001 = vpack.c.b16 %v3984, %v3983
      %v4002 = vpack.c.b16 %v3986, %v3985
      %v4004 = vsel %vm750, %v3987, 0
      %v4007 = vsel %vm750, %v3988, 0
      %v4010 = vsel %vm750, %v3989, 0
      %v4013 = vsel %vm750, %v3990, 0
      %v4016 = vsel %vm750, %v3991, 0
      %v4019 = vsel %vm750, %v3992, 0
      %v4022 = vsel %vm750, %v3993, 0
      %v4025 = vsel %vm750, %v3994, 0
      %v4028 = vsel %vm750, %v3995, 0
      %v4031 = vsel %vm750, %v3996, 0
      %v4034 = vsel %vm750, %v3997, 0
      %v4037 = vsel %vm750, %v3998, 0
      %v4040 = vsel %vm750, %v3999, 0
      %v4043 = vsel %vm750, %v4000, 0
      %v4046 = vsel %vm750, %v4001, 0
      %v4049 = vsel %vm750, %v4002, 0
      %v4052 = vsel %vm799, %v3954, 0
      %4054 = vmatpush.bf16.msra.mxu0 0
      %4055 = vmatpush.bf16.msra.mxu0 0
      %4056 = vmatpush.bf16.msra.mxu0 0
      %4057 = vmatpush.bf16.msra.mxu0 0
      %4058 = vmatpush.bf16.msra.mxu0 0
      %4059 = vmatpush.bf16.msra.mxu0 0
      %4060 = vmatpush.bf16.msra.mxu0 0
      %4061 = vmatpush.bf16.msra.mxu0 %v4052
      %4062 = vmatmul.bf16.gmra.mxu0 %v4004
      %v4063 = vpop.f32.mrf.mxu0
      %v4064 = vadd.f32 0.0, %v4063
      %v4065 = vpop.f32.mrf.mxu0
      %v4066 = vadd.f32 0.0, %v4065
      %4067 = vmatmul.bf16.gmra.mxu0 %v4007
      %v4068 = vpop.f32.mrf.mxu0
      %v4069 = vadd.f32 0.0, %v4068
      %v4070 = vpop.f32.mrf.mxu0
      %v4071 = vadd.f32 0.0, %v4070
      %4072 = vmatmul.bf16.gmra.mxu0 %v4010
      %v4073 = vpop.f32.mrf.mxu0
      %v4074 = vadd.f32 0.0, %v4073
      %v4075 = vpop.f32.mrf.mxu0
      %v4076 = vadd.f32 0.0, %v4075
      %4077 = vmatmul.bf16.gmra.mxu0 %v4013
      %v4078 = vpop.f32.mrf.mxu0
      %v4079 = vadd.f32 0.0, %v4078
      %v4080 = vpop.f32.mrf.mxu0
      %v4081 = vadd.f32 0.0, %v4080
      %4082 = vmatmul.bf16.gmra.mxu0 %v4016
      %v4083 = vpop.f32.mrf.mxu0
      %v4084 = vadd.f32 0.0, %v4083
      %v4085 = vpop.f32.mrf.mxu0
      %v4086 = vadd.f32 0.0, %v4085
      %4087 = vmatmul.bf16.gmra.mxu0 %v4019
      %v4088 = vpop.f32.mrf.mxu0
      %v4089 = vadd.f32 0.0, %v4088
      %v4090 = vpop.f32.mrf.mxu0
      %v4091 = vadd.f32 0.0, %v4090
      %4092 = vmatmul.bf16.gmra.mxu0 %v4022
      %v4093 = vpop.f32.mrf.mxu0
      %v4094 = vadd.f32 0.0, %v4093
      %v4095 = vpop.f32.mrf.mxu0
      %v4096 = vadd.f32 0.0, %v4095
      %4097 = vmatmul.bf16.gmra.mxu0 %v4025
      %v4098 = vpop.f32.mrf.mxu0
      %v4099 = vadd.f32 0.0, %v4098
      %v4100 = vpop.f32.mrf.mxu0
      %v4101 = vadd.f32 0.0, %v4100
      %4102 = vmatmul.bf16.gmra.mxu0 %v4028
      %v4103 = vpop.f32.mrf.mxu0
      %v4104 = vadd.f32 0.0, %v4103
      %v4105 = vpop.f32.mrf.mxu0
      %v4106 = vadd.f32 0.0, %v4105
      %4107 = vmatmul.bf16.gmra.mxu0 %v4031
      %v4108 = vpop.f32.mrf.mxu0
      %v4109 = vadd.f32 0.0, %v4108
      %v4110 = vpop.f32.mrf.mxu0
      %v4111 = vadd.f32 0.0, %v4110
      %4112 = vmatmul.bf16.gmra.mxu0 %v4034
      %v4113 = vpop.f32.mrf.mxu0
      %v4114 = vadd.f32 0.0, %v4113
      %v4115 = vpop.f32.mrf.mxu0
      %v4116 = vadd.f32 0.0, %v4115
      %4117 = vmatmul.bf16.gmra.mxu0 %v4037
      %v4118 = vpop.f32.mrf.mxu0
      %v4119 = vadd.f32 0.0, %v4118
      %v4120 = vpop.f32.mrf.mxu0
      %v4121 = vadd.f32 0.0, %v4120
      %4122 = vmatmul.bf16.gmra.mxu0 %v4040
      %v4123 = vpop.f32.mrf.mxu0
      %v4124 = vadd.f32 0.0, %v4123
      %v4125 = vpop.f32.mrf.mxu0
      %v4126 = vadd.f32 0.0, %v4125
      %4127 = vmatmul.bf16.gmra.mxu0 %v4043
      %v4128 = vpop.f32.mrf.mxu0
      %v4129 = vadd.f32 0.0, %v4128
      %v4130 = vpop.f32.mrf.mxu0
      %v4131 = vadd.f32 0.0, %v4130
      %4132 = vmatmul.bf16.gmra.mxu0 %v4046
      %v4133 = vpop.f32.mrf.mxu0
      %v4134 = vadd.f32 0.0, %v4133
      %v4135 = vpop.f32.mrf.mxu0
      %v4136 = vadd.f32 0.0, %v4135
      %4137 = vmatmul.bf16.gmra.mxu0 %v4049
      %v4138 = vpop.f32.mrf.mxu0
      %v4139 = vadd.f32 0.0, %v4138
      %v4140 = vpop.f32.mrf.mxu0
      %v4141 = vadd.f32 0.0, %v4140
      %4142 = vdwg.mxu0
      %v4143 = vadd.f32 %v3745, %v4064
      %v4144 = vadd.f32 %v3746, %v4066
      %v4145 = vadd.f32 %v3747, %v4069
      %v4146 = vadd.f32 %v3748, %v4071
      %v4147 = vadd.f32 %v3749, %v4074
      %v4148 = vadd.f32 %v3750, %v4076
      %v4149 = vadd.f32 %v3751, %v4079
      %v4150 = vadd.f32 %v3752, %v4081
      %v4151 = vadd.f32 %v3753, %v4084
      %v4152 = vadd.f32 %v3754, %v4086
      %v4153 = vadd.f32 %v3755, %v4089
      %v4154 = vadd.f32 %v3756, %v4091
      %v4155 = vadd.f32 %v3757, %v4094
      %v4156 = vadd.f32 %v3758, %v4096
      %v4157 = vadd.f32 %v3759, %v4099
      %v4158 = vadd.f32 %v3760, %v4101
      %v4159 = vadd.f32 %v3761, %v4104
      %v4160 = vadd.f32 %v3762, %v4106
      %v4161 = vadd.f32 %v3763, %v4109
      %v4162 = vadd.f32 %v3764, %v4111
      %v4163 = vadd.f32 %v3765, %v4114
      %v4164 = vadd.f32 %v3766, %v4116
      %v4165 = vadd.f32 %v3767, %v4119
      %v4166 = vadd.f32 %v3768, %v4121
      %v4167 = vadd.f32 %v3769, %v4124
      %v4168 = vadd.f32 %v3770, %v4126
      %v4169 = vadd.f32 %v3771, %v4129
      %v4170 = vadd.f32 %v3772, %v4131
      %v4171 = vadd.f32 %v3773, %v4134
      %v4172 = vadd.f32 %v3774, %v4136
      %v4173 = vadd.f32 %v3775, %v4139
      %v4174 = vadd.f32 %v3776, %v4141
      %v4175 = vld [vmem:[%s251] sm:$0x1]
      %v4177 = vperm.slane %v4175, 0
      %v4179 = vmul.f32 %v4143, %v4177
      %v4180 = vmul.f32 %v4144, %v4177
      %v4181 = vmul.f32 %v4145, %v4177
      %v4182 = vmul.f32 %v4146, %v4177
      %v4183 = vmul.f32 %v4147, %v4177
      %v4184 = vmul.f32 %v4148, %v4177
      %v4185 = vmul.f32 %v4149, %v4177
      %v4186 = vmul.f32 %v4150, %v4177
      %v4187 = vmul.f32 %v4151, %v4177
      %v4188 = vmul.f32 %v4152, %v4177
      %v4189 = vmul.f32 %v4153, %v4177
      %v4190 = vmul.f32 %v4154, %v4177
      %v4191 = vmul.f32 %v4155, %v4177
      %v4192 = vmul.f32 %v4156, %v4177
      %v4193 = vmul.f32 %v4157, %v4177
      %v4194 = vmul.f32 %v4158, %v4177
      %v4195 = vmul.f32 %v4159, %v4177
      %v4196 = vmul.f32 %v4160, %v4177
      %v4197 = vmul.f32 %v4161, %v4177
      %v4198 = vmul.f32 %v4162, %v4177
      %v4199 = vmul.f32 %v4163, %v4177
      %v4200 = vmul.f32 %v4164, %v4177
      %v4201 = vmul.f32 %v4165, %v4177
      %v4202 = vmul.f32 %v4166, %v4177
      %v4203 = vmul.f32 %v4167, %v4177
      %v4204 = vmul.f32 %v4168, %v4177
      %v4205 = vmul.f32 %v4169, %v4177
      %v4206 = vmul.f32 %v4170, %v4177
      %v4207 = vmul.f32 %v4171, %v4177
      %v4208 = vmul.f32 %v4172, %v4177
      %v4209 = vmul.f32 %v4173, %v4177
      %v4210 = vmul.f32 %v4174, %v4177
      %v4211 = vld [vmem:[%s254] sm:$0x1]
      %v4213 = vperm.slane %v4211, 0
      %v4215 = vadd.f32 %v4179, %v4213
      %v4216 = vadd.f32 %v4180, %v4213
      %v4217 = vadd.f32 %v4181, %v4213
      %v4218 = vadd.f32 %v4182, %v4213
      %v4219 = vadd.f32 %v4183, %v4213
      %v4220 = vadd.f32 %v4184, %v4213
      %v4221 = vadd.f32 %v4185, %v4213
      %v4222 = vadd.f32 %v4186, %v4213
      %v4223 = vadd.f32 %v4187, %v4213
      %v4224 = vadd.f32 %v4188, %v4213
      %v4225 = vadd.f32 %v4189, %v4213
      %v4226 = vadd.f32 %v4190, %v4213
      %v4227 = vadd.f32 %v4191, %v4213
      %v4228 = vadd.f32 %v4192, %v4213
      %v4229 = vadd.f32 %v4193, %v4213
      %v4230 = vadd.f32 %v4194, %v4213
      %v4231 = vadd.f32 %v4195, %v4213
      %v4232 = vadd.f32 %v4196, %v4213
      %v4233 = vadd.f32 %v4197, %v4213
      %v4234 = vadd.f32 %v4198, %v4213
      %v4235 = vadd.f32 %v4199, %v4213
      %v4236 = vadd.f32 %v4200, %v4213
      %v4237 = vadd.f32 %v4201, %v4213
      %v4238 = vadd.f32 %v4202, %v4213
      %v4239 = vadd.f32 %v4203, %v4213
      %v4240 = vadd.f32 %v4204, %v4213
      %v4241 = vadd.f32 %v4205, %v4213
      %v4242 = vadd.f32 %v4206, %v4213
      %v4243 = vadd.f32 %v4207, %v4213
      %v4244 = vadd.f32 %v4208, %v4213
      %v4245 = vadd.f32 %v4209, %v4213
      %v4246 = vadd.f32 %v4210, %v4213
      %vm4247 = vcmp.ge.f32.partialorder %v4215, 0.0
      %vm4248 = vcmp.ge.f32.partialorder %v4216, 0.0
      %vm4249 = vcmp.ge.f32.partialorder %v4217, 0.0
      %vm4250 = vcmp.ge.f32.partialorder %v4218, 0.0
      %vm4251 = vcmp.ge.f32.partialorder %v4219, 0.0
      %vm4252 = vcmp.ge.f32.partialorder %v4220, 0.0
      %vm4253 = vcmp.ge.f32.partialorder %v4221, 0.0
      %vm4254 = vcmp.ge.f32.partialorder %v4222, 0.0
      %vm4255 = vcmp.ge.f32.partialorder %v4223, 0.0
      %vm4256 = vcmp.ge.f32.partialorder %v4224, 0.0
      %vm4257 = vcmp.ge.f32.partialorder %v4225, 0.0
      %vm4258 = vcmp.ge.f32.partialorder %v4226, 0.0
      %vm4259 = vcmp.ge.f32.partialorder %v4227, 0.0
      %vm4260 = vcmp.ge.f32.partialorder %v4228, 0.0
      %vm4261 = vcmp.ge.f32.partialorder %v4229, 0.0
      %vm4262 = vcmp.ge.f32.partialorder %v4230, 0.0
      %vm4263 = vcmp.ge.f32.partialorder %v4231, 0.0
      %vm4264 = vcmp.ge.f32.partialorder %v4232, 0.0
      %vm4265 = vcmp.ge.f32.partialorder %v4233, 0.0
      %vm4266 = vcmp.ge.f32.partialorder %v4234, 0.0
      %vm4267 = vcmp.ge.f32.partialorder %v4235, 0.0
      %vm4268 = vcmp.ge.f32.partialorder %v4236, 0.0
      %vm4269 = vcmp.ge.f32.partialorder %v4237, 0.0
      %vm4270 = vcmp.ge.f32.partialorder %v4238, 0.0
      %vm4271 = vcmp.ge.f32.partialorder %v4239, 0.0
      %vm4272 = vcmp.ge.f32.partialorder %v4240, 0.0
      %vm4273 = vcmp.ge.f32.partialorder %v4241, 0.0
      %vm4274 = vcmp.ge.f32.partialorder %v4242, 0.0
      %vm4275 = vcmp.ge.f32.partialorder %v4243, 0.0
      %vm4276 = vcmp.ge.f32.partialorder %v4244, 0.0
      %vm4277 = vcmp.ge.f32.partialorder %v4245, 0.0
      %vm4278 = vcmp.ge.f32.partialorder %v4246, 0.0
      %v4279 = vmul.f32 %v4215, 0.1
      %v4280 = vmul.f32 %v4216, 0.1
      %v4281 = vmul.f32 %v4217, 0.1
      %v4282 = vmul.f32 %v4218, 0.1
      %v4283 = vmul.f32 %v4219, 0.1
      %v4284 = vmul.f32 %v4220, 0.1
      %v4285 = vmul.f32 %v4221, 0.1
      %v4286 = vmul.f32 %v4222, 0.1
      %v4287 = vmul.f32 %v4223, 0.1
      %v4288 = vmul.f32 %v4224, 0.1
      %v4289 = vmul.f32 %v4225, 0.1
      %v4290 = vmul.f32 %v4226, 0.1
      %v4291 = vmul.f32 %v4227, 0.1
      %v4292 = vmul.f32 %v4228, 0.1
      %v4293 = vmul.f32 %v4229, 0.1
      %v4294 = vmul.f32 %v4230, 0.1
      %v4295 = vmul.f32 %v4231, 0.1
      %v4296 = vmul.f32 %v4232, 0.1
      %v4297 = vmul.f32 %v4233, 0.1
      %v4298 = vmul.f32 %v4234, 0.1
      %v4299 = vmul.f32 %v4235, 0.1
      %v4300 = vmul.f32 %v4236, 0.1
      %v4301 = vmul.f32 %v4237, 0.1
      %v4302 = vmul.f32 %v4238, 0.1
      %v4303 = vmul.f32 %v4239, 0.1
      %v4304 = vmul.f32 %v4240, 0.1
      %v4305 = vmul.f32 %v4241, 0.1
      %v4306 = vmul.f32 %v4242, 0.1
      %v4307 = vmul.f32 %v4243, 0.1
      %v4308 = vmul.f32 %v4244, 0.1
      %v4309 = vmul.f32 %v4245, 0.1
      %v4310 = vmul.f32 %v4246, 0.1
      %v4311 = vsel %vm4247, %v4215, %v4279
      %v4312 = vsel %vm4248, %v4216, %v4280
      %v4313 = vsel %vm4249, %v4217, %v4281
      %v4314 = vsel %vm4250, %v4218, %v4282
      %v4315 = vsel %vm4251, %v4219, %v4283
      %v4316 = vsel %vm4252, %v4220, %v4284
      %v4317 = vsel %vm4253, %v4221, %v4285
      %v4318 = vsel %vm4254, %v4222, %v4286
      %v4319 = vsel %vm4255, %v4223, %v4287
      %v4320 = vsel %vm4256, %v4224, %v4288
      %v4321 = vsel %vm4257, %v4225, %v4289
      %v4322 = vsel %vm4258, %v4226, %v4290
      %v4323 = vsel %vm4259, %v4227, %v4291
      %v4324 = vsel %vm4260, %v4228, %v4292
      %v4325 = vsel %vm4261, %v4229, %v4293
      %v4326 = vsel %vm4262, %v4230, %v4294
      %v4327 = vsel %vm4263, %v4231, %v4295
      %v4328 = vsel %vm4264, %v4232, %v4296
      %v4329 = vsel %vm4265, %v4233, %v4297
      %v4330 = vsel %vm4266, %v4234, %v4298
      %v4331 = vsel %vm4267, %v4235, %v4299
      %v4332 = vsel %vm4268, %v4236, %v4300
      %v4333 = vsel %vm4269, %v4237, %v4301
      %v4334 = vsel %vm4270, %v4238, %v4302
      %v4335 = vsel %vm4271, %v4239, %v4303
      %v4336 = vsel %vm4272, %v4240, %v4304
      %v4337 = vsel %vm4273, %v4241, %v4305
      %v4338 = vsel %vm4274, %v4242, %v4306
      %v4339 = vsel %vm4275, %v4243, %v4307
      %v4340 = vsel %vm4276, %v4244, %v4308
      %v4341 = vsel %vm4277, %v4245, %v4309
      %v4342 = vsel %vm4278, %v4246, %v4310
      %vm4343 = vcmask 64512
      %4344 = vst.msk [vmem:[%s262] sm:$0xff] %vm4343, %v4311
      %4345 = vst.msk [vmem:[%s262 + $0x8] sm:$0xff] %vm4343, %v4312
      %4346 = vst.msk [vmem:[%s262 + $0x10] sm:$0xff] %vm4343, %v4313
      %4347 = vst.msk [vmem:[%s262 + $0x18] sm:$0xff] %vm4343, %v4314
      %4348 = vst.msk [vmem:[%s262 + $0x20] sm:$0xff] %vm4343, %v4315
      %4349 = vst.msk [vmem:[%s262 + $0x28] sm:$0xff] %vm4343, %v4316
      %4350 = vst.msk [vmem:[%s262 + $0x30] sm:$0xff] %vm4343, %v4317
      %4351 = vst.msk [vmem:[%s262 + $0x38] sm:$0xff] %vm4343, %v4318
      %4352 = vst.msk [vmem:[%s262 + $0x40] sm:$0xff] %vm4343, %v4319
      %4353 = vst.msk [vmem:[%s262 + $0x48] sm:$0xff] %vm4343, %v4320
      %4354 = vst.msk [vmem:[%s262 + $0x50] sm:$0xff] %vm4343, %v4321
      %4355 = vst.msk [vmem:[%s262 + $0x58] sm:$0xff] %vm4343, %v4322
      %4356 = vst.msk [vmem:[%s262 + $0x60] sm:$0xff] %vm4343, %v4323
      %4357 = vst.msk [vmem:[%s262 + $0x68] sm:$0xff] %vm4343, %v4324
      %4358 = vst.msk [vmem:[%s262 + $0x70] sm:$0xff] %vm4343, %v4325
      %4359 = vst.msk [vmem:[%s262 + $0x78] sm:$0xff] %vm4343, %v4326
      %4360 = vst.msk [vmem:[%s262 + $0x80] sm:$0xff] %vm4343, %v4327
      %4361 = vst.msk [vmem:[%s262 + $0x88] sm:$0xff] %vm4343, %v4328
      %4362 = vst.msk [vmem:[%s262 + $0x90] sm:$0xff] %vm4343, %v4329
      %4363 = vst.msk [vmem:[%s262 + $0x98] sm:$0xff] %vm4343, %v4330
      %4364 = vst.msk [vmem:[%s262 + $0xa0] sm:$0xff] %vm4343, %v4331
      %4365 = vst.msk [vmem:[%s262 + $0xa8] sm:$0xff] %vm4343, %v4332
      %4366 = vst.msk [vmem:[%s262 + $0xb0] sm:$0xff] %vm4343, %v4333
      %4367 = vst.msk [vmem:[%s262 + $0xb8] sm:$0xff] %vm4343, %v4334
      %4368 = vst.msk [vmem:[%s262 + $0xc0] sm:$0xff] %vm4343, %v4335
      %4369 = vst.msk [vmem:[%s262 + $0xc8] sm:$0xff] %vm4343, %v4336
      %4370 = vst.msk [vmem:[%s262 + $0xd0] sm:$0xff] %vm4343, %v4337
      %4371 = vst.msk [vmem:[%s262 + $0xd8] sm:$0xff] %vm4343, %v4338
      %4372 = vst.msk [vmem:[%s262 + $0xe0] sm:$0xff] %vm4343, %v4339
      %4373 = vst.msk [vmem:[%s262 + $0xe8] sm:$0xff] %vm4343, %v4340
      %4374 = vst.msk [vmem:[%s262 + $0xf0] sm:$0xff] %vm4343, %v4341
      %4375 = vst.msk [vmem:[%s262 + $0xf8] sm:$0xff] %vm4343, %v4342
      %p4376 = scmp.lt.s32.totalorder %s19, 1
      %s4377 = scalar_select %p4376, %s19, 1
      %p4378 = scmp.lt.s32.totalorder %s20, 0
      %s4379 = scalar_select %p4378, %s20, 0
      %s4380 = smul.addr %s4377, 32
      %s4381 = sadd.s32 %s4379, %s4380
      %s4382 = smul.addr %s4381, 8
      %s4383 = scalar_lea.vmem %s4, %s4382
      // Predicated region
      $region37: #{single_conv_forward.1} parent=35 // pred_check
        %p4384 = pneg %p151
      $region38: #{single_conv_forward.1} parent=35 // pred_check_branch
        %4386 = sbr.rel (%p4384) target = $region40
      $region39: #{single_conv_forward.1} parent=35 // pred_region
        _
      $region40: #{single_conv_forward.1} parent=35 // pred_fallthru
        _
    $region36: #{single_conv_forward.1} parent=5 // pred_fallthru
      _
    %p4387 = scmp.le.s32.totalorder 2, %s10
    // Predicated region
    $region41: #{single_conv_forward.1} parent=5 // pred_check
      %p4388 = pneg %p4387
    $region42: #{single_conv_forward.1} parent=5 // pred_check_branch
      %4390 = sbr.rel (%p4388) target = $region44
    $region43: #{single_conv_forward.1} parent=5 // pred_region
      %s4391 = ssub.s32 %s10, 2
      // Predicated region
      $region45: #{single_conv_forward.1} parent=43 // pred_check
        %p4392 = pneg %p157
      $region46: #{single_conv_forward.1} parent=43 // pred_check_branch
        %4394 = sbr.rel (%p4392) target = $region48
      $region47: #{single_conv_forward.1} parent=43 // pred_region
        %p4395 = scmp.lt.s32.totalorder %s21, 1
        %s4396 = scalar_select %p4395, %s21, 1
        %p4397 = scmp.lt.s32.totalorder %s22, 0
        %s4398 = scalar_select %p4397, %s22, 0
        %s4399 = smul.addr %s4396, 32
        %s4400 = sadd.s32 %s4398, %s4399
        %s4401 = smul.addr %s4400, 8
        %s4402 = scalar_lea.vmem %s4, %s4401
      $region48: #{single_conv_forward.1} parent=43 // pred_fallthru
        _
    $region44: #{single_conv_forward.1} parent=5 // pred_fallthru
      _
  $region6: #{single_conv_forward.1} parent=0 // loop_footer
    %s14 = sadd.s32 1, %s10
  $region7: #{single_conv_forward.1} parent=0 // loop_footer_branch
    %9 = sbr.rel target = $region3
  $region8: #{single_conv_forward.1} parent=0 // loop_exit
    _

</llo_original>
